<compile_context>
chip_gen: v6e
topology: v6e:2x2x1
jax: 0.10.0
libtpu: 0.0.40
codegen_flags: <defaults>
</compile_context>

<pallas_src>
import functools

import jax
import jax.numpy as jnp
from jax import lax
from jax.experimental import pallas as pl
from jax.experimental.pallas import tpu as pltpu


def _round_up(x, m):
    return (x + m - 1) // m * m


# ---------------------------------------------------------------------------
# LSTM kernel: single invocation, recurrence as an in-kernel fori_loop.
# PyTorch gate order i, f, g, o; each gate padded to a 128-wide lane slab.
# ---------------------------------------------------------------------------
def _lstm_kernel(xproj_ref, whh_ref, h0_ref, c0_ref,
                 out_ref, hn_ref, cn_ref, *, hidden_pad, seq_len):
    Hp = hidden_pad

    def step(t, carry):
        h, c = carry
        # x-projection (precomputed, hoisted) + recurrent matmul on the MXU.
        gates = xproj_ref[t] + jnp.dot(h, whh_ref[...],
                                       preferred_element_type=jnp.float32)
        i_g = jax.nn.sigmoid(gates[:, 0 * Hp:1 * Hp])
        f_g = jax.nn.sigmoid(gates[:, 1 * Hp:2 * Hp])
        g_g = jnp.tanh(gates[:, 2 * Hp:3 * Hp])
        o_g = jax.nn.sigmoid(gates[:, 3 * Hp:4 * Hp])
        c_new = f_g * c + i_g * g_g
        h_new = o_g * jnp.tanh(c_new)
        out_ref[t] = h_new
        return h_new, c_new

    h_fin, c_fin = lax.fori_loop(0, seq_len, step,
                                 (h0_ref[...], c0_ref[...]), unroll=True)
    hn_ref[...] = h_fin
    cn_ref[...] = c_fin


def lstm_forward(x, h0, c0, w_ih, w_hh, b_ih, b_hh):
    """x: (T,B,I); h0,c0: (B,H); w_ih: (4H,I); w_hh: (4H,H).

    Returns rnn_out_pad (T,B,Hp), h_n_pad (B,Hp), c_n_pad (B,Hp) with Hp = 128-padded H.
    Padded hidden columns stay exactly 0 through the recurrence (zero weights,
    zero bias, zero initial state).
    """
    T, B, I = x.shape
    H = h0.shape[-1]
    Hp = _round_up(H, 128)

    # Repack weights so gate g occupies lanes [g*Hp, g*Hp + H) (128-aligned slabs).
    w_ih4 = jnp.pad(w_ih.reshape(4, H, I), ((0, 0), (0, Hp - H), (0, 0)))
    wih_t = jnp.transpose(w_ih4, (2, 0, 1)).reshape(I, 4 * Hp)           # (I, 4Hp)
    w_hh4 = jnp.pad(w_hh.reshape(4, H, H), ((0, 0), (0, Hp - H), (0, Hp - H)))
    whh_t = jnp.transpose(w_hh4, (2, 0, 1)).reshape(Hp, 4 * Hp)          # (Hp, 4Hp)
    bias = jnp.pad((b_ih + b_hh).reshape(4, H),
                   ((0, 0), (0, Hp - H))).reshape(1, 1, 4 * Hp)

    h0p = jnp.pad(h0, ((0, 0), (0, Hp - H)))
    c0p = jnp.pad(c0, ((0, 0), (0, Hp - H)))

    # Hoisted batched input projection: one (T*B, I) x (I, 4Hp) MXU matmul.
    x_proj = jnp.einsum('tbi,ij->tbj', x, wih_t) + bias                  # (T,B,4Hp)

    kernel = functools.partial(_lstm_kernel, hidden_pad=Hp, seq_len=T)
    out_shapes = (
        jax.ShapeDtypeStruct((T, B, Hp), jnp.float32),
        jax.ShapeDtypeStruct((B, Hp), jnp.float32),
        jax.ShapeDtypeStruct((B, Hp), jnp.float32),
    )
    rnn_out, h_n, c_n = pl.pallas_call(
        kernel,
        out_shape=out_shapes,
        grid=(1,),
        in_specs=[
            pl.BlockSpec((T, B, 4 * Hp), lambda i: (0, 0, 0)),
            pl.BlockSpec((Hp, 4 * Hp), lambda i: (0, 0)),
            pl.BlockSpec((B, Hp), lambda i: (0, 0)),
            pl.BlockSpec((B, Hp), lambda i: (0, 0)),
        ],
        out_specs=(
            pl.BlockSpec((T, B, Hp), lambda i: (0, 0, 0)),
            pl.BlockSpec((B, Hp), lambda i: (0, 0)),
            pl.BlockSpec((B, Hp), lambda i: (0, 0)),
        ),
        compiler_params=pltpu.CompilerParams(
            dimension_semantics=("arbitrary",)),
    )(x_proj, whh_t, h0p, c0p)
    return rnn_out, h_n, c_n


# ---------------------------------------------------------------------------
# Bahdanau attention score kernel: chunked energy + masked_fill(-65504) + softmax.
# Per-batch blocks; projections are precomputed (batched) outside.
# ---------------------------------------------------------------------------
def _attention_score_kernel(len_ref, pq_ref, pk_ref, v_ref, probs_ref,
                            score_scr, *, t_k, k_chunk):
    b = pl.program_id(0)
    t_q = pq_ref.shape[1]
    n_pad = pq_ref.shape[2]
    tk_pad = score_scr.shape[1]

    pq = pq_ref[0]                                   # (t_q, Np)
    v = v_ref[...].reshape(1, 1, n_pad)              # hoisted broadcast

    # Bahdanau energy, 128 keys at a time: never materialize (t_q, t_k, n).
    num_chunks = tk_pad // k_chunk
    for c in range(num_chunks):
        off = c * k_chunk
        pk_c = pk_ref[0, off:off + k_chunk, :]                       # (kc, Np)
        e = jnp.tanh(pq[:, None, :] + pk_c[None, :, :])              # (t_q, kc, Np)
        score_scr[:, off:off + k_chunk] = jnp.sum(e * v, axis=-1)

    scores = score_scr[...]                                          # (t_q, TKp)
    length = len_ref[b]
    kpos = lax.broadcasted_iota(jnp.int32, (t_q, tk_pad), 1)
    # masked_fill_(mask, -65504.0) — the spec op.
    scores = jnp.where(kpos >= length, jnp.float32(-65504.0), scores)
    if t_k < tk_pad:
        # lane-padding beyond the real t_k: force exactly-zero softmax weight.
        scores = jnp.where(kpos >= t_k, jnp.float32(-jnp.inf), scores)

    m = jnp.max(scores, axis=-1, keepdims=True)
    e = jnp.exp(scores - m)
    s = jnp.sum(e, axis=-1, keepdims=True)
    probs_ref[0] = e * pl.reciprocal(s, approx=True)


def bahdanau_attention(rnn_out_pad, context, context_len, wq, wk,
                       linear_att, normalize_scalar, normalize_bias,
                       *, k_chunk=128):
    """rnn_out_pad: (t_q, B, Hp); context: (t_k, B, C); context_len: (B,) int32."""
    t_q, B, Hp = rnn_out_pad.shape
    t_k, _, C = context.shape
    n, H = wq.shape
    Np = _round_up(n, 128)
    TKp = _round_up(t_k, k_chunk)

    # Normalized attention vector (tiny glue, plain JAX).
    v = (linear_att / jnp.linalg.norm(linear_att)) * normalize_scalar[0]
    v_pad = jnp.pad(v.reshape(1, n), ((0, 0), (0, Np - n)))

    # Batched q/k projections (one big MXU matmul each), written directly in the
    # kernel's batch-first layout; bias folded into the key projection.
    wq_t = jnp.pad(wq.T, ((0, Hp - H), (0, Np - n)))                 # (Hp, Np)
    pq = jnp.einsum('tbh,hn->btn', rnn_out_pad, wq_t)                # (B, t_q, Np)
    pk = jnp.einsum('tbc,cn->btn', context, wk.T) \
        + normalize_bias.reshape(1, 1, n)                            # (B, t_k, n)
    pk = jnp.pad(pk, ((0, 0), (0, TKp - t_k), (0, Np - n)))          # (B, TKp, Np)

    kernel = functools.partial(_attention_score_kernel, t_k=t_k, k_chunk=k_chunk)
    probs = pl.pallas_call(
        kernel,
        out_shape=jax.ShapeDtypeStruct((B, t_q, TKp), jnp.float32),
        grid_spec=pltpu.PrefetchScalarGridSpec(
            num_scalar_prefetch=1,
            grid=(B,),
            in_specs=[
                pl.BlockSpec((1, t_q, Np), lambda b, L: (b, 0, 0)),
                pl.BlockSpec((1, TKp, Np), lambda b, L: (b, 0, 0)),
                pl.BlockSpec((1, Np), lambda b, L: (0, 0)),
            ],
            out_specs=pl.BlockSpec((1, t_q, TKp), lambda b, L: (b, 0, 0)),
            scratch_shapes=[pltpu.VMEM((t_q, TKp), jnp.float32)],
        ),
        compiler_params=pltpu.CompilerParams(
            dimension_semantics=("parallel",)),   # sharded across TCs on v7x
    )(context_len, pq, pk, v_pad)

    probs = probs[..., :t_k]                                         # (B, t_q, t_k)
    # Context bmm as one XLA batched MXU matmul, emitted directly in seq-major
    # layout (no wrapper transpose of the attention output).
    attn_ctx = jnp.einsum('bqk,kbc->qbc', probs, context)            # (t_q, B, C)
    scores = jnp.transpose(probs, (1, 0, 2))                         # (t_q, B, t_k)
    return attn_ctx, scores


# ---------------------------------------------------------------------------
# RecurrentAttention forward (seq-major, like PyTorch with batch_first=False).
# ---------------------------------------------------------------------------
def recurrent_attention_forward(params, inputs, hidden, context, context_len):
    # TODO(synk): nn.Dropout is stochastic in train mode; applied as identity
    # (eval-mode semantics) here.
    h0, c0 = hidden                                    # each (1, B, H)
    H = params["w_hh"].shape[-1]

    rnn_out_pad, h_n_pad, c_n_pad = lstm_forward(
        inputs, h0[0], c0[0],
        params["w_ih"], params["w_hh"], params["b_ih"], params["b_hh"])

    attn_outputs, scores = bahdanau_attention(
        rnn_out_pad, context, context_len,
        params["wq"], params["wk"], params["linear_att"],
        params["normalize_scalar"], params["normalize_bias"])

    rnn_out = rnn_out_pad[..., :H]
    h_n = h_n_pad[:, :H][None]
    c_n = c_n_pad[:, :H][None]
    return rnn_out, (h_n, c_n), attn_outputs, scores


def init_params(key, input_size, hidden_size, context_size, init_weight=0.1):
    ks = jax.random.split(key, 6)
    n = context_size  # num_units
    u = lambda k, shape: jax.random.uniform(
        k, shape, jnp.float32, -init_weight, init_weight)
    return {
        # LSTM (matches init_lstm_: uniform weights & b_ih, zero b_hh)
        "w_ih": u(ks[0], (4 * hidden_size, input_size)),
        "w_hh": u(ks[1], (4 * hidden_size, hidden_size)),
        "b_ih": u(ks[2], (4 * hidden_size,)),
        "b_hh": jnp.zeros((4 * hidden_size,), jnp.float32),
        # BahdanauAttention (normalize=True)
        "wq": u(ks[3], (n, hidden_size)),
        "wk": u(ks[4], (n, context_size)),
        "linear_att": u(ks[5], (n,)),
        "normalize_scalar": jnp.full((1,), 1.0 / jnp.sqrt(float(n)),
                                     jnp.float32),
        "normalize_bias": jnp.zeros((n,), jnp.float32),
    }


if __name__ == "__main__":
    B, T, T_K = 2, 8, 10
    INPUT_SIZE, HIDDEN_SIZE, CONTEXT_SIZE = 32, 32, 32

    key = jax.random.PRNGKey(0)
    kp, kx, kh, kc, kctx = jax.random.split(key, 5)

    params = init_params(kp, INPUT_SIZE, HIDDEN_SIZE, CONTEXT_SIZE)

    inputs = jax.random.normal(kx, (T, B, INPUT_SIZE), jnp.float32)
    h0 = jax.random.normal(kh, (1, B, HIDDEN_SIZE), jnp.float32)
    c0 = jax.random.normal(kc, (1, B, HIDDEN_SIZE), jnp.float32)
    context = jax.random.normal(kctx, (T_K, B, CONTEXT_SIZE), jnp.float32)
    context_len = jnp.array([T_K, 7], dtype=jnp.int32)

    forward = jax.jit(recurrent_attention_forward)
    rnn_out, (h_n, c_n), attn_out, scores = forward(
        params, inputs, (h0, c0), context, context_len)
    jax.block_until_ready((rnn_out, h_n, c_n, attn_out, scores))

    assert rnn_out.shape == (T, B, HIDDEN_SIZE)
    assert h_n.shape == (1, B, HIDDEN_SIZE) and c_n.shape == (1, B, HIDDEN_SIZE)
    assert attn_out.shape == (T, B, CONTEXT_SIZE)
    assert scores.shape == (T, B, T_K)
    print("KERNEL_OK")
</pallas_src>

<mosaic_0001>
module attributes {stable_mosaic.version = 11 : i64} {
  func.func @_lstm_kernel(%arg0: i32, %arg1: memref<8x2x512xf32, #tpu.memory_space<vmem>>, %arg2: memref<128x512xf32, #tpu.memory_space<vmem>>, %arg3: memref<2x128xf32, #tpu.memory_space<vmem>>, %arg4: memref<2x128xf32, #tpu.memory_space<vmem>>, %arg5: memref<8x2x128xf32, #tpu.memory_space<vmem>>, %arg6: memref<2x128xf32, #tpu.memory_space<vmem>>, %arg7: memref<2x128xf32, #tpu.memory_space<vmem>>) attributes {dimension_semantics = [#tpu.dimension_semantics<arbitrary>], iteration_bounds = array<i64: 1>, scalar_prefetch = 0 : i64, scratch_operands = 0 : i64, tpu.core_type = #tpu.core_type<tc>, window_params = [{pipeline_mode = #tpu.pipeline_mode<synchronous>, transform_indices = @transform_0, window_bounds = array<i64: 8, 2, 512>}, {pipeline_mode = #tpu.pipeline_mode<synchronous>, transform_indices = @transform_1, window_bounds = array<i64: 128, 512>}, {pipeline_mode = #tpu.pipeline_mode<synchronous>, transform_indices = @transform_2, window_bounds = array<i64: 2, 128>}, {pipeline_mode = #tpu.pipeline_mode<synchronous>, transform_indices = @transform_3, window_bounds = array<i64: 2, 128>}, {pipeline_mode = #tpu.pipeline_mode<synchronous>, transform_indices = @transform_4, window_bounds = array<i64: 8, 2, 128>}, {pipeline_mode = #tpu.pipeline_mode<synchronous>, transform_indices = @transform_5, window_bounds = array<i64: 2, 128>}, {pipeline_mode = #tpu.pipeline_mode<synchronous>, transform_indices = @transform_6, window_bounds = array<i64: 2, 128>}]} {
    %c0 = arith.constant 0 : index
    %c0_0 = arith.constant 0 : index
    %0 = vector.load %arg3[%c0, %c0_0] : memref<2x128xf32, #tpu.memory_space<vmem>>, vector<2x128xf32>
    %c0_1 = arith.constant 0 : index
    %c0_2 = arith.constant 0 : index
    %1 = vector.load %arg4[%c0_1, %c0_2] : memref<2x128xf32, #tpu.memory_space<vmem>>, vector<2x128xf32>
    %c0_i32 = arith.constant 0 : i32
    %2 = arith.index_cast %c0_i32 : i32 to index
    %c0_3 = arith.constant 0 : index
    %c0_4 = arith.constant 0 : index
    %3 = vector.load %arg1[%2, %c0_3, %c0_4] : memref<8x2x512xf32, #tpu.memory_space<vmem>>, vector<1x2x512xf32>
    %4 = vector.shape_cast %3 : vector<1x2x512xf32> to vector<2x512xf32>
    %c0_5 = arith.constant 0 : index
    %c0_6 = arith.constant 0 : index
    %5 = vector.load %arg2[%c0_5, %c0_6] : memref<128x512xf32, #tpu.memory_space<vmem>>, vector<128x512xf32>
    %cst = arith.constant dense<0.000000e+00> : vector<2x512xf32>
    %6 = tpu.matmul %0, %5, %cst {dimension_numbers = #tpu.dot_dimension_numbers<[1], [0], [0], [1], [0, 0, 1, 1], [], []>} : vector<2x128xf32>, vector<128x512xf32>, vector<2x512xf32> -> vector<2x512xf32>
    %7 = arith.addf %4, %6 : vector<2x512xf32>
    %8 = vector.extract_strided_slice %7 {offsets = [0, 0], sizes = [2, 128], strides = [1, 1]} : vector<2x512xf32> to vector<2x128xf32>
    %9 = arith.negf %8 : vector<2x128xf32>
    %10 = math.exp %9 : vector<2x128xf32>
    %cst_7 = arith.constant 1.000000e+00 : f32
    %11 = vector.broadcast %cst_7 : f32 to vector<2x128xf32>
    %12 = arith.addf %11, %10 : vector<2x128xf32>
    %13 = arith.divf %11, %12 : vector<2x128xf32>
    %14 = vector.extract_strided_slice %7 {offsets = [0, 128], sizes = [2, 128], strides = [1, 1]} : vector<2x512xf32> to vector<2x128xf32>
    %15 = arith.negf %14 : vector<2x128xf32>
    %16 = math.exp %15 : vector<2x128xf32>
    %cst_8 = arith.constant 1.000000e+00 : f32
    %17 = vector.broadcast %cst_8 : f32 to vector<2x128xf32>
    %18 = arith.addf %17, %16 : vector<2x128xf32>
    %19 = arith.divf %17, %18 : vector<2x128xf32>
    %20 = vector.extract_strided_slice %7 {offsets = [0, 256], sizes = [2, 128], strides = [1, 1]} : vector<2x512xf32> to vector<2x128xf32>
    %21 = math.tanh %20 : vector<2x128xf32>
    %22 = vector.extract_strided_slice %7 {offsets = [0, 384], sizes = [2, 128], strides = [1, 1]} : vector<2x512xf32> to vector<2x128xf32>
    %23 = arith.negf %22 : vector<2x128xf32>
    %24 = math.exp %23 : vector<2x128xf32>
    %cst_9 = arith.constant 1.000000e+00 : f32
    %25 = vector.broadcast %cst_9 : f32 to vector<2x128xf32>
    %26 = arith.addf %25, %24 : vector<2x128xf32>
    %27 = arith.divf %25, %26 : vector<2x128xf32>
    %28 = arith.mulf %19, %1 : vector<2x128xf32>
    %29 = arith.mulf %13, %21 : vector<2x128xf32>
    %30 = arith.addf %28, %29 : vector<2x128xf32>
    %31 = math.tanh %30 : vector<2x128xf32>
    %32 = arith.mulf %27, %31 : vector<2x128xf32>
    %33 = arith.index_cast %c0_i32 : i32 to index
    %c0_10 = arith.constant 0 : index
    %c0_11 = arith.constant 0 : index
    %34 = vector.load %arg5[%33, %c0_10, %c0_11] : memref<8x2x128xf32, #tpu.memory_space<vmem>>, vector<1x2x128xf32>
    %35 = vector.shape_cast %34 : vector<1x2x128xf32> to vector<2x128xf32>
    %36 = vector.shape_cast %32 : vector<2x128xf32> to vector<1x2x128xf32>
    tpu.vector_store %arg5[%33, %c0_10, %c0_11], %36 {strides = array<i32>} : memref<8x2x128xf32, #tpu.memory_space<vmem>>, vector<1x2x128xf32>,
    %c1_i32 = arith.constant 1 : i32
    %37 = arith.index_cast %c1_i32 : i32 to index
    %c0_12 = arith.constant 0 : index
    %c0_13 = arith.constant 0 : index
    %38 = vector.load %arg1[%37, %c0_12, %c0_13] : memref<8x2x512xf32, #tpu.memory_space<vmem>>, vector<1x2x512xf32>
    %39 = vector.shape_cast %38 : vector<1x2x512xf32> to vector<2x512xf32>
    %c0_14 = arith.constant 0 : index
    %c0_15 = arith.constant 0 : index
    %40 = vector.load %arg2[%c0_14, %c0_15] : memref<128x512xf32, #tpu.memory_space<vmem>>, vector<128x512xf32>
    %cst_16 = arith.constant dense<0.000000e+00> : vector<2x512xf32>
    %41 = tpu.matmul %32, %40, %cst_16 {dimension_numbers = #tpu.dot_dimension_numbers<[1], [0], [0], [1], [0, 0, 1, 1], [], []>} : vector<2x128xf32>, vector<128x512xf32>, vector<2x512xf32> -> vector<2x512xf32>
    %42 = arith.addf %39, %41 : vector<2x512xf32>
    %43 = vector.extract_strided_slice %42 {offsets = [0, 0], sizes = [2, 128], strides = [1, 1]} : vector<2x512xf32> to vector<2x128xf32>
    %44 = arith.negf %43 : vector<2x128xf32>
    %45 = math.exp %44 : vector<2x128xf32>
    %cst_17 = arith.constant 1.000000e+00 : f32
    %46 = vector.broadcast %cst_17 : f32 to vector<2x128xf32>
    %47 = arith.addf %46, %45 : vector<2x128xf32>
    %48 = arith.divf %46, %47 : vector<2x128xf32>
    %49 = vector.extract_strided_slice %42 {offsets = [0, 128], sizes = [2, 128], strides = [1, 1]} : vector<2x512xf32> to vector<2x128xf32>
    %50 = arith.negf %49 : vector<2x128xf32>
    %51 = math.exp %50 : vector<2x128xf32>
    %cst_18 = arith.constant 1.000000e+00 : f32
    %52 = vector.broadcast %cst_18 : f32 to vector<2x128xf32>
    %53 = arith.addf %52, %51 : vector<2x128xf32>
    %54 = arith.divf %52, %53 : vector<2x128xf32>
    %55 = vector.extract_strided_slice %42 {offsets = [0, 256], sizes = [2, 128], strides = [1, 1]} : vector<2x512xf32> to vector<2x128xf32>
    %56 = math.tanh %55 : vector<2x128xf32>
    %57 = vector.extract_strided_slice %42 {offsets = [0, 384], sizes = [2, 128], strides = [1, 1]} : vector<2x512xf32> to vector<2x128xf32>
    %58 = arith.negf %57 : vector<2x128xf32>
    %59 = math.exp %58 : vector<2x128xf32>
    %cst_19 = arith.constant 1.000000e+00 : f32
    %60 = vector.broadcast %cst_19 : f32 to vector<2x128xf32>
    %61 = arith.addf %60, %59 : vector<2x128xf32>
    %62 = arith.divf %60, %61 : vector<2x128xf32>
    %63 = arith.mulf %54, %30 : vector<2x128xf32>
    %64 = arith.mulf %48, %56 : vector<2x128xf32>
    %65 = arith.addf %63, %64 : vector<2x128xf32>
    %66 = math.tanh %65 : vector<2x128xf32>
    %67 = arith.mulf %62, %66 : vector<2x128xf32>
    %68 = arith.index_cast %c1_i32 : i32 to index
    %c0_20 = arith.constant 0 : index
    %c0_21 = arith.constant 0 : index
    %69 = vector.load %arg5[%68, %c0_20, %c0_21] : memref<8x2x128xf32, #tpu.memory_space<vmem>>, vector<1x2x128xf32>
    %70 = vector.shape_cast %69 : vector<1x2x128xf32> to vector<2x128xf32>
    %71 = vector.shape_cast %67 : vector<2x128xf32> to vector<1x2x128xf32>
    tpu.vector_store %arg5[%68, %c0_20, %c0_21], %71 {strides = array<i32>} : memref<8x2x128xf32, #tpu.memory_space<vmem>>, vector<1x2x128xf32>,
    %c2_i32 = arith.constant 2 : i32
    %72 = arith.index_cast %c2_i32 : i32 to index
    %c0_22 = arith.constant 0 : index
    %c0_23 = arith.constant 0 : index
    %73 = vector.load %arg1[%72, %c0_22, %c0_23] : memref<8x2x512xf32, #tpu.memory_space<vmem>>, vector<1x2x512xf32>
    %74 = vector.shape_cast %73 : vector<1x2x512xf32> to vector<2x512xf32>
    %c0_24 = arith.constant 0 : index
    %c0_25 = arith.constant 0 : index
    %75 = vector.load %arg2[%c0_24, %c0_25] : memref<128x512xf32, #tpu.memory_space<vmem>>, vector<128x512xf32>
    %cst_26 = arith.constant dense<0.000000e+00> : vector<2x512xf32>
    %76 = tpu.matmul %67, %75, %cst_26 {dimension_numbers = #tpu.dot_dimension_numbers<[1], [0], [0], [1], [0, 0, 1, 1], [], []>} : vector<2x128xf32>, vector<128x512xf32>, vector<2x512xf32> -> vector<2x512xf32>
    %77 = arith.addf %74, %76 : vector<2x512xf32>
    %78 = vector.extract_strided_slice %77 {offsets = [0, 0], sizes = [2, 128], strides = [1, 1]} : vector<2x512xf32> to vector<2x128xf32>
    %79 = arith.negf %78 : vector<2x128xf32>
    %80 = math.exp %79 : vector<2x128xf32>
    %cst_27 = arith.constant 1.000000e+00 : f32
    %81 = vector.broadcast %cst_27 : f32 to vector<2x128xf32>
    %82 = arith.addf %81, %80 : vector<2x128xf32>
    %83 = arith.divf %81, %82 : vector<2x128xf32>
    %84 = vector.extract_strided_slice %77 {offsets = [0, 128], sizes = [2, 128], strides = [1, 1]} : vector<2x512xf32> to vector<2x128xf32>
    %85 = arith.negf %84 : vector<2x128xf32>
    %86 = math.exp %85 : vector<2x128xf32>
    %cst_28 = arith.constant 1.000000e+00 : f32
    %87 = vector.broadcast %cst_28 : f32 to vector<2x128xf32>
    %88 = arith.addf %87, %86 : vector<2x128xf32>
    %89 = arith.divf %87, %88 : vector<2x128xf32>
    %90 = vector.extract_strided_slice %77 {offsets = [0, 256], sizes = [2, 128], strides = [1, 1]} : vector<2x512xf32> to vector<2x128xf32>
    %91 = math.tanh %90 : vector<2x128xf32>
    %92 = vector.extract_strided_slice %77 {offsets = [0, 384], sizes = [2, 128], strides = [1, 1]} : vector<2x512xf32> to vector<2x128xf32>
    %93 = arith.negf %92 : vector<2x128xf32>
    %94 = math.exp %93 : vector<2x128xf32>
    %cst_29 = arith.constant 1.000000e+00 : f32
    %95 = vector.broadcast %cst_29 : f32 to vector<2x128xf32>
    %96 = arith.addf %95, %94 : vector<2x128xf32>
    %97 = arith.divf %95, %96 : vector<2x128xf32>
    %98 = arith.mulf %89, %65 : vector<2x128xf32>
    %99 = arith.mulf %83, %91 : vector<2x128xf32>
    %100 = arith.addf %98, %99 : vector<2x128xf32>
    %101 = math.tanh %100 : vector<2x128xf32>
    %102 = arith.mulf %97, %101 : vector<2x128xf32>
    %103 = arith.index_cast %c2_i32 : i32 to index
    %c0_30 = arith.constant 0 : index
    %c0_31 = arith.constant 0 : index
    %104 = vector.load %arg5[%103, %c0_30, %c0_31] : memref<8x2x128xf32, #tpu.memory_space<vmem>>, vector<1x2x128xf32>
    %105 = vector.shape_cast %104 : vector<1x2x128xf32> to vector<2x128xf32>
    %106 = vector.shape_cast %102 : vector<2x128xf32> to vector<1x2x128xf32>
    tpu.vector_store %arg5[%103, %c0_30, %c0_31], %106 {strides = array<i32>} : memref<8x2x128xf32, #tpu.memory_space<vmem>>, vector<1x2x128xf32>,
    %c3_i32 = arith.constant 3 : i32
    %107 = arith.index_cast %c3_i32 : i32 to index
    %c0_32 = arith.constant 0 : index
    %c0_33 = arith.constant 0 : index
    %108 = vector.load %arg1[%107, %c0_32, %c0_33] : memref<8x2x512xf32, #tpu.memory_space<vmem>>, vector<1x2x512xf32>
    %109 = vector.shape_cast %108 : vector<1x2x512xf32> to vector<2x512xf32>
    %c0_34 = arith.constant 0 : index
    %c0_35 = arith.constant 0 : index
    %110 = vector.load %arg2[%c0_34, %c0_35] : memref<128x512xf32, #tpu.memory_space<vmem>>, vector<128x512xf32>
    %cst_36 = arith.constant dense<0.000000e+00> : vector<2x512xf32>
    %111 = tpu.matmul %102, %110, %cst_36 {dimension_numbers = #tpu.dot_dimension_numbers<[1], [0], [0], [1], [0, 0, 1, 1], [], []>} : vector<2x128xf32>, vector<128x512xf32>, vector<2x512xf32> -> vector<2x512xf32>
    %112 = arith.addf %109, %111 : vector<2x512xf32>
    %113 = vector.extract_strided_slice %112 {offsets = [0, 0], sizes = [2, 128], strides = [1, 1]} : vector<2x512xf32> to vector<2x128xf32>
    %114 = arith.negf %113 : vector<2x128xf32>
    %115 = math.exp %114 : vector<2x128xf32>
    %cst_37 = arith.constant 1.000000e+00 : f32
    %116 = vector.broadcast %cst_37 : f32 to vector<2x128xf32>
    %117 = arith.addf %116, %115 : vector<2x128xf32>
    %118 = arith.divf %116, %117 : vector<2x128xf32>
    %119 = vector.extract_strided_slice %112 {offsets = [0, 128], sizes = [2, 128], strides = [1, 1]} : vector<2x512xf32> to vector<2x128xf32>
    %120 = arith.negf %119 : vector<2x128xf32>
    %121 = math.exp %120 : vector<2x128xf32>
    %cst_38 = arith.constant 1.000000e+00 : f32
    %122 = vector.broadcast %cst_38 : f32 to vector<2x128xf32>
    %123 = arith.addf %122, %121 : vector<2x128xf32>
    %124 = arith.divf %122, %123 : vector<2x128xf32>
    %125 = vector.extract_strided_slice %112 {offsets = [0, 256], sizes = [2, 128], strides = [1, 1]} : vector<2x512xf32> to vector<2x128xf32>
    %126 = math.tanh %125 : vector<2x128xf32>
    %127 = vector.extract_strided_slice %112 {offsets = [0, 384], sizes = [2, 128], strides = [1, 1]} : vector<2x512xf32> to vector<2x128xf32>
    %128 = arith.negf %127 : vector<2x128xf32>
    %129 = math.exp %128 : vector<2x128xf32>
    %cst_39 = arith.constant 1.000000e+00 : f32
    %130 = vector.broadcast %cst_39 : f32 to vector<2x128xf32>
    %131 = arith.addf %130, %129 : vector<2x128xf32>
    %132 = arith.divf %130, %131 : vector<2x128xf32>
    %133 = arith.mulf %124, %100 : vector<2x128xf32>
    %134 = arith.mulf %118, %126 : vector<2x128xf32>
    %135 = arith.addf %133, %134 : vector<2x128xf32>
    %136 = math.tanh %135 : vector<2x128xf32>
    %137 = arith.mulf %132, %136 : vector<2x128xf32>
    %138 = arith.index_cast %c3_i32 : i32 to index
    %c0_40 = arith.constant 0 : index
    %c0_41 = arith.constant 0 : index
    %139 = vector.load %arg5[%138, %c0_40, %c0_41] : memref<8x2x128xf32, #tpu.memory_space<vmem>>, vector<1x2x128xf32>
    %140 = vector.shape_cast %139 : vector<1x2x128xf32> to vector<2x128xf32>
    %141 = vector.shape_cast %137 : vector<2x128xf32> to vector<1x2x128xf32>
    tpu.vector_store %arg5[%138, %c0_40, %c0_41], %141 {strides = array<i32>} : memref<8x2x128xf32, #tpu.memory_space<vmem>>, vector<1x2x128xf32>,
    %c4_i32 = arith.constant 4 : i32
    %142 = arith.index_cast %c4_i32 : i32 to index
    %c0_42 = arith.constant 0 : index
    %c0_43 = arith.constant 0 : index
    %143 = vector.load %arg1[%142, %c0_42, %c0_43] : memref<8x2x512xf32, #tpu.memory_space<vmem>>, vector<1x2x512xf32>
    %144 = vector.shape_cast %143 : vector<1x2x512xf32> to vector<2x512xf32>
    %c0_44 = arith.constant 0 : index
    %c0_45 = arith.constant 0 : index
    %145 = vector.load %arg2[%c0_44, %c0_45] : memref<128x512xf32, #tpu.memory_space<vmem>>, vector<128x512xf32>
    %cst_46 = arith.constant dense<0.000000e+00> : vector<2x512xf32>
    %146 = tpu.matmul %137, %145, %cst_46 {dimension_numbers = #tpu.dot_dimension_numbers<[1], [0], [0], [1], [0, 0, 1, 1], [], []>} : vector<2x128xf32>, vector<128x512xf32>, vector<2x512xf32> -> vector<2x512xf32>
    %147 = arith.addf %144, %146 : vector<2x512xf32>
    %148 = vector.extract_strided_slice %147 {offsets = [0, 0], sizes = [2, 128], strides = [1, 1]} : vector<2x512xf32> to vector<2x128xf32>
    %149 = arith.negf %148 : vector<2x128xf32>
    %150 = math.exp %149 : vector<2x128xf32>
    %cst_47 = arith.constant 1.000000e+00 : f32
    %151 = vector.broadcast %cst_47 : f32 to vector<2x128xf32>
    %152 = arith.addf %151, %150 : vector<2x128xf32>
    %153 = arith.divf %151, %152 : vector<2x128xf32>
    %154 = vector.extract_strided_slice %147 {offsets = [0, 128], sizes = [2, 128], strides = [1, 1]} : vector<2x512xf32> to vector<2x128xf32>
    %155 = arith.negf %154 : vector<2x128xf32>
    %156 = math.exp %155 : vector<2x128xf32>
    %cst_48 = arith.constant 1.000000e+00 : f32
    %157 = vector.broadcast %cst_48 : f32 to vector<2x128xf32>
    %158 = arith.addf %157, %156 : vector<2x128xf32>
    %159 = arith.divf %157, %158 : vector<2x128xf32>
    %160 = vector.extract_strided_slice %147 {offsets = [0, 256], sizes = [2, 128], strides = [1, 1]} : vector<2x512xf32> to vector<2x128xf32>
    %161 = math.tanh %160 : vector<2x128xf32>
    %162 = vector.extract_strided_slice %147 {offsets = [0, 384], sizes = [2, 128], strides = [1, 1]} : vector<2x512xf32> to vector<2x128xf32>
    %163 = arith.negf %162 : vector<2x128xf32>
    %164 = math.exp %163 : vector<2x128xf32>
    %cst_49 = arith.constant 1.000000e+00 : f32
    %165 = vector.broadcast %cst_49 : f32 to vector<2x128xf32>
    %166 = arith.addf %165, %164 : vector<2x128xf32>
    %167 = arith.divf %165, %166 : vector<2x128xf32>
    %168 = arith.mulf %159, %135 : vector<2x128xf32>
    %169 = arith.mulf %153, %161 : vector<2x128xf32>
    %170 = arith.addf %168, %169 : vector<2x128xf32>
    %171 = math.tanh %170 : vector<2x128xf32>
    %172 = arith.mulf %167, %171 : vector<2x128xf32>
    %173 = arith.index_cast %c4_i32 : i32 to index
    %c0_50 = arith.constant 0 : index
    %c0_51 = arith.constant 0 : index
    %174 = vector.load %arg5[%173, %c0_50, %c0_51] : memref<8x2x128xf32, #tpu.memory_space<vmem>>, vector<1x2x128xf32>
    %175 = vector.shape_cast %174 : vector<1x2x128xf32> to vector<2x128xf32>
    %176 = vector.shape_cast %172 : vector<2x128xf32> to vector<1x2x128xf32>
    tpu.vector_store %arg5[%173, %c0_50, %c0_51], %176 {strides = array<i32>} : memref<8x2x128xf32, #tpu.memory_space<vmem>>, vector<1x2x128xf32>,
    %c5_i32 = arith.constant 5 : i32
    %177 = arith.index_cast %c5_i32 : i32 to index
    %c0_52 = arith.constant 0 : index
    %c0_53 = arith.constant 0 : index
    %178 = vector.load %arg1[%177, %c0_52, %c0_53] : memref<8x2x512xf32, #tpu.memory_space<vmem>>, vector<1x2x512xf32>
    %179 = vector.shape_cast %178 : vector<1x2x512xf32> to vector<2x512xf32>
    %c0_54 = arith.constant 0 : index
    %c0_55 = arith.constant 0 : index
    %180 = vector.load %arg2[%c0_54, %c0_55] : memref<128x512xf32, #tpu.memory_space<vmem>>, vector<128x512xf32>
    %cst_56 = arith.constant dense<0.000000e+00> : vector<2x512xf32>
    %181 = tpu.matmul %172, %180, %cst_56 {dimension_numbers = #tpu.dot_dimension_numbers<[1], [0], [0], [1], [0, 0, 1, 1], [], []>} : vector<2x128xf32>, vector<128x512xf32>, vector<2x512xf32> -> vector<2x512xf32>
    %182 = arith.addf %179, %181 : vector<2x512xf32>
    %183 = vector.extract_strided_slice %182 {offsets = [0, 0], sizes = [2, 128], strides = [1, 1]} : vector<2x512xf32> to vector<2x128xf32>
    %184 = arith.negf %183 : vector<2x128xf32>
    %185 = math.exp %184 : vector<2x128xf32>
    %cst_57 = arith.constant 1.000000e+00 : f32
    %186 = vector.broadcast %cst_57 : f32 to vector<2x128xf32>
    %187 = arith.addf %186, %185 : vector<2x128xf32>
    %188 = arith.divf %186, %187 : vector<2x128xf32>
    %189 = vector.extract_strided_slice %182 {offsets = [0, 128], sizes = [2, 128], strides = [1, 1]} : vector<2x512xf32> to vector<2x128xf32>
    %190 = arith.negf %189 : vector<2x128xf32>
    %191 = math.exp %190 : vector<2x128xf32>
    %cst_58 = arith.constant 1.000000e+00 : f32
    %192 = vector.broadcast %cst_58 : f32 to vector<2x128xf32>
    %193 = arith.addf %192, %191 : vector<2x128xf32>
    %194 = arith.divf %192, %193 : vector<2x128xf32>
    %195 = vector.extract_strided_slice %182 {offsets = [0, 256], sizes = [2, 128], strides = [1, 1]} : vector<2x512xf32> to vector<2x128xf32>
    %196 = math.tanh %195 : vector<2x128xf32>
    %197 = vector.extract_strided_slice %182 {offsets = [0, 384], sizes = [2, 128], strides = [1, 1]} : vector<2x512xf32> to vector<2x128xf32>
    %198 = arith.negf %197 : vector<2x128xf32>
    %199 = math.exp %198 : vector<2x128xf32>
    %cst_59 = arith.constant 1.000000e+00 : f32
    %200 = vector.broadcast %cst_59 : f32 to vector<2x128xf32>
    %201 = arith.addf %200, %199 : vector<2x128xf32>
    %202 = arith.divf %200, %201 : vector<2x128xf32>
    %203 = arith.mulf %194, %170 : vector<2x128xf32>
    %204 = arith.mulf %188, %196 : vector<2x128xf32>
    %205 = arith.addf %203, %204 : vector<2x128xf32>
    %206 = math.tanh %205 : vector<2x128xf32>
    %207 = arith.mulf %202, %206 : vector<2x128xf32>
    %208 = arith.index_cast %c5_i32 : i32 to index
    %c0_60 = arith.constant 0 : index
    %c0_61 = arith.constant 0 : index
    %209 = vector.load %arg5[%208, %c0_60, %c0_61] : memref<8x2x128xf32, #tpu.memory_space<vmem>>, vector<1x2x128xf32>
    %210 = vector.shape_cast %209 : vector<1x2x128xf32> to vector<2x128xf32>
    %211 = vector.shape_cast %207 : vector<2x128xf32> to vector<1x2x128xf32>
    tpu.vector_store %arg5[%208, %c0_60, %c0_61], %211 {strides = array<i32>} : memref<8x2x128xf32, #tpu.memory_space<vmem>>, vector<1x2x128xf32>,
    %c6_i32 = arith.constant 6 : i32
    %212 = arith.index_cast %c6_i32 : i32 to index
    %c0_62 = arith.constant 0 : index
    %c0_63 = arith.constant 0 : index
    %213 = vector.load %arg1[%212, %c0_62, %c0_63] : memref<8x2x512xf32, #tpu.memory_space<vmem>>, vector<1x2x512xf32>
    %214 = vector.shape_cast %213 : vector<1x2x512xf32> to vector<2x512xf32>
    %c0_64 = arith.constant 0 : index
    %c0_65 = arith.constant 0 : index
    %215 = vector.load %arg2[%c0_64, %c0_65] : memref<128x512xf32, #tpu.memory_space<vmem>>, vector<128x512xf32>
    %cst_66 = arith.constant dense<0.000000e+00> : vector<2x512xf32>
    %216 = tpu.matmul %207, %215, %cst_66 {dimension_numbers = #tpu.dot_dimension_numbers<[1], [0], [0], [1], [0, 0, 1, 1], [], []>} : vector<2x128xf32>, vector<128x512xf32>, vector<2x512xf32> -> vector<2x512xf32>
    %217 = arith.addf %214, %216 : vector<2x512xf32>
    %218 = vector.extract_strided_slice %217 {offsets = [0, 0], sizes = [2, 128], strides = [1, 1]} : vector<2x512xf32> to vector<2x128xf32>
    %219 = arith.negf %218 : vector<2x128xf32>
    %220 = math.exp %219 : vector<2x128xf32>
    %cst_67 = arith.constant 1.000000e+00 : f32
    %221 = vector.broadcast %cst_67 : f32 to vector<2x128xf32>
    %222 = arith.addf %221, %220 : vector<2x128xf32>
    %223 = arith.divf %221, %222 : vector<2x128xf32>
    %224 = vector.extract_strided_slice %217 {offsets = [0, 128], sizes = [2, 128], strides = [1, 1]} : vector<2x512xf32> to vector<2x128xf32>
    %225 = arith.negf %224 : vector<2x128xf32>
    %226 = math.exp %225 : vector<2x128xf32>
    %cst_68 = arith.constant 1.000000e+00 : f32
    %227 = vector.broadcast %cst_68 : f32 to vector<2x128xf32>
    %228 = arith.addf %227, %226 : vector<2x128xf32>
    %229 = arith.divf %227, %228 : vector<2x128xf32>
    %230 = vector.extract_strided_slice %217 {offsets = [0, 256], sizes = [2, 128], strides = [1, 1]} : vector<2x512xf32> to vector<2x128xf32>
    %231 = math.tanh %230 : vector<2x128xf32>
    %232 = vector.extract_strided_slice %217 {offsets = [0, 384], sizes = [2, 128], strides = [1, 1]} : vector<2x512xf32> to vector<2x128xf32>
    %233 = arith.negf %232 : vector<2x128xf32>
    %234 = math.exp %233 : vector<2x128xf32>
    %cst_69 = arith.constant 1.000000e+00 : f32
    %235 = vector.broadcast %cst_69 : f32 to vector<2x128xf32>
    %236 = arith.addf %235, %234 : vector<2x128xf32>
    %237 = arith.divf %235, %236 : vector<2x128xf32>
    %238 = arith.mulf %229, %205 : vector<2x128xf32>
    %239 = arith.mulf %223, %231 : vector<2x128xf32>
    %240 = arith.addf %238, %239 : vector<2x128xf32>
    %241 = math.tanh %240 : vector<2x128xf32>
    %242 = arith.mulf %237, %241 : vector<2x128xf32>
    %243 = arith.index_cast %c6_i32 : i32 to index
    %c0_70 = arith.constant 0 : index
    %c0_71 = arith.constant 0 : index
    %244 = vector.load %arg5[%243, %c0_70, %c0_71] : memref<8x2x128xf32, #tpu.memory_space<vmem>>, vector<1x2x128xf32>
    %245 = vector.shape_cast %244 : vector<1x2x128xf32> to vector<2x128xf32>
    %246 = vector.shape_cast %242 : vector<2x128xf32> to vector<1x2x128xf32>
    tpu.vector_store %arg5[%243, %c0_70, %c0_71], %246 {strides = array<i32>} : memref<8x2x128xf32, #tpu.memory_space<vmem>>, vector<1x2x128xf32>,
    %c7_i32 = arith.constant 7 : i32
    %247 = arith.index_cast %c7_i32 : i32 to index
    %c0_72 = arith.constant 0 : index
    %c0_73 = arith.constant 0 : index
    %248 = vector.load %arg1[%247, %c0_72, %c0_73] : memref<8x2x512xf32, #tpu.memory_space<vmem>>, vector<1x2x512xf32>
    %249 = vector.shape_cast %248 : vector<1x2x512xf32> to vector<2x512xf32>
    %c0_74 = arith.constant 0 : index
    %c0_75 = arith.constant 0 : index
    %250 = vector.load %arg2[%c0_74, %c0_75] : memref<128x512xf32, #tpu.memory_space<vmem>>, vector<128x512xf32>
    %cst_76 = arith.constant dense<0.000000e+00> : vector<2x512xf32>
    %251 = tpu.matmul %242, %250, %cst_76 {dimension_numbers = #tpu.dot_dimension_numbers<[1], [0], [0], [1], [0, 0, 1, 1], [], []>} : vector<2x128xf32>, vector<128x512xf32>, vector<2x512xf32> -> vector<2x512xf32>
    %252 = arith.addf %249, %251 : vector<2x512xf32>
    %253 = vector.extract_strided_slice %252 {offsets = [0, 0], sizes = [2, 128], strides = [1, 1]} : vector<2x512xf32> to vector<2x128xf32>
    %254 = arith.negf %253 : vector<2x128xf32>
    %255 = math.exp %254 : vector<2x128xf32>
    %cst_77 = arith.constant 1.000000e+00 : f32
    %256 = vector.broadcast %cst_77 : f32 to vector<2x128xf32>
    %257 = arith.addf %256, %255 : vector<2x128xf32>
    %258 = arith.divf %256, %257 : vector<2x128xf32>
    %259 = vector.extract_strided_slice %252 {offsets = [0, 128], sizes = [2, 128], strides = [1, 1]} : vector<2x512xf32> to vector<2x128xf32>
    %260 = arith.negf %259 : vector<2x128xf32>
    %261 = math.exp %260 : vector<2x128xf32>
    %cst_78 = arith.constant 1.000000e+00 : f32
    %262 = vector.broadcast %cst_78 : f32 to vector<2x128xf32>
    %263 = arith.addf %262, %261 : vector<2x128xf32>
    %264 = arith.divf %262, %263 : vector<2x128xf32>
    %265 = vector.extract_strided_slice %252 {offsets = [0, 256], sizes = [2, 128], strides = [1, 1]} : vector<2x512xf32> to vector<2x128xf32>
    %266 = math.tanh %265 : vector<2x128xf32>
    %267 = vector.extract_strided_slice %252 {offsets = [0, 384], sizes = [2, 128], strides = [1, 1]} : vector<2x512xf32> to vector<2x128xf32>
    %268 = arith.negf %267 : vector<2x128xf32>
    %269 = math.exp %268 : vector<2x128xf32>
    %cst_79 = arith.constant 1.000000e+00 : f32
    %270 = vector.broadcast %cst_79 : f32 to vector<2x128xf32>
    %271 = arith.addf %270, %269 : vector<2x128xf32>
    %272 = arith.divf %270, %271 : vector<2x128xf32>
    %273 = arith.mulf %264, %240 : vector<2x128xf32>
    %274 = arith.mulf %258, %266 : vector<2x128xf32>
    %275 = arith.addf %273, %274 : vector<2x128xf32>
    %276 = math.tanh %275 : vector<2x128xf32>
    %277 = arith.mulf %272, %276 : vector<2x128xf32>
    %278 = arith.index_cast %c7_i32 : i32 to index
    %c0_80 = arith.constant 0 : index
    %c0_81 = arith.constant 0 : index
    %279 = vector.load %arg5[%278, %c0_80, %c0_81] : memref<8x2x128xf32, #tpu.memory_space<vmem>>, vector<1x2x128xf32>
    %280 = vector.shape_cast %279 : vector<1x2x128xf32> to vector<2x128xf32>
    %281 = vector.shape_cast %277 : vector<2x128xf32> to vector<1x2x128xf32>
    tpu.vector_store %arg5[%278, %c0_80, %c0_81], %281 {strides = array<i32>} : memref<8x2x128xf32, #tpu.memory_space<vmem>>, vector<1x2x128xf32>,
    %c8_i32 = arith.constant 8 : i32
    %c0_82 = arith.constant 0 : index
    %c0_83 = arith.constant 0 : index
    %282 = vector.load %arg6[%c0_82, %c0_83] : memref<2x128xf32, #tpu.memory_space<vmem>>, vector<2x128xf32>
    tpu.vector_store %arg6[%c0_82, %c0_83], %277 {strides = array<i32>} : memref<2x128xf32, #tpu.memory_space<vmem>>, vector<2x128xf32>,
    %c0_84 = arith.constant 0 : index
    %c0_85 = arith.constant 0 : index
    %283 = vector.load %arg7[%c0_84, %c0_85] : memref<2x128xf32, #tpu.memory_space<vmem>>, vector<2x128xf32>
    tpu.vector_store %arg7[%c0_84, %c0_85], %275 {strides = array<i32>} : memref<2x128xf32, #tpu.memory_space<vmem>>, vector<2x128xf32>,
    return
  }
  func.func @transform_0(%arg0: i32) -> (i32, i32, i32) {
    %c0_i32 = arith.constant 0 : i32
    %c0_i32_0 = arith.constant 0 : i32
    %c0_i32_1 = arith.constant 0 : i32
    %c0_i32_2 = arith.constant 0 : i32
    return %c0_i32, %c0_i32_0, %c0_i32_1 : i32, i32, i32
  }
  func.func @transform_1(%arg0: i32) -> (i32, i32) {
    %c0_i32 = arith.constant 0 : i32
    %c0_i32_0 = arith.constant 0 : i32
    %c0_i32_1 = arith.constant 0 : i32
    return %c0_i32, %c0_i32_0 : i32, i32
  }
  func.func @transform_2(%arg0: i32) -> (i32, i32) {
    %c0_i32 = arith.constant 0 : i32
    %c0_i32_0 = arith.constant 0 : i32
    %c0_i32_1 = arith.constant 0 : i32
    return %c0_i32, %c0_i32_0 : i32, i32
  }
  func.func @transform_3(%arg0: i32) -> (i32, i32) {
    %c0_i32 = arith.constant 0 : i32
    %c0_i32_0 = arith.constant 0 : i32
    %c0_i32_1 = arith.constant 0 : i32
    return %c0_i32, %c0_i32_0 : i32, i32
  }
  func.func @transform_4(%arg0: i32) -> (i32, i32, i32) {
    %c0_i32 = arith.constant 0 : i32
    %c0_i32_0 = arith.constant 0 : i32
    %c0_i32_1 = arith.constant 0 : i32
    %c0_i32_2 = arith.constant 0 : i32
    return %c0_i32, %c0_i32_0, %c0_i32_1 : i32, i32, i32
  }
  func.func @transform_5(%arg0: i32) -> (i32, i32) {
    %c0_i32 = arith.constant 0 : i32
    %c0_i32_0 = arith.constant 0 : i32
    %c0_i32_1 = arith.constant 0 : i32
    return %c0_i32, %c0_i32_0 : i32, i32
  }
  func.func @transform_6(%arg0: i32) -> (i32, i32) {
    %c0_i32 = arith.constant 0 : i32
    %c0_i32_0 = arith.constant 0 : i32
    %c0_i32_1 = arith.constant 0 : i32
    return %c0_i32, %c0_i32_0 : i32, i32
  }
}

module attributes {stable_mosaic.version = 11 : i64} {
  func.func @_attention_score_kernel(%arg0: i32, %arg1: memref<2xi32, #tpu.memory_space<smem>>, %arg2: memref<1x8x128xf32, #tpu.memory_space<vmem>>, %arg3: memref<1x128x128xf32, #tpu.memory_space<vmem>>, %arg4: memref<1x128xf32, #tpu.memory_space<vmem>>, %arg5: memref<1x8x128xf32, #tpu.memory_space<vmem>>, %arg6: memref<8x128xf32, #tpu.memory_space<vmem>>) attributes {dimension_semantics = [#tpu.dimension_semantics<parallel>], iteration_bounds = array<i64: 2>, scalar_prefetch = 1 : i64, scratch_operands = 1 : i64, tpu.core_type = #tpu.core_type<tc>, window_params = [{transform_indices = @transform_0, window_bounds = array<i64: 1, 8, 128>}, {transform_indices = @transform_1, window_bounds = array<i64: 1, 128, 128>}, {pipeline_mode = #tpu.pipeline_mode<synchronous>, transform_indices = @transform_2, window_bounds = array<i64: 1, 128>}, {transform_indices = @transform_3, window_bounds = array<i64: 1, 8, 128>}]} {
    %c0 = arith.constant 0 : index
    %c0_0 = arith.constant 0 : index
    %c0_1 = arith.constant 0 : index
    %0 = vector.load %arg2[%c0, %c0_0, %c0_1] : memref<1x8x128xf32, #tpu.memory_space<vmem>>, vector<1x8x128xf32>
    %1 = vector.shape_cast %0 : vector<1x8x128xf32> to vector<8x128xf32>
    %c0_2 = arith.constant 0 : index
    %c0_3 = arith.constant 0 : index
    %2 = vector.load %arg4[%c0_2, %c0_3] : memref<1x128xf32, #tpu.memory_space<vmem>>, vector<1x128xf32>
    %3 = vector.shape_cast %2 : vector<1x128xf32> to vector<1x1x128xf32>
    %c0_4 = arith.constant 0 : index
    %c0_5 = arith.constant 0 : index
    %c0_6 = arith.constant 0 : index
    %4 = vector.load %arg3[%c0_4, %c0_5, %c0_6] : memref<1x128x128xf32, #tpu.memory_space<vmem>>, vector<1x128x128xf32>
    %5 = vector.shape_cast %4 : vector<1x128x128xf32> to vector<128x128xf32>
    %6 = vector.shape_cast %1 : vector<8x128xf32> to vector<8x1x128xf32>
    %7 = vector.shape_cast %5 : vector<128x128xf32> to vector<1x128x128xf32>
    %8 = vector.broadcast %6 : vector<8x1x128xf32> to vector<8x128x128xf32>
    %9 = vector.broadcast %7 : vector<1x128x128xf32> to vector<8x128x128xf32>
    %10 = arith.addf %8, %9 : vector<8x128x128xf32>
    %11 = math.tanh %10 : vector<8x128x128xf32>
    %12 = vector.broadcast %3 : vector<1x1x128xf32> to vector<8x128x128xf32>
    %13 = arith.mulf %11, %12 : vector<8x128x128xf32>
    %cst = arith.constant dense<0.000000e+00> : vector<8x128xf32>
    %14 = vector.multi_reduction <add>, %13, %cst [2] : vector<8x128x128xf32> to vector<8x128xf32>
    %c0_7 = arith.constant 0 : index
    %c0_8 = arith.constant 0 : index
    %15 = vector.load %arg6[%c0_7, %c0_8] : memref<8x128xf32, #tpu.memory_space<vmem>>, vector<8x128xf32>
    tpu.vector_store %arg6[%c0_7, %c0_8], %14 {strides = array<i32>} : memref<8x128xf32, #tpu.memory_space<vmem>>, vector<8x128xf32>,
    %c0_9 = arith.constant 0 : index
    %c0_10 = arith.constant 0 : index
    %16 = vector.load %arg6[%c0_9, %c0_10] : memref<8x128xf32, #tpu.memory_space<vmem>>, vector<8x128xf32>
    %17 = arith.index_cast %arg0 : i32 to index
    %18 = memref.load %arg1[%17] : memref<2xi32, #tpu.memory_space<smem>>
    %19 = tpu.iota {dimensions = array<i32: 1>} : vector<8x128xi32>
    %20 = vector.broadcast %18 : i32 to vector<8x128xi32>
    %21 = arith.cmpi sge, %19, %20 : vector<8x128xi32>
    %cst_11 = arith.constant -6.550400e+04 : f32
    %22 = vector.broadcast %cst_11 : f32 to vector<8x128xf32>
    %23 = arith.select %21, %22, %16 : vector<8x128xi1>, vector<8x128xf32>
    %c10_i32 = arith.constant 10 : i32
    %24 = vector.broadcast %c10_i32 : i32 to vector<8x128xi32>
    %25 = arith.cmpi sge, %19, %24 : vector<8x128xi32>
    %cst_12 = arith.constant 0xFF800000 : f32
    %26 = vector.broadcast %cst_12 : f32 to vector<8x128xf32>
    %27 = arith.select %25, %26, %23 : vector<8x128xi1>, vector<8x128xf32>
    %cst_13 = arith.constant dense<0xFF800000> : vector<8xf32>
    %28 = vector.multi_reduction <maximumf>, %27, %cst_13 [1] : vector<8x128xf32> to vector<8xf32>
    %29 = vector.shape_cast %28 : vector<8xf32> to vector<8x1xf32>
    %30 = vector.broadcast %29 : vector<8x1xf32> to vector<8x128xf32>
    %31 = arith.subf %27, %30 : vector<8x128xf32>
    %32 = math.exp %31 : vector<8x128xf32>
    %cst_14 = arith.constant dense<0.000000e+00> : vector<8xf32>
    %33 = vector.multi_reduction <add>, %32, %cst_14 [1] : vector<8x128xf32> to vector<8xf32>
    %34 = vector.shape_cast %33 : vector<8xf32> to vector<8x1xf32>
    %35 = tpu.reciprocal %34 {approx = true} : vector<8x1xf32> -> vector<8x1xf32>
    %36 = vector.broadcast %35 : vector<8x1xf32> to vector<8x128xf32>
    %37 = arith.mulf %32, %36 : vector<8x128xf32>
    %c0_15 = arith.constant 0 : index
    %c0_16 = arith.constant 0 : index
    %c0_17 = arith.constant 0 : index
    %38 = vector.load %arg5[%c0_15, %c0_16, %c0_17] : memref<1x8x128xf32, #tpu.memory_space<vmem>>, vector<1x8x128xf32>
    %39 = vector.shape_cast %38 : vector<1x8x128xf32> to vector<8x128xf32>
    %40 = vector.shape_cast %37 : vector<8x128xf32> to vector<1x8x128xf32>
    tpu.vector_store %arg5[%c0_15, %c0_16, %c0_17], %40 {strides = array<i32>} : memref<1x8x128xf32, #tpu.memory_space<vmem>>, vector<1x8x128xf32>,
    return
  }
  func.func @transform_0(%arg0: i32, %arg1: memref<2xi32, #tpu.memory_space<smem>>) -> (i32, i32, i32) {
    %c0_i32 = arith.constant 0 : i32
    %c0_i32_0 = arith.constant 0 : i32
    %c0_i32_1 = arith.constant 0 : i32
    return %arg0, %c0_i32, %c0_i32_0 : i32, i32, i32
  }
  func.func @transform_1(%arg0: i32, %arg1: memref<2xi32, #tpu.memory_space<smem>>) -> (i32, i32, i32) {
    %c0_i32 = arith.constant 0 : i32
    %c0_i32_0 = arith.constant 0 : i32
    %c0_i32_1 = arith.constant 0 : i32
    return %arg0, %c0_i32, %c0_i32_0 : i32, i32, i32
  }
  func.func @transform_2(%arg0: i32, %arg1: memref<2xi32, #tpu.memory_space<smem>>) -> (i32, i32) {
    %c0_i32 = arith.constant 0 : i32
    %c0_i32_0 = arith.constant 0 : i32
    %c0_i32_1 = arith.constant 0 : i32
    return %c0_i32, %c0_i32_0 : i32, i32
  }
  func.func @transform_3(%arg0: i32, %arg1: memref<2xi32, #tpu.memory_space<smem>>) -> (i32, i32, i32) {
    %c0_i32 = arith.constant 0 : i32
    %c0_i32_0 = arith.constant 0 : i32
    %c0_i32_1 = arith.constant 0 : i32
    return %arg0, %c0_i32, %c0_i32_0 : i32, i32, i32
  }
}

</mosaic_0001>

<llo_original>
// kernel: recurrent_attention_forward.3
$region0: #{recurrent_attention_forward.3}
  #allocation0 [shape = 'u32[]', space=smem, size = 0x4, offset = 0x4, fixed_abs, tag = 'smem constant byte address 0x4 - core index']
  #allocation1 [shape = 'u32[144,128]{1,0:T(1,128)}', space=vmem, size = 0x12000, scoped, tag = 'internal scratch']
  #allocation2 [shape = 'f32[8,128]{1,0:T(8,128)}', space=vmem, size = 0x1000, scoped, tag = 'scratch operand']
  #allocation3 [shape = 's32[1]{0}', space=sflag, size = 0x4, scoped, tag = 'scoped memory for recurrent_attention_forward.3']
  #allocation4 [shape = 'u8[512]{0}', space=smem, size = 0x200, scoped, tag = 'prefetched SMEM operand 0']
  %s0 = inlined_call_operand.vmem [shape: s32[2], index: 0, kind: input, shape index: {}]
  %s1 = inlined_call_operand.vmem [shape: f32[2,8,128], index: 1, kind: input, shape index: {}]
  %s2 = inlined_call_operand.vmem [shape: f32[2,128,128], index: 2, kind: input, shape index: {}]
  %s3 = inlined_call_operand.vmem [shape: f32[1,128], index: 3, kind: input, shape index: {}]
  %s4 = inlined_call_operand.vmem [shape: f32[2,8,128], index: 4, kind: output, shape index: {}]
  %s5 = sld [smem:[#allocation0]]
  $region45: #{recurrent_attention_forward.3} parent=0
    _
  %s7 = ssub.s32 1, %s5
  %s8 = scalar_select 0, %s7, %s5
  %s9 = sshll.u32 %s0, 4
  %s10 = int_to_ptr.vmem [resolvable:$true] %s9
  %12 = dma.vmem_to_smem %s10, 16, [#allocation4], [#allocation3]
  %13 = dma.done [#allocation3], 16
  %14 = sfence
  loop: start=0, step=1, limit=4
  $region2: #{recurrent_attention_forward.3} parent=0 // loop_pre_header
    _
  $region3: #{recurrent_attention_forward.3} parent=0 // loop_header
    %s16 = sphi 0, %s20
    %p17 = scmp.ge.s32.totalorder %s16, 4
    %s26 = sphi 0, %s28
    %s29 = sphi 0, %s26
    %s30 = sphi 0, %s29
    %s46 = sphi 0, %s30
    %s52 = sphi 0, %s54
    %s55 = sphi 0, %s52
    %s56 = sphi 0, %s55
    %s72 = sphi 0, %s56
    %s76 = sphi 0, %s76
    %s78 = sphi 0, %s76
    %s79 = sphi 0, %s78
    %s93 = sphi 0, %s79
    %s99 = sphi 0, %s101
    %s102 = sphi 0, %s99
    %s103 = sphi 0, %s102
    %s119 = sphi 0, %s103
  $region4: #{recurrent_attention_forward.3} parent=0 // loop_header_branch
    %19 = sbr.rel (%p17) target = $region8
  $region5: #{recurrent_attention_forward.3} parent=0 // loop_body
    %s21 = ssub.s32 %s16, 1
    %s22 = ssub.s32 %s16, 2
    %s23 = sadd.s32 %s16, 1
    %s24 = ssub.s32 %s16, %s23
    %p25 = scmp.eq.s32.totalorder %s24, 0
    %s27 = sadd.s32 %s26, 1
    %s28 = scalar_select %p25, %s26, %s27
    %p31 = pneg %p25
    %p32 = scmp.eq.s32.totalorder %s16, 1
    %p33 = por %p31, %p32
    %p34 = scmp.ne.s32.totalorder %s26, %s29
    %p35 = scmp.eq.s32.totalorder %s16, 0
    %p36 = por %p34, %p35
    %p37 = scmp.ne.s32.totalorder %s26, %s29
    %p38 = scmp.eq.s32.totalorder %s21, 1
    %p39 = por %p37, %p38
    %p40 = scmp.ne.s32.totalorder %s29, %s30
    %p41 = scmp.eq.s32.totalorder %s21, 0
    %p42 = por %p40, %p41
    %p43 = scmp.ne.s32.totalorder %s29, %s30
    %p44 = scmp.eq.s32.totalorder %s22, 1
    %p45 = por %p43, %p44
    %p47 = scmp.ne.s32.totalorder %s30, %s46
    %p48 = scmp.eq.s32.totalorder %s22, 0
    %p49 = por %p47, %p48
    %s50 = ssub.s32 %s16, %s23
    %p51 = scmp.eq.s32.totalorder %s50, 0
    %s53 = sadd.s32 %s52, 1
    %s54 = scalar_select %p51, %s52, %s53
    %p57 = pneg %p51
    %p58 = scmp.eq.s32.totalorder %s16, 1
    %p59 = por %p57, %p58
    %p60 = scmp.ne.s32.totalorder %s52, %s55
    %p61 = scmp.eq.s32.totalorder %s16, 0
    %p62 = por %p60, %p61
    %p63 = scmp.ne.s32.totalorder %s52, %s55
    %p64 = scmp.eq.s32.totalorder %s21, 1
    %p65 = por %p63, %p64
    %p66 = scmp.ne.s32.totalorder %s55, %s56
    %p67 = scmp.eq.s32.totalorder %s21, 0
    %p68 = por %p66, %p67
    %p69 = scmp.ne.s32.totalorder %s55, %s56
    %p70 = scmp.eq.s32.totalorder %s22, 1
    %p71 = por %p69, %p70
    %p73 = scmp.ne.s32.totalorder %s56, %s72
    %p74 = scmp.eq.s32.totalorder %s22, 0
    %p75 = por %p73, %p74
    %s77 = sadd.s32 %s76, 1
    %p80 = scmp.eq.s32.totalorder %s16, 1
    %p81 = scmp.ne.s32.totalorder %s76, %s78
    %p82 = scmp.eq.s32.totalorder %s16, 0
    %p83 = por %p81, %p82
    %p84 = scmp.ne.s32.totalorder %s76, %s78
    %p85 = scmp.eq.s32.totalorder %s21, 1
    %p86 = por %p84, %p85
    %p87 = scmp.ne.s32.totalorder %s78, %s79
    %p88 = scmp.eq.s32.totalorder %s21, 0
    %p89 = por %p87, %p88
    %p90 = scmp.ne.s32.totalorder %s78, %s79
    %p91 = scmp.eq.s32.totalorder %s22, 1
    %p92 = por %p90, %p91
    %p94 = scmp.ne.s32.totalorder %s79, %s93
    %p95 = scmp.eq.s32.totalorder %s22, 0
    %p96 = por %p94, %p95
    %s97 = ssub.s32 %s16, %s23
    %p98 = scmp.eq.s32.totalorder %s97, 0
    %s100 = sadd.s32 %s99, 1
    %s101 = scalar_select %p98, %s99, %s100
    %p104 = pneg %p98
    %p105 = scmp.eq.s32.totalorder %s16, 1
    %p106 = por %p104, %p105
    %p107 = scmp.ne.s32.totalorder %s99, %s102
    %p108 = scmp.eq.s32.totalorder %s16, 0
    %p109 = por %p107, %p108
    %p110 = scmp.ne.s32.totalorder %s99, %s102
    %p111 = scmp.eq.s32.totalorder %s21, 1
    %p112 = por %p110, %p111
    %p113 = scmp.ne.s32.totalorder %s102, %s103
    %p114 = scmp.eq.s32.totalorder %s21, 0
    %p115 = por %p113, %p114
    %p116 = scmp.ne.s32.totalorder %s102, %s103
    %p117 = scmp.eq.s32.totalorder %s22, 1
    %p118 = por %p116, %p117
    %p120 = scmp.ne.s32.totalorder %s103, %s119
    %p121 = scmp.eq.s32.totalorder %s22, 0
    %p122 = por %p120, %p121
    %p123 = scmp.le.s32.totalorder 1, %s16
    %p124 = scmp.lt.s32.totalorder %s16, 3
    %p125 = pnand %p123, %p124
    %p126 = pneg %p125
    // Predicated region
    $region9: #{recurrent_attention_forward.3} parent=5 // pred_check
      _
    $region10: #{recurrent_attention_forward.3} parent=5 // pred_check_branch
      %128 = sbr.rel (%p125) target = $region12
    $region11: #{recurrent_attention_forward.3} parent=5 // pred_region
      %s129 = ssub.s32 %s16, 1
      // Predicated region
      $region13: #{recurrent_attention_forward.3} parent=11 // pred_check
        %p130 = pneg %p89
      $region14: #{recurrent_attention_forward.3} parent=11 // pred_check_branch
        %132 = sbr.rel (%p130) target = $region16
      $region15: #{recurrent_attention_forward.3} parent=11 // pred_region
        _
      $region16: #{recurrent_attention_forward.3} parent=11 // pred_fallthru
        _
    $region12: #{recurrent_attention_forward.3} parent=5 // pred_fallthru
      _
    %p133 = scmp.lt.s32.totalorder %s16, 2
    // Predicated region
    $region17: #{recurrent_attention_forward.3} parent=5 // pred_check
      %p134 = pneg %p133
    $region18: #{recurrent_attention_forward.3} parent=5 // pred_check_branch
      %136 = sbr.rel (%p134) target = $region20
    $region19: #{recurrent_attention_forward.3} parent=5 // pred_region
      // Predicated region
      $region21: #{recurrent_attention_forward.3} parent=19 // pred_check
        %p137 = pneg %p36
      $region22: #{recurrent_attention_forward.3} parent=19 // pred_check_branch
        %139 = sbr.rel (%p137) target = $region24
      $region23: #{recurrent_attention_forward.3} parent=19 // pred_region
        %p140 = scmp.lt.s32.totalorder %s16, 1
        %s141 = scalar_select %p140, %s16, 1
        %s142 = smul.addr %s141, 8
        %s143 = scalar_lea.vmem %s1, %s142
      $region24: #{recurrent_attention_forward.3} parent=19 // pred_fallthru
        _
      // Predicated region
      $region25: #{recurrent_attention_forward.3} parent=19 // pred_check
        %p144 = pneg %p62
      $region26: #{recurrent_attention_forward.3} parent=19 // pred_check_branch
        %146 = sbr.rel (%p144) target = $region28
      $region27: #{recurrent_attention_forward.3} parent=19 // pred_region
        %p147 = scmp.lt.s32.totalorder %s16, 1
        %s148 = scalar_select %p147, %s16, 1
        %s149 = smul.addr %s148, 16
        %s150 = smul.addr %s149, 8
        %s151 = scalar_lea.vmem %s2, %s150
      $region28: #{recurrent_attention_forward.3} parent=19 // pred_fallthru
        _
    $region20: #{recurrent_attention_forward.3} parent=5 // pred_fallthru
      _
    %p152 = scmp.le.s32.totalorder 1, %s16
    %p153 = scmp.lt.s32.totalorder %s16, 3
    %p154 = pnand %p152, %p153
    %p155 = pneg %p154
    // Predicated region
    $region29: #{recurrent_attention_forward.3} parent=5 // pred_check
      _
    $region30: #{recurrent_attention_forward.3} parent=5 // pred_check_branch
      %157 = sbr.rel (%p154) target = $region32
    $region31: #{recurrent_attention_forward.3} parent=5 // pred_region
      %s158 = ssub.s32 %s16, 1
      %p159 = scmp.lt.s32.totalorder %s21, 1
      %s160 = scalar_select %p159, %s21, 1
      %s161 = smul.addr %s160, 8
      %s162 = scalar_lea.vmem %s1, %s161
      %p163 = pneg %p42
      %p164 = pneg %p39
      %p165 = scmp.lt.s32.totalorder %s21, 1
      %s166 = scalar_select %p165, %s21, 1
      %s167 = smul.addr %s166, 16
      %s168 = smul.addr %s167, 8
      %s169 = scalar_lea.vmem %s2, %s168
      %p170 = pneg %p68
      %p171 = pneg %p65
      %p172 = pneg %p89
      %p173 = pneg %p86
      %p174 = pneg %p115
      %p175 = pneg %p112
      %p176 = scmp.lt.s32.totalorder %s21, 1
      %s177 = scalar_select %p176, %s21, 1
      %s178 = smul.addr %s177, 8
      %s179 = scalar_lea.vmem %s4, %s178
      %p180 = scmp.lt.s32.totalorder %s21, 1
      %s181 = scalar_select %p180, %s21, 1
      %s182 = smul.addr %s181, 8
      %s183 = scalar_lea.vmem %s1, %s182
      %p184 = scmp.lt.s32.totalorder %s21, 1
      %s185 = scalar_select %p184, %s21, 1
      %s186 = smul.addr %s185, 16
      %s187 = smul.addr %s186, 8
      %s188 = scalar_lea.vmem %s2, %s187
      %p189 = scmp.lt.s32.totalorder %s21, 1
      %s190 = scalar_select %p189, %s21, 1
      %s191 = smul.addr %s190, 8
      %s192 = scalar_lea.vmem %s4, %s191
      %v193 = vld [vmem:[%s183] sm:$0xff]
      %v194 = vld [vmem:[%s3] sm:$0x1]
      %v195 = vld [vmem:[%s188] sm:$0xff]
      %v196 = vld [vmem:[%s188 + $0x8] sm:$0xff]
      %v197 = vld [vmem:[%s188 + $0x10] sm:$0xff]
      %v198 = vld [vmem:[%s188 + $0x18] sm:$0xff]
      %v199 = vld [vmem:[%s188 + $0x20] sm:$0xff]
      %v200 = vld [vmem:[%s188 + $0x28] sm:$0xff]
      %v201 = vld [vmem:[%s188 + $0x30] sm:$0xff]
      %v202 = vld [vmem:[%s188 + $0x38] sm:$0xff]
      %v203 = vld [vmem:[%s188 + $0x40] sm:$0xff]
      %v204 = vld [vmem:[%s188 + $0x48] sm:$0xff]
      %v205 = vld [vmem:[%s188 + $0x50] sm:$0xff]
      %v206 = vld [vmem:[%s188 + $0x58] sm:$0xff]
      %v207 = vld [vmem:[%s188 + $0x60] sm:$0xff]
      %v208 = vld [vmem:[%s188 + $0x68] sm:$0xff]
      %v209 = vld [vmem:[%s188 + $0x70] sm:$0xff]
      %v210 = vld [vmem:[%s188 + $0x78] sm:$0xff]
      %v212 = vcombine.high %v193, %v193
      %v214 = vunpack.c.l.s4 1966171168
      %v215 = vunpack.c.0.s8 %v214
      %v216 = vlaneseq
      %v217 = vshrl.u32 %v216, 7
      %v218 = vsub.s32 %v215, %v217
      %v219 = vrot.slane %v193, %v218
      %v221 = vunpack.c.l.s4 1966171168
      %v222 = vunpack.c.0.s8 %v221
      %v223 = vlaneseq
      %v224 = vshrl.u32 %v223, 7
      %v225 = vsub.s32 %v222, %v224
      %v226 = vrot.slane %v212, %v225
      %v227 = vcombine.high %v219, %v219
      %v228 = vcombine.high %v226, %v226
      %v230 = vunpack.c.l.s4 1966171168
      %v231 = vunpack.c.0.s8 %v230
      %v232 = vlaneseq
      %v233 = vshrl.u32 %v232, 7
      %v234 = vsub.s32 %v231, %v233
      %v235 = vrot.slane %v219, %v234
      %v237 = vunpack.c.l.s4 1966171168
      %v238 = vunpack.c.0.s8 %v237
      %v239 = vlaneseq
      %v240 = vshrl.u32 %v239, 7
      %v241 = vsub.s32 %v238, %v240
      %v242 = vrot.slane %v226, %v241
      %v244 = vunpack.c.l.s4 1966171168
      %v245 = vunpack.c.0.s8 %v244
      %v246 = vlaneseq
      %v247 = vshrl.u32 %v246, 7
      %v248 = vsub.s32 %v245, %v247
      %v249 = vrot.slane %v227, %v248
      %v251 = vunpack.c.l.s4 1966171168
      %v252 = vunpack.c.0.s8 %v251
      %v253 = vlaneseq
      %v254 = vshrl.u32 %v253, 7
      %v255 = vsub.s32 %v252, %v254
      %v256 = vrot.slane %v228, %v255
      %v257 = vcombine.high %v235, %v235
      %v258 = vcombine.high %v242, %v242
      %v259 = vcombine.high %v249, %v249
      %v260 = vcombine.high %v256, %v256
      %v261 = vlaneseq
      %v262 = vshrl.u32 %v261, 7
      %v263 = vsub.s32 0, %v262
      %v264 = vrot.slane %v235, %v263
      %v265 = vlaneseq
      %v266 = vshrl.u32 %v265, 7
      %v267 = vsub.s32 0, %v266
      %v268 = vrot.slane %v249, %v267
      %v269 = vlaneseq
      %v270 = vshrl.u32 %v269, 7
      %v271 = vsub.s32 0, %v270
      %v272 = vrot.slane %v257, %v271
      %v273 = vlaneseq
      %v274 = vshrl.u32 %v273, 7
      %v275 = vsub.s32 0, %v274
      %v276 = vrot.slane %v259, %v275
      %v277 = vlaneseq
      %v278 = vshrl.u32 %v277, 7
      %v279 = vsub.s32 0, %v278
      %v280 = vrot.slane %v242, %v279
      %v281 = vlaneseq
      %v282 = vshrl.u32 %v281, 7
      %v283 = vsub.s32 0, %v282
      %v284 = vrot.slane %v256, %v283
      %v285 = vlaneseq
      %v286 = vshrl.u32 %v285, 7
      %v287 = vsub.s32 0, %v286
      %v288 = vrot.slane %v258, %v287
      %v289 = vlaneseq
      %v290 = vshrl.u32 %v289, 7
      %v291 = vsub.s32 0, %v290
      %v292 = vrot.slane %v260, %v291
      %v301 = vadd.f32 %v264, %v195
      %v302 = vadd.f32 %v264, %v196
      %v303 = vadd.f32 %v264, %v197
      %v304 = vadd.f32 %v264, %v198
      %v305 = vadd.f32 %v264, %v199
      %v306 = vadd.f32 %v264, %v200
      %v307 = vadd.f32 %v264, %v201
      %v308 = vadd.f32 %v264, %v202
      %v309 = vadd.f32 %v264, %v203
      %v310 = vadd.f32 %v264, %v204
      %v311 = vadd.f32 %v264, %v205
      %v312 = vadd.f32 %v264, %v206
      %v313 = vadd.f32 %v264, %v207
      %v314 = vadd.f32 %v264, %v208
      %v315 = vadd.f32 %v264, %v209
      %v316 = vadd.f32 %v264, %v210
      %v317 = vadd.f32 %v268, %v195
      %v318 = vadd.f32 %v268, %v196
      %v319 = vadd.f32 %v268, %v197
      %v320 = vadd.f32 %v268, %v198
      %v321 = vadd.f32 %v268, %v199
      %v322 = vadd.f32 %v268, %v200
      %v323 = vadd.f32 %v268, %v201
      %v324 = vadd.f32 %v268, %v202
      %v325 = vadd.f32 %v268, %v203
      %v326 = vadd.f32 %v268, %v204
      %v327 = vadd.f32 %v268, %v205
      %v328 = vadd.f32 %v268, %v206
      %v329 = vadd.f32 %v268, %v207
      %v330 = vadd.f32 %v268, %v208
      %v331 = vadd.f32 %v268, %v209
      %v332 = vadd.f32 %v268, %v210
      %v333 = vadd.f32 %v272, %v195
      %v334 = vadd.f32 %v272, %v196
      %v335 = vadd.f32 %v272, %v197
      %v336 = vadd.f32 %v272, %v198
      %v337 = vadd.f32 %v272, %v199
      %v338 = vadd.f32 %v272, %v200
      %v339 = vadd.f32 %v272, %v201
      %v340 = vadd.f32 %v272, %v202
      %v341 = vadd.f32 %v272, %v203
      %v342 = vadd.f32 %v272, %v204
      %v343 = vadd.f32 %v272, %v205
      %v344 = vadd.f32 %v272, %v206
      %v345 = vadd.f32 %v272, %v207
      %v346 = vadd.f32 %v272, %v208
      %v347 = vadd.f32 %v272, %v209
      %v348 = vadd.f32 %v272, %v210
      %v349 = vadd.f32 %v276, %v195
      %v350 = vadd.f32 %v276, %v196
      %v351 = vadd.f32 %v276, %v197
      %v352 = vadd.f32 %v276, %v198
      %v353 = vadd.f32 %v276, %v199
      %v354 = vadd.f32 %v276, %v200
      %v355 = vadd.f32 %v276, %v201
      %v356 = vadd.f32 %v276, %v202
      %v357 = vadd.f32 %v276, %v203
      %v358 = vadd.f32 %v276, %v204
      %v359 = vadd.f32 %v276, %v205
      %v360 = vadd.f32 %v276, %v206
      %v361 = vadd.f32 %v276, %v207
      %v362 = vadd.f32 %v276, %v208
      %v363 = vadd.f32 %v276, %v209
      %v364 = vadd.f32 %v276, %v210
      %v365 = vadd.f32 %v280, %v195
      %v366 = vadd.f32 %v280, %v196
      %v367 = vadd.f32 %v280, %v197
      %v368 = vadd.f32 %v280, %v198
      %v369 = vadd.f32 %v280, %v199
      %v370 = vadd.f32 %v280, %v200
      %v371 = vadd.f32 %v280, %v201
      %v372 = vadd.f32 %v280, %v202
      %v373 = vadd.f32 %v280, %v203
      %v374 = vadd.f32 %v280, %v204
      %v375 = vadd.f32 %v280, %v205
      %v376 = vadd.f32 %v280, %v206
      %v377 = vadd.f32 %v280, %v207
      %v378 = vadd.f32 %v280, %v208
      %v379 = vadd.f32 %v280, %v209
      %v380 = vadd.f32 %v280, %v210
      %v381 = vadd.f32 %v284, %v195
      %v382 = vadd.f32 %v284, %v196
      %v383 = vadd.f32 %v284, %v197
      %v384 = vadd.f32 %v284, %v198
      %v385 = vadd.f32 %v284, %v199
      %v386 = vadd.f32 %v284, %v200
      %v387 = vadd.f32 %v284, %v201
      %v388 = vadd.f32 %v284, %v202
      %v389 = vadd.f32 %v284, %v203
      %v390 = vadd.f32 %v284, %v204
      %v391 = vadd.f32 %v284, %v205
      %v392 = vadd.f32 %v284, %v206
      %v393 = vadd.f32 %v284, %v207
      %v394 = vadd.f32 %v284, %v208
      %v395 = vadd.f32 %v284, %v209
      %v396 = vadd.f32 %v284, %v210
      %v397 = vadd.f32 %v288, %v195
      %v398 = vadd.f32 %v288, %v196
      %v399 = vadd.f32 %v288, %v197
      %v400 = vadd.f32 %v288, %v198
      %v401 = vadd.f32 %v288, %v199
      %v402 = vadd.f32 %v288, %v200
      %v403 = vadd.f32 %v288, %v201
      %v404 = vadd.f32 %v288, %v202
      %v405 = vadd.f32 %v288, %v203
      %v406 = vadd.f32 %v288, %v204
      %v407 = vadd.f32 %v288, %v205
      %v408 = vadd.f32 %v288, %v206
      %v409 = vadd.f32 %v288, %v207
      %v410 = vadd.f32 %v288, %v208
      %v411 = vadd.f32 %v288, %v209
      %v412 = vadd.f32 %v288, %v210
      %v413 = vadd.f32 %v292, %v195
      %v414 = vadd.f32 %v292, %v196
      %v415 = vadd.f32 %v292, %v197
      %v416 = vadd.f32 %v292, %v198
      %v417 = vadd.f32 %v292, %v199
      %v418 = vadd.f32 %v292, %v200
      %v419 = vadd.f32 %v292, %v201
      %v420 = vadd.f32 %v292, %v202
      %v421 = vadd.f32 %v292, %v203
      %v422 = vadd.f32 %v292, %v204
      %v423 = vadd.f32 %v292, %v205
      %v424 = vadd.f32 %v292, %v206
      %v425 = vadd.f32 %v292, %v207
      %v426 = vadd.f32 %v292, %v208
      %v427 = vadd.f32 %v292, %v209
      %v428 = vadd.f32 %v292, %v210
      %v429 = vtanh.pop %v301
      %v430 = vtanh.pop %v302
      %v431 = vtanh.pop %v303
      %v432 = vtanh.pop %v304
      %v433 = vtanh.pop %v305
      %v434 = vtanh.pop %v306
      %v435 = vtanh.pop %v307
      %v436 = vtanh.pop %v308
      %v437 = vtanh.pop %v309
      %v438 = vtanh.pop %v310
      %v439 = vtanh.pop %v311
      %v440 = vtanh.pop %v312
      %v441 = vtanh.pop %v313
      %v442 = vtanh.pop %v314
      %v443 = vtanh.pop %v315
      %v444 = vtanh.pop %v316
      %v445 = vtanh.pop %v317
      %v446 = vtanh.pop %v318
      %v447 = vtanh.pop %v319
      %v448 = vtanh.pop %v320
      %v449 = vtanh.pop %v321
      %v450 = vtanh.pop %v322
      %v451 = vtanh.pop %v323
      %v452 = vtanh.pop %v324
      %v453 = vtanh.pop %v325
      %v454 = vtanh.pop %v326
      %v455 = vtanh.pop %v327
      %v456 = vtanh.pop %v328
      %v457 = vtanh.pop %v329
      %v458 = vtanh.pop %v330
      %v459 = vtanh.pop %v331
      %v460 = vtanh.pop %v332
      %v461 = vtanh.pop %v333
      %v462 = vtanh.pop %v334
      %v463 = vtanh.pop %v335
      %v464 = vtanh.pop %v336
      %v465 = vtanh.pop %v337
      %v466 = vtanh.pop %v338
      %v467 = vtanh.pop %v339
      %v468 = vtanh.pop %v340
      %v469 = vtanh.pop %v341
      %v470 = vtanh.pop %v342
      %v471 = vtanh.pop %v343
      %v472 = vtanh.pop %v344
      %v473 = vtanh.pop %v345
      %v474 = vtanh.pop %v346
      %v475 = vtanh.pop %v347
      %v476 = vtanh.pop %v348
      %v477 = vtanh.pop %v349
      %v478 = vtanh.pop %v350
      %v479 = vtanh.pop %v351
      %v480 = vtanh.pop %v352
      %v481 = vtanh.pop %v353
      %v482 = vtanh.pop %v354
      %v483 = vtanh.pop %v355
      %v484 = vtanh.pop %v356
      %v485 = vtanh.pop %v357
      %v486 = vtanh.pop %v358
      %v487 = vtanh.pop %v359
      %v488 = vtanh.pop %v360
      %v489 = vtanh.pop %v361
      %v490 = vtanh.pop %v362
      %v491 = vtanh.pop %v363
      %v492 = vtanh.pop %v364
      %v493 = vtanh.pop %v365
      %v494 = vtanh.pop %v366
      %v495 = vtanh.pop %v367
      %v496 = vtanh.pop %v368
      %v497 = vtanh.pop %v369
      %v498 = vtanh.pop %v370
      %v499 = vtanh.pop %v371
      %v500 = vtanh.pop %v372
      %v501 = vtanh.pop %v373
      %v502 = vtanh.pop %v374
      %v503 = vtanh.pop %v375
      %v504 = vtanh.pop %v376
      %v505 = vtanh.pop %v377
      %v506 = vtanh.pop %v378
      %v507 = vtanh.pop %v379
      %v508 = vtanh.pop %v380
      %v509 = vtanh.pop %v381
      %v510 = vtanh.pop %v382
      %v511 = vtanh.pop %v383
      %v512 = vtanh.pop %v384
      %v513 = vtanh.pop %v385
      %v514 = vtanh.pop %v386
      %v515 = vtanh.pop %v387
      %v516 = vtanh.pop %v388
      %v517 = vtanh.pop %v389
      %v518 = vtanh.pop %v390
      %v519 = vtanh.pop %v391
      %v520 = vtanh.pop %v392
      %v521 = vtanh.pop %v393
      %v522 = vtanh.pop %v394
      %v523 = vtanh.pop %v395
      %v524 = vtanh.pop %v396
      %v525 = vtanh.pop %v397
      %v526 = vtanh.pop %v398
      %v527 = vtanh.pop %v399
      %v528 = vtanh.pop %v400
      %v529 = vtanh.pop %v401
      %v530 = vtanh.pop %v402
      %v531 = vtanh.pop %v403
      %v532 = vtanh.pop %v404
      %v533 = vtanh.pop %v405
      %v534 = vtanh.pop %v406
      %v535 = vtanh.pop %v407
      %v536 = vtanh.pop %v408
      %v537 = vtanh.pop %v409
      %v538 = vtanh.pop %v410
      %v539 = vtanh.pop %v411
      %v540 = vtanh.pop %v412
      %v541 = vtanh.pop %v413
      %v542 = vtanh.pop %v414
      %v543 = vtanh.pop %v415
      %v544 = vtanh.pop %v416
      %v545 = vtanh.pop %v417
      %v546 = vtanh.pop %v418
      %v547 = vtanh.pop %v419
      %v548 = vtanh.pop %v420
      %v549 = vtanh.pop %v421
      %v550 = vtanh.pop %v422
      %v551 = vtanh.pop %v423
      %v552 = vtanh.pop %v424
      %v553 = vtanh.pop %v425
      %v554 = vtanh.pop %v426
      %v555 = vtanh.pop %v427
      %v556 = vtanh.pop %v428
      %v558 = vlaneseq
      %v559 = vshrl.u32 %v558, 7
      %v560 = vsub.s32 0, %v559
      %v561 = vrot.slane %v194, %v560
      %v563 = vmul.f32 %v429, %v561
      %v564 = vmul.f32 %v430, %v561
      %v565 = vmul.f32 %v431, %v561
      %v566 = vmul.f32 %v432, %v561
      %v567 = vmul.f32 %v433, %v561
      %v568 = vmul.f32 %v434, %v561
      %v569 = vmul.f32 %v435, %v561
      %v570 = vmul.f32 %v436, %v561
      %v571 = vmul.f32 %v437, %v561
      %v572 = vmul.f32 %v438, %v561
      %v573 = vmul.f32 %v439, %v561
      %v574 = vmul.f32 %v440, %v561
      %v575 = vmul.f32 %v441, %v561
      %v576 = vmul.f32 %v442, %v561
      %v577 = vmul.f32 %v443, %v561
      %v578 = vmul.f32 %v444, %v561
      %v579 = vmul.f32 %v445, %v561
      %v580 = vmul.f32 %v446, %v561
      %v581 = vmul.f32 %v447, %v561
      %v582 = vmul.f32 %v448, %v561
      %v583 = vmul.f32 %v449, %v561
      %v584 = vmul.f32 %v450, %v561
      %v585 = vmul.f32 %v451, %v561
      %v586 = vmul.f32 %v452, %v561
      %v587 = vmul.f32 %v453, %v561
      %v588 = vmul.f32 %v454, %v561
      %v589 = vmul.f32 %v455, %v561
      %v590 = vmul.f32 %v456, %v561
      %v591 = vmul.f32 %v457, %v561
      %v592 = vmul.f32 %v458, %v561
      %v593 = vmul.f32 %v459, %v561
      %v594 = vmul.f32 %v460, %v561
      %v595 = vmul.f32 %v461, %v561
      %v596 = vmul.f32 %v462, %v561
      %v597 = vmul.f32 %v463, %v561
      %v598 = vmul.f32 %v464, %v561
      %v599 = vmul.f32 %v465, %v561
      %v600 = vmul.f32 %v466, %v561
      %v601 = vmul.f32 %v467, %v561
      %v602 = vmul.f32 %v468, %v561
      %v603 = vmul.f32 %v469, %v561
      %v604 = vmul.f32 %v470, %v561
      %v605 = vmul.f32 %v471, %v561
      %v606 = vmul.f32 %v472, %v561
      %v607 = vmul.f32 %v473, %v561
      %v608 = vmul.f32 %v474, %v561
      %v609 = vmul.f32 %v475, %v561
      %v610 = vmul.f32 %v476, %v561
      %v611 = vmul.f32 %v477, %v561
      %v612 = vmul.f32 %v478, %v561
      %v613 = vmul.f32 %v479, %v561
      %v614 = vmul.f32 %v480, %v561
      %v615 = vmul.f32 %v481, %v561
      %v616 = vmul.f32 %v482, %v561
      %v617 = vmul.f32 %v483, %v561
      %v618 = vmul.f32 %v484, %v561
      %v619 = vmul.f32 %v485, %v561
      %v620 = vmul.f32 %v486, %v561
      %v621 = vmul.f32 %v487, %v561
      %v622 = vmul.f32 %v488, %v561
      %v623 = vmul.f32 %v489, %v561
      %v624 = vmul.f32 %v490, %v561
      %v625 = vmul.f32 %v491, %v561
      %v626 = vmul.f32 %v492, %v561
      %v627 = vmul.f32 %v493, %v561
      %v628 = vmul.f32 %v494, %v561
      %v629 = vmul.f32 %v495, %v561
      %v630 = vmul.f32 %v496, %v561
      %v631 = vmul.f32 %v497, %v561
      %v632 = vmul.f32 %v498, %v561
      %v633 = vmul.f32 %v499, %v561
      %v634 = vmul.f32 %v500, %v561
      %v635 = vmul.f32 %v501, %v561
      %v636 = vmul.f32 %v502, %v561
      %v637 = vmul.f32 %v503, %v561
      %v638 = vmul.f32 %v504, %v561
      %v639 = vmul.f32 %v505, %v561
      %v640 = vmul.f32 %v506, %v561
      %v641 = vmul.f32 %v507, %v561
      %v642 = vmul.f32 %v508, %v561
      %v643 = vmul.f32 %v509, %v561
      %v644 = vmul.f32 %v510, %v561
      %v645 = vmul.f32 %v511, %v561
      %v646 = vmul.f32 %v512, %v561
      %v647 = vmul.f32 %v513, %v561
      %v648 = vmul.f32 %v514, %v561
      %v649 = vmul.f32 %v515, %v561
      %v650 = vmul.f32 %v516, %v561
      %v651 = vmul.f32 %v517, %v561
      %v652 = vmul.f32 %v518, %v561
      %v653 = vmul.f32 %v519, %v561
      %v654 = vmul.f32 %v520, %v561
      %v655 = vmul.f32 %v521, %v561
      %v656 = vmul.f32 %v522, %v561
      %v657 = vmul.f32 %v523, %v561
      %v658 = vmul.f32 %v524, %v561
      %v659 = vmul.f32 %v525, %v561
      %v660 = vmul.f32 %v526, %v561
      %v661 = vmul.f32 %v527, %v561
      %v662 = vmul.f32 %v528, %v561
      %v663 = vmul.f32 %v529, %v561
      %v664 = vmul.f32 %v530, %v561
      %v665 = vmul.f32 %v531, %v561
      %v666 = vmul.f32 %v532, %v561
      %v667 = vmul.f32 %v533, %v561
      %v668 = vmul.f32 %v534, %v561
      %v669 = vmul.f32 %v535, %v561
      %v670 = vmul.f32 %v536, %v561
      %v671 = vmul.f32 %v537, %v561
      %v672 = vmul.f32 %v538, %v561
      %v673 = vmul.f32 %v539, %v561
      %v674 = vmul.f32 %v540, %v561
      %v675 = vmul.f32 %v541, %v561
      %v676 = vmul.f32 %v542, %v561
      %v677 = vmul.f32 %v543, %v561
      %v678 = vmul.f32 %v544, %v561
      %v679 = vmul.f32 %v545, %v561
      %v680 = vmul.f32 %v546, %v561
      %v681 = vmul.f32 %v547, %v561
      %v682 = vmul.f32 %v548, %v561
      %v683 = vmul.f32 %v549, %v561
      %v684 = vmul.f32 %v550, %v561
      %v685 = vmul.f32 %v551, %v561
      %v686 = vmul.f32 %v552, %v561
      %v687 = vmul.f32 %v553, %v561
      %v688 = vmul.f32 %v554, %v561
      %v689 = vmul.f32 %v555, %v561
      %v690 = vmul.f32 %v556, %v561
      %691 = vadd.xlane.f32.xlu0 %v563
      %v692 = vpop.xlane.xlu0 %691
      %693 = vadd.xlane.f32.xlu0 %v564
      %v694 = vpop.xlane.xlu0 %693
      %695 = vadd.xlane.f32.xlu0 %v565
      %v696 = vpop.xlane.xlu0 %695
      %697 = vadd.xlane.f32.xlu0 %v566
      %v698 = vpop.xlane.xlu0 %697
      %699 = vadd.xlane.f32.xlu0 %v567
      %v700 = vpop.xlane.xlu0 %699
      %701 = vadd.xlane.f32.xlu0 %v568
      %v702 = vpop.xlane.xlu0 %701
      %703 = vadd.xlane.f32.xlu0 %v569
      %v704 = vpop.xlane.xlu0 %703
      %705 = vadd.xlane.f32.xlu0 %v570
      %v706 = vpop.xlane.xlu0 %705
      %707 = vadd.xlane.f32.xlu0 %v571
      %v708 = vpop.xlane.xlu0 %707
      %709 = vadd.xlane.f32.xlu0 %v572
      %v710 = vpop.xlane.xlu0 %709
      %711 = vadd.xlane.f32.xlu0 %v573
      %v712 = vpop.xlane.xlu0 %711
      %713 = vadd.xlane.f32.xlu0 %v574
      %v714 = vpop.xlane.xlu0 %713
      %715 = vadd.xlane.f32.xlu0 %v575
      %v716 = vpop.xlane.xlu0 %715
      %717 = vadd.xlane.f32.xlu0 %v576
      %v718 = vpop.xlane.xlu0 %717
      %719 = vadd.xlane.f32.xlu0 %v577
      %v720 = vpop.xlane.xlu0 %719
      %721 = vadd.xlane.f32.xlu0 %v578
      %v722 = vpop.xlane.xlu0 %721
      %723 = vadd.xlane.f32.xlu0 %v579
      %v724 = vpop.xlane.xlu0 %723
      %725 = vadd.xlane.f32.xlu0 %v580
      %v726 = vpop.xlane.xlu0 %725
      %727 = vadd.xlane.f32.xlu0 %v581
      %v728 = vpop.xlane.xlu0 %727
      %729 = vadd.xlane.f32.xlu0 %v582
      %v730 = vpop.xlane.xlu0 %729
      %731 = vadd.xlane.f32.xlu0 %v583
      %v732 = vpop.xlane.xlu0 %731
      %733 = vadd.xlane.f32.xlu0 %v584
      %v734 = vpop.xlane.xlu0 %733
      %735 = vadd.xlane.f32.xlu0 %v585
      %v736 = vpop.xlane.xlu0 %735
      %737 = vadd.xlane.f32.xlu0 %v586
      %v738 = vpop.xlane.xlu0 %737
      %739 = vadd.xlane.f32.xlu0 %v587
      %v740 = vpop.xlane.xlu0 %739
      %741 = vadd.xlane.f32.xlu0 %v588
      %v742 = vpop.xlane.xlu0 %741
      %743 = vadd.xlane.f32.xlu0 %v589
      %v744 = vpop.xlane.xlu0 %743
      %745 = vadd.xlane.f32.xlu0 %v590
      %v746 = vpop.xlane.xlu0 %745
      %747 = vadd.xlane.f32.xlu0 %v591
      %v748 = vpop.xlane.xlu0 %747
      %749 = vadd.xlane.f32.xlu0 %v592
      %v750 = vpop.xlane.xlu0 %749
      %751 = vadd.xlane.f32.xlu0 %v593
      %v752 = vpop.xlane.xlu0 %751
      %753 = vadd.xlane.f32.xlu0 %v594
      %v754 = vpop.xlane.xlu0 %753
      %755 = vadd.xlane.f32.xlu0 %v595
      %v756 = vpop.xlane.xlu0 %755
      %757 = vadd.xlane.f32.xlu0 %v596
      %v758 = vpop.xlane.xlu0 %757
      %759 = vadd.xlane.f32.xlu0 %v597
      %v760 = vpop.xlane.xlu0 %759
      %761 = vadd.xlane.f32.xlu0 %v598
      %v762 = vpop.xlane.xlu0 %761
      %763 = vadd.xlane.f32.xlu0 %v599
      %v764 = vpop.xlane.xlu0 %763
      %765 = vadd.xlane.f32.xlu0 %v600
      %v766 = vpop.xlane.xlu0 %765
      %767 = vadd.xlane.f32.xlu0 %v601
      %v768 = vpop.xlane.xlu0 %767
      %769 = vadd.xlane.f32.xlu0 %v602
      %v770 = vpop.xlane.xlu0 %769
      %771 = vadd.xlane.f32.xlu0 %v603
      %v772 = vpop.xlane.xlu0 %771
      %773 = vadd.xlane.f32.xlu0 %v604
      %v774 = vpop.xlane.xlu0 %773
      %775 = vadd.xlane.f32.xlu0 %v605
      %v776 = vpop.xlane.xlu0 %775
      %777 = vadd.xlane.f32.xlu0 %v606
      %v778 = vpop.xlane.xlu0 %777
      %779 = vadd.xlane.f32.xlu0 %v607
      %v780 = vpop.xlane.xlu0 %779
      %781 = vadd.xlane.f32.xlu0 %v608
      %v782 = vpop.xlane.xlu0 %781
      %783 = vadd.xlane.f32.xlu0 %v609
      %v784 = vpop.xlane.xlu0 %783
      %785 = vadd.xlane.f32.xlu0 %v610
      %v786 = vpop.xlane.xlu0 %785
      %787 = vadd.xlane.f32.xlu0 %v611
      %v788 = vpop.xlane.xlu0 %787
      %789 = vadd.xlane.f32.xlu0 %v612
      %v790 = vpop.xlane.xlu0 %789
      %791 = vadd.xlane.f32.xlu0 %v613
      %v792 = vpop.xlane.xlu0 %791
      %793 = vadd.xlane.f32.xlu0 %v614
      %v794 = vpop.xlane.xlu0 %793
      %795 = vadd.xlane.f32.xlu0 %v615
      %v796 = vpop.xlane.xlu0 %795
      %797 = vadd.xlane.f32.xlu0 %v616
      %v798 = vpop.xlane.xlu0 %797
      %799 = vadd.xlane.f32.xlu0 %v617
      %v800 = vpop.xlane.xlu0 %799
      %801 = vadd.xlane.f32.xlu0 %v618
      %v802 = vpop.xlane.xlu0 %801
      %803 = vadd.xlane.f32.xlu0 %v619
      %v804 = vpop.xlane.xlu0 %803
      %805 = vadd.xlane.f32.xlu0 %v620
      %v806 = vpop.xlane.xlu0 %805
      %807 = vadd.xlane.f32.xlu0 %v621
      %v808 = vpop.xlane.xlu0 %807
      %809 = vadd.xlane.f32.xlu0 %v622
      %v810 = vpop.xlane.xlu0 %809
      %811 = vadd.xlane.f32.xlu0 %v623
      %v812 = vpop.xlane.xlu0 %811
      %813 = vadd.xlane.f32.xlu0 %v624
      %v814 = vpop.xlane.xlu0 %813
      %815 = vadd.xlane.f32.xlu0 %v625
      %v816 = vpop.xlane.xlu0 %815
      %817 = vadd.xlane.f32.xlu0 %v626
      %v818 = vpop.xlane.xlu0 %817
      %819 = vadd.xlane.f32.xlu0 %v627
      %v820 = vpop.xlane.xlu0 %819
      %821 = vadd.xlane.f32.xlu0 %v628
      %v822 = vpop.xlane.xlu0 %821
      %823 = vadd.xlane.f32.xlu0 %v629
      %v824 = vpop.xlane.xlu0 %823
      %825 = vadd.xlane.f32.xlu0 %v630
      %v826 = vpop.xlane.xlu0 %825
      %827 = vadd.xlane.f32.xlu0 %v631
      %v828 = vpop.xlane.xlu0 %827
      %829 = vadd.xlane.f32.xlu0 %v632
      %v830 = vpop.xlane.xlu0 %829
      %831 = vadd.xlane.f32.xlu0 %v633
      %v832 = vpop.xlane.xlu0 %831
      %833 = vadd.xlane.f32.xlu0 %v634
      %v834 = vpop.xlane.xlu0 %833
      %835 = vadd.xlane.f32.xlu0 %v635
      %v836 = vpop.xlane.xlu0 %835
      %837 = vadd.xlane.f32.xlu0 %v636
      %v838 = vpop.xlane.xlu0 %837
      %839 = vadd.xlane.f32.xlu0 %v637
      %v840 = vpop.xlane.xlu0 %839
      %841 = vadd.xlane.f32.xlu0 %v638
      %v842 = vpop.xlane.xlu0 %841
      %843 = vadd.xlane.f32.xlu0 %v639
      %v844 = vpop.xlane.xlu0 %843
      %845 = vadd.xlane.f32.xlu0 %v640
      %v846 = vpop.xlane.xlu0 %845
      %847 = vadd.xlane.f32.xlu0 %v641
      %v848 = vpop.xlane.xlu0 %847
      %849 = vadd.xlane.f32.xlu0 %v642
      %v850 = vpop.xlane.xlu0 %849
      %851 = vadd.xlane.f32.xlu0 %v643
      %v852 = vpop.xlane.xlu0 %851
      %853 = vadd.xlane.f32.xlu0 %v644
      %v854 = vpop.xlane.xlu0 %853
      %855 = vadd.xlane.f32.xlu0 %v645
      %v856 = vpop.xlane.xlu0 %855
      %857 = vadd.xlane.f32.xlu0 %v646
      %v858 = vpop.xlane.xlu0 %857
      %859 = vadd.xlane.f32.xlu0 %v647
      %v860 = vpop.xlane.xlu0 %859
      %861 = vadd.xlane.f32.xlu0 %v648
      %v862 = vpop.xlane.xlu0 %861
      %863 = vadd.xlane.f32.xlu0 %v649
      %v864 = vpop.xlane.xlu0 %863
      %865 = vadd.xlane.f32.xlu0 %v650
      %v866 = vpop.xlane.xlu0 %865
      %867 = vadd.xlane.f32.xlu0 %v651
      %v868 = vpop.xlane.xlu0 %867
      %869 = vadd.xlane.f32.xlu0 %v652
      %v870 = vpop.xlane.xlu0 %869
      %871 = vadd.xlane.f32.xlu0 %v653
      %v872 = vpop.xlane.xlu0 %871
      %873 = vadd.xlane.f32.xlu0 %v654
      %v874 = vpop.xlane.xlu0 %873
      %875 = vadd.xlane.f32.xlu0 %v655
      %v876 = vpop.xlane.xlu0 %875
      %877 = vadd.xlane.f32.xlu0 %v656
      %v878 = vpop.xlane.xlu0 %877
      %879 = vadd.xlane.f32.xlu0 %v657
      %v880 = vpop.xlane.xlu0 %879
      %881 = vadd.xlane.f32.xlu0 %v658
      %v882 = vpop.xlane.xlu0 %881
      %883 = vadd.xlane.f32.xlu0 %v659
      %v884 = vpop.xlane.xlu0 %883
      %885 = vadd.xlane.f32.xlu0 %v660
      %v886 = vpop.xlane.xlu0 %885
      %887 = vadd.xlane.f32.xlu0 %v661
      %v888 = vpop.xlane.xlu0 %887
      %889 = vadd.xlane.f32.xlu0 %v662
      %v890 = vpop.xlane.xlu0 %889
      %891 = vadd.xlane.f32.xlu0 %v663
      %v892 = vpop.xlane.xlu0 %891
      %893 = vadd.xlane.f32.xlu0 %v664
      %v894 = vpop.xlane.xlu0 %893
      %895 = vadd.xlane.f32.xlu0 %v665
      %v896 = vpop.xlane.xlu0 %895
      %897 = vadd.xlane.f32.xlu0 %v666
      %v898 = vpop.xlane.xlu0 %897
      %899 = vadd.xlane.f32.xlu0 %v667
      %v900 = vpop.xlane.xlu0 %899
      %901 = vadd.xlane.f32.xlu0 %v668
      %v902 = vpop.xlane.xlu0 %901
      %903 = vadd.xlane.f32.xlu0 %v669
      %v904 = vpop.xlane.xlu0 %903
      %905 = vadd.xlane.f32.xlu0 %v670
      %v906 = vpop.xlane.xlu0 %905
      %907 = vadd.xlane.f32.xlu0 %v671
      %v908 = vpop.xlane.xlu0 %907
      %909 = vadd.xlane.f32.xlu0 %v672
      %v910 = vpop.xlane.xlu0 %909
      %911 = vadd.xlane.f32.xlu0 %v673
      %v912 = vpop.xlane.xlu0 %911
      %913 = vadd.xlane.f32.xlu0 %v674
      %v914 = vpop.xlane.xlu0 %913
      %915 = vadd.xlane.f32.xlu0 %v675
      %v916 = vpop.xlane.xlu0 %915
      %917 = vadd.xlane.f32.xlu0 %v676
      %v918 = vpop.xlane.xlu0 %917
      %919 = vadd.xlane.f32.xlu0 %v677
      %v920 = vpop.xlane.xlu0 %919
      %921 = vadd.xlane.f32.xlu0 %v678
      %v922 = vpop.xlane.xlu0 %921
      %923 = vadd.xlane.f32.xlu0 %v679
      %v924 = vpop.xlane.xlu0 %923
      %925 = vadd.xlane.f32.xlu0 %v680
      %v926 = vpop.xlane.xlu0 %925
      %927 = vadd.xlane.f32.xlu0 %v681
      %v928 = vpop.xlane.xlu0 %927
      %929 = vadd.xlane.f32.xlu0 %v682
      %v930 = vpop.xlane.xlu0 %929
      %931 = vadd.xlane.f32.xlu0 %v683
      %v932 = vpop.xlane.xlu0 %931
      %933 = vadd.xlane.f32.xlu0 %v684
      %v934 = vpop.xlane.xlu0 %933
      %935 = vadd.xlane.f32.xlu0 %v685
      %v936 = vpop.xlane.xlu0 %935
      %937 = vadd.xlane.f32.xlu0 %v686
      %v938 = vpop.xlane.xlu0 %937
      %939 = vadd.xlane.f32.xlu0 %v687
      %v940 = vpop.xlane.xlu0 %939
      %941 = vadd.xlane.f32.xlu0 %v688
      %v942 = vpop.xlane.xlu0 %941
      %943 = vadd.xlane.f32.xlu0 %v689
      %v944 = vpop.xlane.xlu0 %943
      %945 = vadd.xlane.f32.xlu0 %v690
      %v946 = vpop.xlane.xlu0 %945
      %v1075 = vlaneseq
      %v1076 = vand.u32 %v1075, 127
      %v1077 = vlaneseq
      %v1078 = vshrl.u32 %v1077, 7
      %v1079 = vsub.s32 %v1076, %v1078
      %v1080 = vrot.slane %v692, %v1079
      %v1081 = vadd.s32 %v1076, 4294967288
      %v1082 = vlaneseq
      %v1083 = vshrl.u32 %v1082, 7
      %v1084 = vsub.s32 %v1081, %v1083
      %v1085 = vrot.slane %v694, %v1084
      %vm1086 = vcmask 130112
      %v1087 = vsel %vm1086, %v1085, %v1080
      %v1088 = vadd.s32 %v1076, 4294967280
      %v1089 = vlaneseq
      %v1090 = vshrl.u32 %v1089, 7
      %v1091 = vsub.s32 %v1088, %v1090
      %v1092 = vrot.slane %v696, %v1091
      %vm1093 = vcmask 195712
      %v1094 = vsel %vm1093, %v1092, %v1087
      %v1095 = vadd.s32 %v1076, 4294967272
      %v1096 = vlaneseq
      %v1097 = vshrl.u32 %v1096, 7
      %v1098 = vsub.s32 %v1095, %v1097
      %v1099 = vrot.slane %v698, %v1098
      %vm1100 = vcmask 261312
      %v1101 = vsel %vm1100, %v1099, %v1094
      %v1102 = vadd.s32 %v1076, 4294967264
      %v1103 = vlaneseq
      %v1104 = vshrl.u32 %v1103, 7
      %v1105 = vsub.s32 %v1102, %v1104
      %v1106 = vrot.slane %v700, %v1105
      %vm1107 = vcmask 326912
      %v1108 = vsel %vm1107, %v1106, %v1101
      %v1109 = vadd.s32 %v1076, 4294967256
      %v1110 = vlaneseq
      %v1111 = vshrl.u32 %v1110, 7
      %v1112 = vsub.s32 %v1109, %v1111
      %v1113 = vrot.slane %v702, %v1112
      %vm1114 = vcmask 392512
      %v1115 = vsel %vm1114, %v1113, %v1108
      %v1116 = vadd.s32 %v1076, 4294967248
      %v1117 = vlaneseq
      %v1118 = vshrl.u32 %v1117, 7
      %v1119 = vsub.s32 %v1116, %v1118
      %v1120 = vrot.slane %v704, %v1119
      %vm1121 = vcmask 458112
      %v1122 = vsel %vm1121, %v1120, %v1115
      %v1123 = vadd.s32 %v1076, 4294967240
      %v1124 = vlaneseq
      %v1125 = vshrl.u32 %v1124, 7
      %v1126 = vsub.s32 %v1123, %v1125
      %v1127 = vrot.slane %v706, %v1126
      %vm1128 = vcmask 523712
      %v1129 = vsel %vm1128, %v1127, %v1122
      %v1130 = vadd.s32 %v1076, 4294967232
      %v1131 = vlaneseq
      %v1132 = vshrl.u32 %v1131, 7
      %v1133 = vsub.s32 %v1130, %v1132
      %v1134 = vrot.slane %v708, %v1133
      %vm1135 = vcmask 589312
      %v1136 = vsel %vm1135, %v1134, %v1129
      %v1137 = vadd.s32 %v1076, 4294967224
      %v1138 = vlaneseq
      %v1139 = vshrl.u32 %v1138, 7
      %v1140 = vsub.s32 %v1137, %v1139
      %v1141 = vrot.slane %v710, %v1140
      %vm1142 = vcmask 654912
      %v1143 = vsel %vm1142, %v1141, %v1136
      %v1144 = vadd.s32 %v1076, 4294967216
      %v1145 = vlaneseq
      %v1146 = vshrl.u32 %v1145, 7
      %v1147 = vsub.s32 %v1144, %v1146
      %v1148 = vrot.slane %v712, %v1147
      %vm1149 = vcmask 720512
      %v1150 = vsel %vm1149, %v1148, %v1143
      %v1151 = vadd.s32 %v1076, 4294967208
      %v1152 = vlaneseq
      %v1153 = vshrl.u32 %v1152, 7
      %v1154 = vsub.s32 %v1151, %v1153
      %v1155 = vrot.slane %v714, %v1154
      %vm1156 = vcmask 786112
      %v1157 = vsel %vm1156, %v1155, %v1150
      %v1158 = vadd.s32 %v1076, 4294967200
      %v1159 = vlaneseq
      %v1160 = vshrl.u32 %v1159, 7
      %v1161 = vsub.s32 %v1158, %v1160
      %v1162 = vrot.slane %v716, %v1161
      %vm1163 = vcmask 851712
      %v1164 = vsel %vm1163, %v1162, %v1157
      %v1165 = vadd.s32 %v1076, 4294967192
      %v1166 = vlaneseq
      %v1167 = vshrl.u32 %v1166, 7
      %v1168 = vsub.s32 %v1165, %v1167
      %v1169 = vrot.slane %v718, %v1168
      %vm1170 = vcmask 917312
      %v1171 = vsel %vm1170, %v1169, %v1164
      %v1172 = vadd.s32 %v1076, 4294967184
      %v1173 = vlaneseq
      %v1174 = vshrl.u32 %v1173, 7
      %v1175 = vsub.s32 %v1172, %v1174
      %v1176 = vrot.slane %v720, %v1175
      %vm1177 = vcmask 982912
      %v1178 = vsel %vm1177, %v1176, %v1171
      %v1179 = vadd.s32 %v1076, 4294967176
      %v1180 = vlaneseq
      %v1181 = vshrl.u32 %v1180, 7
      %v1182 = vsub.s32 %v1179, %v1181
      %v1183 = vrot.slane %v722, %v1182
      %vm1184 = vcmask 1048512
      %v1185 = vsel %vm1184, %v1183, %v1178
      %v1186 = vlaneseq
      %v1187 = vshrl.u32 %v1186, 7
      %v1188 = vsub.s32 %v1076, %v1187
      %v1189 = vrot.slane %v724, %v1188
      %v1190 = vlaneseq
      %v1191 = vshrl.u32 %v1190, 7
      %v1192 = vsub.s32 %v1081, %v1191
      %v1193 = vrot.slane %v726, %v1192
      %v1194 = vsel %vm1086, %v1193, %v1189
      %v1195 = vlaneseq
      %v1196 = vshrl.u32 %v1195, 7
      %v1197 = vsub.s32 %v1088, %v1196
      %v1198 = vrot.slane %v728, %v1197
      %v1199 = vsel %vm1093, %v1198, %v1194
      %v1200 = vlaneseq
      %v1201 = vshrl.u32 %v1200, 7
      %v1202 = vsub.s32 %v1095, %v1201
      %v1203 = vrot.slane %v730, %v1202
      %v1204 = vsel %vm1100, %v1203, %v1199
      %v1205 = vlaneseq
      %v1206 = vshrl.u32 %v1205, 7
      %v1207 = vsub.s32 %v1102, %v1206
      %v1208 = vrot.slane %v732, %v1207
      %v1209 = vsel %vm1107, %v1208, %v1204
      %v1210 = vlaneseq
      %v1211 = vshrl.u32 %v1210, 7
      %v1212 = vsub.s32 %v1109, %v1211
      %v1213 = vrot.slane %v734, %v1212
      %v1214 = vsel %vm1114, %v1213, %v1209
      %v1215 = vlaneseq
      %v1216 = vshrl.u32 %v1215, 7
      %v1217 = vsub.s32 %v1116, %v1216
      %v1218 = vrot.slane %v736, %v1217
      %v1219 = vsel %vm1121, %v1218, %v1214
      %v1220 = vlaneseq
      %v1221 = vshrl.u32 %v1220, 7
      %v1222 = vsub.s32 %v1123, %v1221
      %v1223 = vrot.slane %v738, %v1222
      %v1224 = vsel %vm1128, %v1223, %v1219
      %v1225 = vlaneseq
      %v1226 = vshrl.u32 %v1225, 7
      %v1227 = vsub.s32 %v1130, %v1226
      %v1228 = vrot.slane %v740, %v1227
      %v1229 = vsel %vm1135, %v1228, %v1224
      %v1230 = vlaneseq
      %v1231 = vshrl.u32 %v1230, 7
      %v1232 = vsub.s32 %v1137, %v1231
      %v1233 = vrot.slane %v742, %v1232
      %v1234 = vsel %vm1142, %v1233, %v1229
      %v1235 = vlaneseq
      %v1236 = vshrl.u32 %v1235, 7
      %v1237 = vsub.s32 %v1144, %v1236
      %v1238 = vrot.slane %v744, %v1237
      %v1239 = vsel %vm1149, %v1238, %v1234
      %v1240 = vlaneseq
      %v1241 = vshrl.u32 %v1240, 7
      %v1242 = vsub.s32 %v1151, %v1241
      %v1243 = vrot.slane %v746, %v1242
      %v1244 = vsel %vm1156, %v1243, %v1239
      %v1245 = vlaneseq
      %v1246 = vshrl.u32 %v1245, 7
      %v1247 = vsub.s32 %v1158, %v1246
      %v1248 = vrot.slane %v748, %v1247
      %v1249 = vsel %vm1163, %v1248, %v1244
      %v1250 = vlaneseq
      %v1251 = vshrl.u32 %v1250, 7
      %v1252 = vsub.s32 %v1165, %v1251
      %v1253 = vrot.slane %v750, %v1252
      %v1254 = vsel %vm1170, %v1253, %v1249
      %v1255 = vlaneseq
      %v1256 = vshrl.u32 %v1255, 7
      %v1257 = vsub.s32 %v1172, %v1256
      %v1258 = vrot.slane %v752, %v1257
      %v1259 = vsel %vm1177, %v1258, %v1254
      %v1260 = vlaneseq
      %v1261 = vshrl.u32 %v1260, 7
      %v1262 = vsub.s32 %v1179, %v1261
      %v1263 = vrot.slane %v754, %v1262
      %v1264 = vsel %vm1184, %v1263, %v1259
      %v1265 = vlaneseq
      %v1266 = vshrl.u32 %v1265, 7
      %v1267 = vsub.s32 %v1076, %v1266
      %v1268 = vrot.slane %v756, %v1267
      %v1269 = vlaneseq
      %v1270 = vshrl.u32 %v1269, 7
      %v1271 = vsub.s32 %v1081, %v1270
      %v1272 = vrot.slane %v758, %v1271
      %v1273 = vsel %vm1086, %v1272, %v1268
      %v1274 = vlaneseq
      %v1275 = vshrl.u32 %v1274, 7
      %v1276 = vsub.s32 %v1088, %v1275
      %v1277 = vrot.slane %v760, %v1276
      %v1278 = vsel %vm1093, %v1277, %v1273
      %v1279 = vlaneseq
      %v1280 = vshrl.u32 %v1279, 7
      %v1281 = vsub.s32 %v1095, %v1280
      %v1282 = vrot.slane %v762, %v1281
      %v1283 = vsel %vm1100, %v1282, %v1278
      %v1284 = vlaneseq
      %v1285 = vshrl.u32 %v1284, 7
      %v1286 = vsub.s32 %v1102, %v1285
      %v1287 = vrot.slane %v764, %v1286
      %v1288 = vsel %vm1107, %v1287, %v1283
      %v1289 = vlaneseq
      %v1290 = vshrl.u32 %v1289, 7
      %v1291 = vsub.s32 %v1109, %v1290
      %v1292 = vrot.slane %v766, %v1291
      %v1293 = vsel %vm1114, %v1292, %v1288
      %v1294 = vlaneseq
      %v1295 = vshrl.u32 %v1294, 7
      %v1296 = vsub.s32 %v1116, %v1295
      %v1297 = vrot.slane %v768, %v1296
      %v1298 = vsel %vm1121, %v1297, %v1293
      %v1299 = vlaneseq
      %v1300 = vshrl.u32 %v1299, 7
      %v1301 = vsub.s32 %v1123, %v1300
      %v1302 = vrot.slane %v770, %v1301
      %v1303 = vsel %vm1128, %v1302, %v1298
      %v1304 = vlaneseq
      %v1305 = vshrl.u32 %v1304, 7
      %v1306 = vsub.s32 %v1130, %v1305
      %v1307 = vrot.slane %v772, %v1306
      %v1308 = vsel %vm1135, %v1307, %v1303
      %v1309 = vlaneseq
      %v1310 = vshrl.u32 %v1309, 7
      %v1311 = vsub.s32 %v1137, %v1310
      %v1312 = vrot.slane %v774, %v1311
      %v1313 = vsel %vm1142, %v1312, %v1308
      %v1314 = vlaneseq
      %v1315 = vshrl.u32 %v1314, 7
      %v1316 = vsub.s32 %v1144, %v1315
      %v1317 = vrot.slane %v776, %v1316
      %v1318 = vsel %vm1149, %v1317, %v1313
      %v1319 = vlaneseq
      %v1320 = vshrl.u32 %v1319, 7
      %v1321 = vsub.s32 %v1151, %v1320
      %v1322 = vrot.slane %v778, %v1321
      %v1323 = vsel %vm1156, %v1322, %v1318
      %v1324 = vlaneseq
      %v1325 = vshrl.u32 %v1324, 7
      %v1326 = vsub.s32 %v1158, %v1325
      %v1327 = vrot.slane %v780, %v1326
      %v1328 = vsel %vm1163, %v1327, %v1323
      %v1329 = vlaneseq
      %v1330 = vshrl.u32 %v1329, 7
      %v1331 = vsub.s32 %v1165, %v1330
      %v1332 = vrot.slane %v782, %v1331
      %v1333 = vsel %vm1170, %v1332, %v1328
      %v1334 = vlaneseq
      %v1335 = vshrl.u32 %v1334, 7
      %v1336 = vsub.s32 %v1172, %v1335
      %v1337 = vrot.slane %v784, %v1336
      %v1338 = vsel %vm1177, %v1337, %v1333
      %v1339 = vlaneseq
      %v1340 = vshrl.u32 %v1339, 7
      %v1341 = vsub.s32 %v1179, %v1340
      %v1342 = vrot.slane %v786, %v1341
      %v1343 = vsel %vm1184, %v1342, %v1338
      %v1344 = vlaneseq
      %v1345 = vshrl.u32 %v1344, 7
      %v1346 = vsub.s32 %v1076, %v1345
      %v1347 = vrot.slane %v788, %v1346
      %v1348 = vlaneseq
      %v1349 = vshrl.u32 %v1348, 7
      %v1350 = vsub.s32 %v1081, %v1349
      %v1351 = vrot.slane %v790, %v1350
      %v1352 = vsel %vm1086, %v1351, %v1347
      %v1353 = vlaneseq
      %v1354 = vshrl.u32 %v1353, 7
      %v1355 = vsub.s32 %v1088, %v1354
      %v1356 = vrot.slane %v792, %v1355
      %v1357 = vsel %vm1093, %v1356, %v1352
      %v1358 = vlaneseq
      %v1359 = vshrl.u32 %v1358, 7
      %v1360 = vsub.s32 %v1095, %v1359
      %v1361 = vrot.slane %v794, %v1360
      %v1362 = vsel %vm1100, %v1361, %v1357
      %v1363 = vlaneseq
      %v1364 = vshrl.u32 %v1363, 7
      %v1365 = vsub.s32 %v1102, %v1364
      %v1366 = vrot.slane %v796, %v1365
      %v1367 = vsel %vm1107, %v1366, %v1362
      %v1368 = vlaneseq
      %v1369 = vshrl.u32 %v1368, 7
      %v1370 = vsub.s32 %v1109, %v1369
      %v1371 = vrot.slane %v798, %v1370
      %v1372 = vsel %vm1114, %v1371, %v1367
      %v1373 = vlaneseq
      %v1374 = vshrl.u32 %v1373, 7
      %v1375 = vsub.s32 %v1116, %v1374
      %v1376 = vrot.slane %v800, %v1375
      %v1377 = vsel %vm1121, %v1376, %v1372
      %v1378 = vlaneseq
      %v1379 = vshrl.u32 %v1378, 7
      %v1380 = vsub.s32 %v1123, %v1379
      %v1381 = vrot.slane %v802, %v1380
      %v1382 = vsel %vm1128, %v1381, %v1377
      %v1383 = vlaneseq
      %v1384 = vshrl.u32 %v1383, 7
      %v1385 = vsub.s32 %v1130, %v1384
      %v1386 = vrot.slane %v804, %v1385
      %v1387 = vsel %vm1135, %v1386, %v1382
      %v1388 = vlaneseq
      %v1389 = vshrl.u32 %v1388, 7
      %v1390 = vsub.s32 %v1137, %v1389
      %v1391 = vrot.slane %v806, %v1390
      %v1392 = vsel %vm1142, %v1391, %v1387
      %v1393 = vlaneseq
      %v1394 = vshrl.u32 %v1393, 7
      %v1395 = vsub.s32 %v1144, %v1394
      %v1396 = vrot.slane %v808, %v1395
      %v1397 = vsel %vm1149, %v1396, %v1392
      %v1398 = vlaneseq
      %v1399 = vshrl.u32 %v1398, 7
      %v1400 = vsub.s32 %v1151, %v1399
      %v1401 = vrot.slane %v810, %v1400
      %v1402 = vsel %vm1156, %v1401, %v1397
      %v1403 = vlaneseq
      %v1404 = vshrl.u32 %v1403, 7
      %v1405 = vsub.s32 %v1158, %v1404
      %v1406 = vrot.slane %v812, %v1405
      %v1407 = vsel %vm1163, %v1406, %v1402
      %v1408 = vlaneseq
      %v1409 = vshrl.u32 %v1408, 7
      %v1410 = vsub.s32 %v1165, %v1409
      %v1411 = vrot.slane %v814, %v1410
      %v1412 = vsel %vm1170, %v1411, %v1407
      %v1413 = vlaneseq
      %v1414 = vshrl.u32 %v1413, 7
      %v1415 = vsub.s32 %v1172, %v1414
      %v1416 = vrot.slane %v816, %v1415
      %v1417 = vsel %vm1177, %v1416, %v1412
      %v1418 = vlaneseq
      %v1419 = vshrl.u32 %v1418, 7
      %v1420 = vsub.s32 %v1179, %v1419
      %v1421 = vrot.slane %v818, %v1420
      %v1422 = vsel %vm1184, %v1421, %v1417
      %v1423 = vlaneseq
      %v1424 = vshrl.u32 %v1423, 7
      %v1425 = vsub.s32 %v1076, %v1424
      %v1426 = vrot.slane %v820, %v1425
      %v1427 = vlaneseq
      %v1428 = vshrl.u32 %v1427, 7
      %v1429 = vsub.s32 %v1081, %v1428
      %v1430 = vrot.slane %v822, %v1429
      %v1431 = vsel %vm1086, %v1430, %v1426
      %v1432 = vlaneseq
      %v1433 = vshrl.u32 %v1432, 7
      %v1434 = vsub.s32 %v1088, %v1433
      %v1435 = vrot.slane %v824, %v1434
      %v1436 = vsel %vm1093, %v1435, %v1431
      %v1437 = vlaneseq
      %v1438 = vshrl.u32 %v1437, 7
      %v1439 = vsub.s32 %v1095, %v1438
      %v1440 = vrot.slane %v826, %v1439
      %v1441 = vsel %vm1100, %v1440, %v1436
      %v1442 = vlaneseq
      %v1443 = vshrl.u32 %v1442, 7
      %v1444 = vsub.s32 %v1102, %v1443
      %v1445 = vrot.slane %v828, %v1444
      %v1446 = vsel %vm1107, %v1445, %v1441
      %v1447 = vlaneseq
      %v1448 = vshrl.u32 %v1447, 7
      %v1449 = vsub.s32 %v1109, %v1448
      %v1450 = vrot.slane %v830, %v1449
      %v1451 = vsel %vm1114, %v1450, %v1446
      %v1452 = vlaneseq
      %v1453 = vshrl.u32 %v1452, 7
      %v1454 = vsub.s32 %v1116, %v1453
      %v1455 = vrot.slane %v832, %v1454
      %v1456 = vsel %vm1121, %v1455, %v1451
      %v1457 = vlaneseq
      %v1458 = vshrl.u32 %v1457, 7
      %v1459 = vsub.s32 %v1123, %v1458
      %v1460 = vrot.slane %v834, %v1459
      %v1461 = vsel %vm1128, %v1460, %v1456
      %v1462 = vlaneseq
      %v1463 = vshrl.u32 %v1462, 7
      %v1464 = vsub.s32 %v1130, %v1463
      %v1465 = vrot.slane %v836, %v1464
      %v1466 = vsel %vm1135, %v1465, %v1461
      %v1467 = vlaneseq
      %v1468 = vshrl.u32 %v1467, 7
      %v1469 = vsub.s32 %v1137, %v1468
      %v1470 = vrot.slane %v838, %v1469
      %v1471 = vsel %vm1142, %v1470, %v1466
      %v1472 = vlaneseq
      %v1473 = vshrl.u32 %v1472, 7
      %v1474 = vsub.s32 %v1144, %v1473
      %v1475 = vrot.slane %v840, %v1474
      %v1476 = vsel %vm1149, %v1475, %v1471
      %v1477 = vlaneseq
      %v1478 = vshrl.u32 %v1477, 7
      %v1479 = vsub.s32 %v1151, %v1478
      %v1480 = vrot.slane %v842, %v1479
      %v1481 = vsel %vm1156, %v1480, %v1476
      %v1482 = vlaneseq
      %v1483 = vshrl.u32 %v1482, 7
      %v1484 = vsub.s32 %v1158, %v1483
      %v1485 = vrot.slane %v844, %v1484
      %v1486 = vsel %vm1163, %v1485, %v1481
      %v1487 = vlaneseq
      %v1488 = vshrl.u32 %v1487, 7
      %v1489 = vsub.s32 %v1165, %v1488
      %v1490 = vrot.slane %v846, %v1489
      %v1491 = vsel %vm1170, %v1490, %v1486
      %v1492 = vlaneseq
      %v1493 = vshrl.u32 %v1492, 7
      %v1494 = vsub.s32 %v1172, %v1493
      %v1495 = vrot.slane %v848, %v1494
      %v1496 = vsel %vm1177, %v1495, %v1491
      %v1497 = vlaneseq
      %v1498 = vshrl.u32 %v1497, 7
      %v1499 = vsub.s32 %v1179, %v1498
      %v1500 = vrot.slane %v850, %v1499
      %v1501 = vsel %vm1184, %v1500, %v1496
      %v1502 = vlaneseq
      %v1503 = vshrl.u32 %v1502, 7
      %v1504 = vsub.s32 %v1076, %v1503
      %v1505 = vrot.slane %v852, %v1504
      %v1506 = vlaneseq
      %v1507 = vshrl.u32 %v1506, 7
      %v1508 = vsub.s32 %v1081, %v1507
      %v1509 = vrot.slane %v854, %v1508
      %v1510 = vsel %vm1086, %v1509, %v1505
      %v1511 = vlaneseq
      %v1512 = vshrl.u32 %v1511, 7
      %v1513 = vsub.s32 %v1088, %v1512
      %v1514 = vrot.slane %v856, %v1513
      %v1515 = vsel %vm1093, %v1514, %v1510
      %v1516 = vlaneseq
      %v1517 = vshrl.u32 %v1516, 7
      %v1518 = vsub.s32 %v1095, %v1517
      %v1519 = vrot.slane %v858, %v1518
      %v1520 = vsel %vm1100, %v1519, %v1515
      %v1521 = vlaneseq
      %v1522 = vshrl.u32 %v1521, 7
      %v1523 = vsub.s32 %v1102, %v1522
      %v1524 = vrot.slane %v860, %v1523
      %v1525 = vsel %vm1107, %v1524, %v1520
      %v1526 = vlaneseq
      %v1527 = vshrl.u32 %v1526, 7
      %v1528 = vsub.s32 %v1109, %v1527
      %v1529 = vrot.slane %v862, %v1528
      %v1530 = vsel %vm1114, %v1529, %v1525
      %v1531 = vlaneseq
      %v1532 = vshrl.u32 %v1531, 7
      %v1533 = vsub.s32 %v1116, %v1532
      %v1534 = vrot.slane %v864, %v1533
      %v1535 = vsel %vm1121, %v1534, %v1530
      %v1536 = vlaneseq
      %v1537 = vshrl.u32 %v1536, 7
      %v1538 = vsub.s32 %v1123, %v1537
      %v1539 = vrot.slane %v866, %v1538
      %v1540 = vsel %vm1128, %v1539, %v1535
      %v1541 = vlaneseq
      %v1542 = vshrl.u32 %v1541, 7
      %v1543 = vsub.s32 %v1130, %v1542
      %v1544 = vrot.slane %v868, %v1543
      %v1545 = vsel %vm1135, %v1544, %v1540
      %v1546 = vlaneseq
      %v1547 = vshrl.u32 %v1546, 7
      %v1548 = vsub.s32 %v1137, %v1547
      %v1549 = vrot.slane %v870, %v1548
      %v1550 = vsel %vm1142, %v1549, %v1545
      %v1551 = vlaneseq
      %v1552 = vshrl.u32 %v1551, 7
      %v1553 = vsub.s32 %v1144, %v1552
      %v1554 = vrot.slane %v872, %v1553
      %v1555 = vsel %vm1149, %v1554, %v1550
      %v1556 = vlaneseq
      %v1557 = vshrl.u32 %v1556, 7
      %v1558 = vsub.s32 %v1151, %v1557
      %v1559 = vrot.slane %v874, %v1558
      %v1560 = vsel %vm1156, %v1559, %v1555
      %v1561 = vlaneseq
      %v1562 = vshrl.u32 %v1561, 7
      %v1563 = vsub.s32 %v1158, %v1562
      %v1564 = vrot.slane %v876, %v1563
      %v1565 = vsel %vm1163, %v1564, %v1560
      %v1566 = vlaneseq
      %v1567 = vshrl.u32 %v1566, 7
      %v1568 = vsub.s32 %v1165, %v1567
      %v1569 = vrot.slane %v878, %v1568
      %v1570 = vsel %vm1170, %v1569, %v1565
      %v1571 = vlaneseq
      %v1572 = vshrl.u32 %v1571, 7
      %v1573 = vsub.s32 %v1172, %v1572
      %v1574 = vrot.slane %v880, %v1573
      %v1575 = vsel %vm1177, %v1574, %v1570
      %v1576 = vlaneseq
      %v1577 = vshrl.u32 %v1576, 7
      %v1578 = vsub.s32 %v1179, %v1577
      %v1579 = vrot.slane %v882, %v1578
      %v1580 = vsel %vm1184, %v1579, %v1575
      %v1581 = vlaneseq
      %v1582 = vshrl.u32 %v1581, 7
      %v1583 = vsub.s32 %v1076, %v1582
      %v1584 = vrot.slane %v884, %v1583
      %v1585 = vlaneseq
      %v1586 = vshrl.u32 %v1585, 7
      %v1587 = vsub.s32 %v1081, %v1586
      %v1588 = vrot.slane %v886, %v1587
      %v1589 = vsel %vm1086, %v1588, %v1584
      %v1590 = vlaneseq
      %v1591 = vshrl.u32 %v1590, 7
      %v1592 = vsub.s32 %v1088, %v1591
      %v1593 = vrot.slane %v888, %v1592
      %v1594 = vsel %vm1093, %v1593, %v1589
      %v1595 = vlaneseq
      %v1596 = vshrl.u32 %v1595, 7
      %v1597 = vsub.s32 %v1095, %v1596
      %v1598 = vrot.slane %v890, %v1597
      %v1599 = vsel %vm1100, %v1598, %v1594
      %v1600 = vlaneseq
      %v1601 = vshrl.u32 %v1600, 7
      %v1602 = vsub.s32 %v1102, %v1601
      %v1603 = vrot.slane %v892, %v1602
      %v1604 = vsel %vm1107, %v1603, %v1599
      %v1605 = vlaneseq
      %v1606 = vshrl.u32 %v1605, 7
      %v1607 = vsub.s32 %v1109, %v1606
      %v1608 = vrot.slane %v894, %v1607
      %v1609 = vsel %vm1114, %v1608, %v1604
      %v1610 = vlaneseq
      %v1611 = vshrl.u32 %v1610, 7
      %v1612 = vsub.s32 %v1116, %v1611
      %v1613 = vrot.slane %v896, %v1612
      %v1614 = vsel %vm1121, %v1613, %v1609
      %v1615 = vlaneseq
      %v1616 = vshrl.u32 %v1615, 7
      %v1617 = vsub.s32 %v1123, %v1616
      %v1618 = vrot.slane %v898, %v1617
      %v1619 = vsel %vm1128, %v1618, %v1614
      %v1620 = vlaneseq
      %v1621 = vshrl.u32 %v1620, 7
      %v1622 = vsub.s32 %v1130, %v1621
      %v1623 = vrot.slane %v900, %v1622
      %v1624 = vsel %vm1135, %v1623, %v1619
      %v1625 = vlaneseq
      %v1626 = vshrl.u32 %v1625, 7
      %v1627 = vsub.s32 %v1137, %v1626
      %v1628 = vrot.slane %v902, %v1627
      %v1629 = vsel %vm1142, %v1628, %v1624
      %v1630 = vlaneseq
      %v1631 = vshrl.u32 %v1630, 7
      %v1632 = vsub.s32 %v1144, %v1631
      %v1633 = vrot.slane %v904, %v1632
      %v1634 = vsel %vm1149, %v1633, %v1629
      %v1635 = vlaneseq
      %v1636 = vshrl.u32 %v1635, 7
      %v1637 = vsub.s32 %v1151, %v1636
      %v1638 = vrot.slane %v906, %v1637
      %v1639 = vsel %vm1156, %v1638, %v1634
      %v1640 = vlaneseq
      %v1641 = vshrl.u32 %v1640, 7
      %v1642 = vsub.s32 %v1158, %v1641
      %v1643 = vrot.slane %v908, %v1642
      %v1644 = vsel %vm1163, %v1643, %v1639
      %v1645 = vlaneseq
      %v1646 = vshrl.u32 %v1645, 7
      %v1647 = vsub.s32 %v1165, %v1646
      %v1648 = vrot.slane %v910, %v1647
      %v1649 = vsel %vm1170, %v1648, %v1644
      %v1650 = vlaneseq
      %v1651 = vshrl.u32 %v1650, 7
      %v1652 = vsub.s32 %v1172, %v1651
      %v1653 = vrot.slane %v912, %v1652
      %v1654 = vsel %vm1177, %v1653, %v1649
      %v1655 = vlaneseq
      %v1656 = vshrl.u32 %v1655, 7
      %v1657 = vsub.s32 %v1179, %v1656
      %v1658 = vrot.slane %v914, %v1657
      %v1659 = vsel %vm1184, %v1658, %v1654
      %v1660 = vlaneseq
      %v1661 = vshrl.u32 %v1660, 7
      %v1662 = vsub.s32 %v1076, %v1661
      %v1663 = vrot.slane %v916, %v1662
      %v1664 = vlaneseq
      %v1665 = vshrl.u32 %v1664, 7
      %v1666 = vsub.s32 %v1081, %v1665
      %v1667 = vrot.slane %v918, %v1666
      %v1668 = vsel %vm1086, %v1667, %v1663
      %v1669 = vlaneseq
      %v1670 = vshrl.u32 %v1669, 7
      %v1671 = vsub.s32 %v1088, %v1670
      %v1672 = vrot.slane %v920, %v1671
      %v1673 = vsel %vm1093, %v1672, %v1668
      %v1674 = vlaneseq
      %v1675 = vshrl.u32 %v1674, 7
      %v1676 = vsub.s32 %v1095, %v1675
      %v1677 = vrot.slane %v922, %v1676
      %v1678 = vsel %vm1100, %v1677, %v1673
      %v1679 = vlaneseq
      %v1680 = vshrl.u32 %v1679, 7
      %v1681 = vsub.s32 %v1102, %v1680
      %v1682 = vrot.slane %v924, %v1681
      %v1683 = vsel %vm1107, %v1682, %v1678
      %v1684 = vlaneseq
      %v1685 = vshrl.u32 %v1684, 7
      %v1686 = vsub.s32 %v1109, %v1685
      %v1687 = vrot.slane %v926, %v1686
      %v1688 = vsel %vm1114, %v1687, %v1683
      %v1689 = vlaneseq
      %v1690 = vshrl.u32 %v1689, 7
      %v1691 = vsub.s32 %v1116, %v1690
      %v1692 = vrot.slane %v928, %v1691
      %v1693 = vsel %vm1121, %v1692, %v1688
      %v1694 = vlaneseq
      %v1695 = vshrl.u32 %v1694, 7
      %v1696 = vsub.s32 %v1123, %v1695
      %v1697 = vrot.slane %v930, %v1696
      %v1698 = vsel %vm1128, %v1697, %v1693
      %v1699 = vlaneseq
      %v1700 = vshrl.u32 %v1699, 7
      %v1701 = vsub.s32 %v1130, %v1700
      %v1702 = vrot.slane %v932, %v1701
      %v1703 = vsel %vm1135, %v1702, %v1698
      %v1704 = vlaneseq
      %v1705 = vshrl.u32 %v1704, 7
      %v1706 = vsub.s32 %v1137, %v1705
      %v1707 = vrot.slane %v934, %v1706
      %v1708 = vsel %vm1142, %v1707, %v1703
      %v1709 = vlaneseq
      %v1710 = vshrl.u32 %v1709, 7
      %v1711 = vsub.s32 %v1144, %v1710
      %v1712 = vrot.slane %v936, %v1711
      %v1713 = vsel %vm1149, %v1712, %v1708
      %v1714 = vlaneseq
      %v1715 = vshrl.u32 %v1714, 7
      %v1716 = vsub.s32 %v1151, %v1715
      %v1717 = vrot.slane %v938, %v1716
      %v1718 = vsel %vm1156, %v1717, %v1713
      %v1719 = vlaneseq
      %v1720 = vshrl.u32 %v1719, 7
      %v1721 = vsub.s32 %v1158, %v1720
      %v1722 = vrot.slane %v940, %v1721
      %v1723 = vsel %vm1163, %v1722, %v1718
      %v1724 = vlaneseq
      %v1725 = vshrl.u32 %v1724, 7
      %v1726 = vsub.s32 %v1165, %v1725
      %v1727 = vrot.slane %v942, %v1726
      %v1728 = vsel %vm1170, %v1727, %v1723
      %v1729 = vlaneseq
      %v1730 = vshrl.u32 %v1729, 7
      %v1731 = vsub.s32 %v1172, %v1730
      %v1732 = vrot.slane %v944, %v1731
      %v1733 = vsel %vm1177, %v1732, %v1728
      %v1734 = vlaneseq
      %v1735 = vshrl.u32 %v1734, 7
      %v1736 = vsub.s32 %v1179, %v1735
      %v1737 = vrot.slane %v946, %v1736
      %v1738 = vsel %vm1184, %v1737, %v1733
      %vm1739 = vcmask 1041409
      %v1740 = vsel %vm1739, %v1264, %v1185
      %vm1741 = vcmask 1042434
      %v1742 = vsel %vm1741, %v1343, %v1740
      %vm1743 = vcmask 1043459
      %v1744 = vsel %vm1743, %v1422, %v1742
      %vm1745 = vcmask 1044484
      %v1746 = vsel %vm1745, %v1501, %v1744
      %vm1747 = vcmask 1045509
      %v1748 = vsel %vm1747, %v1580, %v1746
      %vm1749 = vcmask 1046534
      %v1750 = vsel %vm1749, %v1659, %v1748
      %vm1751 = vcmask 1047559
      %v1752 = vsel %vm1751, %v1738, %v1750
      %1754 = vst [vmem:[#allocation2] sm:$0xff] %v1752
      %v1755 = vld [vmem:[#allocation2] sm:$0xff]
      %s1756 = sld [smem:[#allocation4 + %s21]]
      %v1757 = vstv %s1756
      %vm1758 = vcmp.ge.s32.totalorder %v1076, %v1757
      %v1759 = vsel %vm1758, -65504.0, %v1755
      %vm1760 = vcmp.ge.s32.totalorder %v1076, 10
      %v1761 = vsel %vm1760, -inf, %v1759
      %1762 = vmax.xlane.f32.xlu0 %v1761
      %v1763 = vpop.xlane.xlu0 %1762
      %v1764 = vsub.f32 %v1761, %v1763
      %v1765 = vmul.f32 %v1764, 1.442695
      %v1766 = vpow.pop %v1765
      %1767 = vadd.xlane.f32.xlu0 %v1766
      %v1768 = vpop.xlane.xlu0 %1767
      %v1769 = vrcp.pop %v1768
      %v1770 = vmul.f32 %v1766, %v1769
      %1771 = vst [vmem:[%s192] sm:$0xff] %v1770
      %p1772 = scmp.lt.s32.totalorder %s21, 1
      %s1773 = scalar_select %p1772, %s21, 1
      %s1774 = smul.addr %s1773, 8
      %s1775 = scalar_lea.vmem %s4, %s1774
      // Predicated region
      $region33: #{recurrent_attention_forward.3} parent=31 // pred_check
        %p1776 = pneg %p112
      $region34: #{recurrent_attention_forward.3} parent=31 // pred_check_branch
        %1778 = sbr.rel (%p1776) target = $region36
      $region35: #{recurrent_attention_forward.3} parent=31 // pred_region
        _
      $region36: #{recurrent_attention_forward.3} parent=31 // pred_fallthru
        _
    $region32: #{recurrent_attention_forward.3} parent=5 // pred_fallthru
      _
    %p1779 = scmp.le.s32.totalorder 2, %s16
    // Predicated region
    $region37: #{recurrent_attention_forward.3} parent=5 // pred_check
      %p1780 = pneg %p1779
    $region38: #{recurrent_attention_forward.3} parent=5 // pred_check_branch
      %1782 = sbr.rel (%p1780) target = $region40
    $region39: #{recurrent_attention_forward.3} parent=5 // pred_region
      %s1783 = ssub.s32 %s16, 2
      // Predicated region
      $region41: #{recurrent_attention_forward.3} parent=39 // pred_check
        %p1784 = pneg %p118
      $region42: #{recurrent_attention_forward.3} parent=39 // pred_check_branch
        %1786 = sbr.rel (%p1784) target = $region44
      $region43: #{recurrent_attention_forward.3} parent=39 // pred_region
        %p1787 = scmp.lt.s32.totalorder %s22, 1
        %s1788 = scalar_select %p1787, %s22, 1
        %s1789 = smul.addr %s1788, 8
        %s1790 = scalar_lea.vmem %s4, %s1789
      $region44: #{recurrent_attention_forward.3} parent=39 // pred_fallthru
        _
    $region40: #{recurrent_attention_forward.3} parent=5 // pred_fallthru
      _
  $region6: #{recurrent_attention_forward.3} parent=0 // loop_footer
    %s20 = sadd.s32 1, %s16
  $region7: #{recurrent_attention_forward.3} parent=0 // loop_footer_branch
    %15 = sbr.rel target = $region3
  $region8: #{recurrent_attention_forward.3} parent=0 // loop_exit
    _

// kernel: recurrent_attention_forward.2
$region0: #{recurrent_attention_forward.2}
  #allocation0 [shape = 'u32[]', space=smem, size = 0x4, offset = 0x4, fixed_abs, tag = 'smem constant byte address 0x4 - core index']
  #allocation1 [shape = 'u32[144,128]{1,0:T(1,128)}', space=vmem, size = 0x12000, scoped, tag = 'internal scratch']
  %s0 = inlined_call_operand.vmem [shape: f32[8,2,512], index: 0, kind: input, shape index: {}]
  %s1 = inlined_call_operand.vmem [shape: f32[128,512], index: 1, kind: input, shape index: {}]
  %s2 = inlined_call_operand.vmem [shape: f32[2,128], index: 2, kind: input, shape index: {}]
  %s3 = inlined_call_operand.vmem [shape: f32[2,128], index: 3, kind: input, shape index: {}]
  %s4 = inlined_call_operand.vmem [shape: f32[8,2,128], index: 4, kind: output, shape index: {0}]
  %s5 = inlined_call_operand.vmem [shape: f32[2,128], index: 5, kind: output, shape index: {1}]
  %s6 = inlined_call_operand.vmem [shape: f32[2,128], index: 6, kind: output, shape index: {2}]
  %7 = xla_tuple %s4, %s5, %s6
  %s8 = sld [smem:[#allocation0]]
  $region42: #{recurrent_attention_forward.2} parent=0
    _
  %s10 = ssub.s32 1, %s8
  %s11 = scalar_select 0, %s10, %s8
  // Predicated region
  $region2: #{recurrent_attention_forward.2} parent=0 // pred_check
    _
  $region3: #{recurrent_attention_forward.2} parent=0 // pred_check_branch
    %13 = sbr.rel (0) target = $region5
  $region4: #{recurrent_attention_forward.2} parent=0 // pred_region
    _
  $region5: #{recurrent_attention_forward.2} parent=0 // pred_fallthru
    _
  // Predicated region
  $region6: #{recurrent_attention_forward.2} parent=0 // pred_check
    _
  $region7: #{recurrent_attention_forward.2} parent=0 // pred_check_branch
    %15 = sbr.rel (0) target = $region9
  $region8: #{recurrent_attention_forward.2} parent=0 // pred_region
    _
  $region9: #{recurrent_attention_forward.2} parent=0 // pred_fallthru
    _
  // Predicated region
  $region10: #{recurrent_attention_forward.2} parent=0 // pred_check
    _
  $region11: #{recurrent_attention_forward.2} parent=0 // pred_check_branch
    %17 = sbr.rel (0) target = $region13
  $region12: #{recurrent_attention_forward.2} parent=0 // pred_region
    _
  $region13: #{recurrent_attention_forward.2} parent=0 // pred_fallthru
    _
  // Predicated region
  $region14: #{recurrent_attention_forward.2} parent=0 // pred_check
    _
  $region15: #{recurrent_attention_forward.2} parent=0 // pred_check_branch
    %19 = sbr.rel (0) target = $region17
  $region16: #{recurrent_attention_forward.2} parent=0 // pred_region
    _
  $region17: #{recurrent_attention_forward.2} parent=0 // pred_fallthru
    _
  %v20 = vld [vmem:[%s2] sm:$0x3]
  %v21 = vld [vmem:[%s3] sm:$0x3]
  %v22 = vld [vmem:[%s0] sm:$0xff]
  %v23 = vld [vmem:[%s1] sm:$0xff]
  %v24 = vld [vmem:[%s1 + $0x8] sm:$0xff]
  %v25 = vld [vmem:[%s1 + $0x10] sm:$0xff]
  %v26 = vld [vmem:[%s1 + $0x18] sm:$0xff]
  %v27 = vld [vmem:[%s1 + $0x20] sm:$0xff]
  %v28 = vld [vmem:[%s1 + $0x28] sm:$0xff]
  %v29 = vld [vmem:[%s1 + $0x30] sm:$0xff]
  %v30 = vld [vmem:[%s1 + $0x38] sm:$0xff]
  %v31 = vld [vmem:[%s1 + $0x40] sm:$0xff]
  %v32 = vld [vmem:[%s1 + $0x48] sm:$0xff]
  %v33 = vld [vmem:[%s1 + $0x50] sm:$0xff]
  %v34 = vld [vmem:[%s1 + $0x58] sm:$0xff]
  %v35 = vld [vmem:[%s1 + $0x60] sm:$0xff]
  %v36 = vld [vmem:[%s1 + $0x68] sm:$0xff]
  %v37 = vld [vmem:[%s1 + $0x70] sm:$0xff]
  %v38 = vld [vmem:[%s1 + $0x78] sm:$0xff]
  %v39 = vld [vmem:[%s1 + $0x80] sm:$0xff]
  %v40 = vld [vmem:[%s1 + $0x88] sm:$0xff]
  %v41 = vld [vmem:[%s1 + $0x90] sm:$0xff]
  %v42 = vld [vmem:[%s1 + $0x98] sm:$0xff]
  %v43 = vld [vmem:[%s1 + $0xa0] sm:$0xff]
  %v44 = vld [vmem:[%s1 + $0xa8] sm:$0xff]
  %v45 = vld [vmem:[%s1 + $0xb0] sm:$0xff]
  %v46 = vld [vmem:[%s1 + $0xb8] sm:$0xff]
  %v47 = vld [vmem:[%s1 + $0xc0] sm:$0xff]
  %v48 = vld [vmem:[%s1 + $0xc8] sm:$0xff]
  %v49 = vld [vmem:[%s1 + $0xd0] sm:$0xff]
  %v50 = vld [vmem:[%s1 + $0xd8] sm:$0xff]
  %v51 = vld [vmem:[%s1 + $0xe0] sm:$0xff]
  %v52 = vld [vmem:[%s1 + $0xe8] sm:$0xff]
  %v53 = vld [vmem:[%s1 + $0xf0] sm:$0xff]
  %v54 = vld [vmem:[%s1 + $0xf8] sm:$0xff]
  %v55 = vld [vmem:[%s1 + $0x100] sm:$0xff]
  %v56 = vld [vmem:[%s1 + $0x108] sm:$0xff]
  %v57 = vld [vmem:[%s1 + $0x110] sm:$0xff]
  %v58 = vld [vmem:[%s1 + $0x118] sm:$0xff]
  %v59 = vld [vmem:[%s1 + $0x120] sm:$0xff]
  %v60 = vld [vmem:[%s1 + $0x128] sm:$0xff]
  %v61 = vld [vmem:[%s1 + $0x130] sm:$0xff]
  %v62 = vld [vmem:[%s1 + $0x138] sm:$0xff]
  %v63 = vld [vmem:[%s1 + $0x140] sm:$0xff]
  %v64 = vld [vmem:[%s1 + $0x148] sm:$0xff]
  %v65 = vld [vmem:[%s1 + $0x150] sm:$0xff]
  %v66 = vld [vmem:[%s1 + $0x158] sm:$0xff]
  %v67 = vld [vmem:[%s1 + $0x160] sm:$0xff]
  %v68 = vld [vmem:[%s1 + $0x168] sm:$0xff]
  %v69 = vld [vmem:[%s1 + $0x170] sm:$0xff]
  %v70 = vld [vmem:[%s1 + $0x178] sm:$0xff]
  %v71 = vld [vmem:[%s1 + $0x180] sm:$0xff]
  %v72 = vld [vmem:[%s1 + $0x188] sm:$0xff]
  %v73 = vld [vmem:[%s1 + $0x190] sm:$0xff]
  %v74 = vld [vmem:[%s1 + $0x198] sm:$0xff]
  %v75 = vld [vmem:[%s1 + $0x1a0] sm:$0xff]
  %v76 = vld [vmem:[%s1 + $0x1a8] sm:$0xff]
  %v77 = vld [vmem:[%s1 + $0x1b0] sm:$0xff]
  %v78 = vld [vmem:[%s1 + $0x1b8] sm:$0xff]
  %v79 = vld [vmem:[%s1 + $0x1c0] sm:$0xff]
  %v80 = vld [vmem:[%s1 + $0x1c8] sm:$0xff]
  %v81 = vld [vmem:[%s1 + $0x1d0] sm:$0xff]
  %v82 = vld [vmem:[%s1 + $0x1d8] sm:$0xff]
  %v83 = vld [vmem:[%s1 + $0x1e0] sm:$0xff]
  %v84 = vld [vmem:[%s1 + $0x1e8] sm:$0xff]
  %v85 = vld [vmem:[%s1 + $0x1f0] sm:$0xff]
  %v86 = vld [vmem:[%s1 + $0x1f8] sm:$0xff]
  %87 = vmatprep.subr.mxu0 %v84
  %88 = vmatpush1.msra.mxu0 %v83
  %89 = vmatprep.subr.mxu0 %v80
  %90 = vmatpush1.msra.mxu0 %v79
  %91 = vmatprep.subr.mxu0 %v76
  %92 = vmatpush1.msra.mxu0 %v75
  %93 = vmatprep.subr.mxu0 %v72
  %94 = vmatpush1.msra.mxu0 %v71
  %95 = vmatprep.subr.mxu0 %v68
  %96 = vmatpush1.msra.mxu0 %v67
  %97 = vmatprep.subr.mxu0 %v64
  %98 = vmatpush1.msra.mxu0 %v63
  %99 = vmatprep.subr.mxu0 %v60
  %100 = vmatpush1.msra.mxu0 %v59
  %101 = vmatprep.subr.mxu0 %v56
  %102 = vmatpush1.msra.mxu0 %v55
  %103 = vmatprep.subr.mxu0 %v52
  %104 = vmatpush1.msra.mxu0 %v51
  %105 = vmatprep.subr.mxu0 %v48
  %106 = vmatpush1.msra.mxu0 %v47
  %107 = vmatprep.subr.mxu0 %v44
  %108 = vmatpush1.msra.mxu0 %v43
  %109 = vmatprep.subr.mxu0 %v40
  %110 = vmatpush1.msra.mxu0 %v39
  %111 = vmatprep.subr.mxu0 %v36
  %112 = vmatpush1.msra.mxu0 %v35
  %113 = vmatprep.subr.mxu0 %v32
  %114 = vmatpush1.msra.mxu0 %v31
  %115 = vmatprep.subr.mxu0 %v28
  %116 = vmatpush1.msra.mxu0 %v27
  %117 = vmatprep.subr.mxu0 %v24
  %118 = vmatpush1.msra.mxu0 %v23
  %119 = vmatprep.subr.mxu0 0.0
  %120 = vmatpush2.msra.mxu0 0.0
  %121 = vmatprep.subr.mxu0 0.0
  %122 = vmatpush2.msra.mxu0 0.0
  %123 = vmatprep.subr.mxu0 0.0
  %124 = vmatpush2.msra.mxu0 0.0
  %125 = vmatprep.subr.mxu0 0.0
  %126 = vmatpush2.msra.mxu0 0.0
  %127 = vmatprep.subr.mxu0 0.0
  %128 = vmatpush2.msra.mxu0 0.0
  %129 = vmatprep.subr.mxu0 0.0
  %130 = vmatpush2.msra.mxu0 0.0
  %131 = vmatprep.subr.mxu0 0.0
  %132 = vmatpush2.msra.mxu0 0.0
  %133 = vmatprep.subr.mxu0 0.0
  %134 = vmatpush2.msra.mxu0 0.0
  %135 = vmatprep.subr.mxu0 0.0
  %136 = vmatpush2.msra.mxu0 0.0
  %137 = vmatprep.subr.mxu0 0.0
  %138 = vmatpush2.msra.mxu0 0.0
  %139 = vmatprep.subr.mxu0 0.0
  %140 = vmatpush2.msra.mxu0 0.0
  %141 = vmatprep.subr.mxu0 0.0
  %142 = vmatpush2.msra.mxu0 0.0
  %143 = vmatprep.subr.mxu0 0.0
  %144 = vmatpush2.msra.mxu0 0.0
  %145 = vmatprep.subr.mxu0 0.0
  %146 = vmatpush2.msra.mxu0 0.0
  %147 = vmatprep.subr.mxu0 0.0
  %148 = vmatpush2.msra.mxu0 0.0
  %149 = vmatprep.subr.mxu0 0.0
  %150 = vmatpush2.msra.mxu0 0.0
  %151 = vmatprep.mubr.f32.mxu0 0.0
  %152 = vmatmul.mubr.f32.gmra.mxu0 %v20
  %v153 = vpop.f32.mrf.mxu0
  %v154 = vadd.f32 0.0, %v153
  %v155 = vpop.f32.mrf.mxu0
  %v156 = vadd.f32 0.0, %v155
  %157 = vdwg.mxu0
  %158 = vmatprep.subr.mxu0 %v86
  %159 = vmatpush1.msra.mxu0 %v85
  %160 = vmatprep.subr.mxu0 %v82
  %161 = vmatpush1.msra.mxu0 %v81
  %162 = vmatprep.subr.mxu0 %v78
  %163 = vmatpush1.msra.mxu0 %v77
  %164 = vmatprep.subr.mxu0 %v74
  %165 = vmatpush1.msra.mxu0 %v73
  %166 = vmatprep.subr.mxu0 %v70
  %167 = vmatpush1.msra.mxu0 %v69
  %168 = vmatprep.subr.mxu0 %v66
  %169 = vmatpush1.msra.mxu0 %v65
  %170 = vmatprep.subr.mxu0 %v62
  %171 = vmatpush1.msra.mxu0 %v61
  %172 = vmatprep.subr.mxu0 %v58
  %173 = vmatpush1.msra.mxu0 %v57
  %174 = vmatprep.subr.mxu0 %v54
  %175 = vmatpush1.msra.mxu0 %v53
  %176 = vmatprep.subr.mxu0 %v50
  %177 = vmatpush1.msra.mxu0 %v49
  %178 = vmatprep.subr.mxu0 %v46
  %179 = vmatpush1.msra.mxu0 %v45
  %180 = vmatprep.subr.mxu0 %v42
  %181 = vmatpush1.msra.mxu0 %v41
  %182 = vmatprep.subr.mxu0 %v38
  %183 = vmatpush1.msra.mxu0 %v37
  %184 = vmatprep.subr.mxu0 %v34
  %185 = vmatpush1.msra.mxu0 %v33
  %186 = vmatprep.subr.mxu0 %v30
  %187 = vmatpush1.msra.mxu0 %v29
  %188 = vmatprep.subr.mxu0 %v26
  %189 = vmatpush1.msra.mxu0 %v25
  %190 = vmatprep.subr.mxu0 0.0
  %191 = vmatpush2.msra.mxu0 0.0
  %192 = vmatprep.subr.mxu0 0.0
  %193 = vmatpush2.msra.mxu0 0.0
  %194 = vmatprep.subr.mxu0 0.0
  %195 = vmatpush2.msra.mxu0 0.0
  %196 = vmatprep.subr.mxu0 0.0
  %197 = vmatpush2.msra.mxu0 0.0
  %198 = vmatprep.subr.mxu0 0.0
  %199 = vmatpush2.msra.mxu0 0.0
  %200 = vmatprep.subr.mxu0 0.0
  %201 = vmatpush2.msra.mxu0 0.0
  %202 = vmatprep.subr.mxu0 0.0
  %203 = vmatpush2.msra.mxu0 0.0
  %204 = vmatprep.subr.mxu0 0.0
  %205 = vmatpush2.msra.mxu0 0.0
  %206 = vmatprep.subr.mxu0 0.0
  %207 = vmatpush2.msra.mxu0 0.0
  %208 = vmatprep.subr.mxu0 0.0
  %209 = vmatpush2.msra.mxu0 0.0
  %210 = vmatprep.subr.mxu0 0.0
  %211 = vmatpush2.msra.mxu0 0.0
  %212 = vmatprep.subr.mxu0 0.0
  %213 = vmatpush2.msra.mxu0 0.0
  %214 = vmatprep.subr.mxu0 0.0
  %215 = vmatpush2.msra.mxu0 0.0
  %216 = vmatprep.subr.mxu0 0.0
  %217 = vmatpush2.msra.mxu0 0.0
  %218 = vmatprep.subr.mxu0 0.0
  %219 = vmatpush2.msra.mxu0 0.0
  %220 = vmatprep.subr.mxu0 0.0
  %221 = vmatpush2.msra.mxu0 0.0
  %222 = vmatprep.mubr.f32.mxu0 0.0
  %223 = vmatmul.mubr.f32.gmra.mxu0 %v20
  %v224 = vpop.f32.mrf.mxu0
  %v225 = vadd.f32 0.0, %v224
  %v226 = vpop.f32.mrf.mxu0
  %v227 = vadd.f32 0.0, %v226
  %228 = vdwg.mxu0
  %v233 = vcombine.low %v154, %v156
  %v234 = vcombine.low %v225, %v227
  %v236 = vunpack.c.l.s4 1983009808
  %v237 = vunpack.c.0.s8 %v236
  %v238 = vlaneseq
  %v239 = vshrl.u32 %v238, 7
  %v240 = vsub.s32 %v237, %v239
  %v241 = vrot.slane %v233, %v240
  %v243 = vunpack.c.l.s4 1983009808
  %v244 = vunpack.c.0.s8 %v243
  %v245 = vlaneseq
  %v246 = vshrl.u32 %v245, 7
  %v247 = vsub.s32 %v244, %v246
  %v248 = vrot.slane %v234, %v247
  %v249 = vcombine.low %v241, %v248
  %v251 = vadd.f32 %v22, %v249
  %v252 = vxor.u32 %v251, 2147483648
  %v253 = vmul.f32 %v252, 1.442695
  %v254 = vpow.pop %v253
  %v255 = vadd.f32 %v254, 1.0
  %v256 = vrcp.pop %v255
  %v257 = vmul.f32 1.0, %v256
  %v259 = vrot.slane %v251, 2
  %v261 = vxor.u32 %v259, 2147483648
  %v262 = vmul.f32 %v261, 1.442695
  %v263 = vpow.pop %v262
  %v264 = vadd.f32 %v263, 1.0
  %v265 = vrcp.pop %v264
  %v266 = vmul.f32 1.0, %v265
  %v267 = vrot.slane %v251, 4
  %v269 = vtanh.pop %v267
  %v270 = vrot.slane %v251, 6
  %v272 = vxor.u32 %v270, 2147483648
  %v273 = vmul.f32 %v272, 1.442695
  %v274 = vpow.pop %v273
  %v275 = vadd.f32 %v274, 1.0
  %v276 = vrcp.pop %v275
  %v277 = vmul.f32 1.0, %v276
  %v278 = vmul.f32 %v266, %v21
  %v279 = vmul.f32 %v257, %v269
  %v280 = vadd.f32 %v278, %v279
  %v281 = vtanh.pop %v280
  %v282 = vmul.f32 %v277, %v281
  %283 = vst [vmem:[%s4] sm:$0x3] %v282
  %s284 = scalar_lea.vmem %s0, 8
  %v285 = vld [vmem:[%s284] sm:$0xff]
  %v286 = vld [vmem:[%s1] sm:$0xff]
  %v287 = vld [vmem:[%s1 + $0x8] sm:$0xff]
  %v288 = vld [vmem:[%s1 + $0x10] sm:$0xff]
  %v289 = vld [vmem:[%s1 + $0x18] sm:$0xff]
  %v290 = vld [vmem:[%s1 + $0x20] sm:$0xff]
  %v291 = vld [vmem:[%s1 + $0x28] sm:$0xff]
  %v292 = vld [vmem:[%s1 + $0x30] sm:$0xff]
  %v293 = vld [vmem:[%s1 + $0x38] sm:$0xff]
  %v294 = vld [vmem:[%s1 + $0x40] sm:$0xff]
  %v295 = vld [vmem:[%s1 + $0x48] sm:$0xff]
  %v296 = vld [vmem:[%s1 + $0x50] sm:$0xff]
  %v297 = vld [vmem:[%s1 + $0x58] sm:$0xff]
  %v298 = vld [vmem:[%s1 + $0x60] sm:$0xff]
  %v299 = vld [vmem:[%s1 + $0x68] sm:$0xff]
  %v300 = vld [vmem:[%s1 + $0x70] sm:$0xff]
  %v301 = vld [vmem:[%s1 + $0x78] sm:$0xff]
  %v302 = vld [vmem:[%s1 + $0x80] sm:$0xff]
  %v303 = vld [vmem:[%s1 + $0x88] sm:$0xff]
  %v304 = vld [vmem:[%s1 + $0x90] sm:$0xff]
  %v305 = vld [vmem:[%s1 + $0x98] sm:$0xff]
  %v306 = vld [vmem:[%s1 + $0xa0] sm:$0xff]
  %v307 = vld [vmem:[%s1 + $0xa8] sm:$0xff]
  %v308 = vld [vmem:[%s1 + $0xb0] sm:$0xff]
  %v309 = vld [vmem:[%s1 + $0xb8] sm:$0xff]
  %v310 = vld [vmem:[%s1 + $0xc0] sm:$0xff]
  %v311 = vld [vmem:[%s1 + $0xc8] sm:$0xff]
  %v312 = vld [vmem:[%s1 + $0xd0] sm:$0xff]
  %v313 = vld [vmem:[%s1 + $0xd8] sm:$0xff]
  %v314 = vld [vmem:[%s1 + $0xe0] sm:$0xff]
  %v315 = vld [vmem:[%s1 + $0xe8] sm:$0xff]
  %v316 = vld [vmem:[%s1 + $0xf0] sm:$0xff]
  %v317 = vld [vmem:[%s1 + $0xf8] sm:$0xff]
  %v318 = vld [vmem:[%s1 + $0x100] sm:$0xff]
  %v319 = vld [vmem:[%s1 + $0x108] sm:$0xff]
  %v320 = vld [vmem:[%s1 + $0x110] sm:$0xff]
  %v321 = vld [vmem:[%s1 + $0x118] sm:$0xff]
  %v322 = vld [vmem:[%s1 + $0x120] sm:$0xff]
  %v323 = vld [vmem:[%s1 + $0x128] sm:$0xff]
  %v324 = vld [vmem:[%s1 + $0x130] sm:$0xff]
  %v325 = vld [vmem:[%s1 + $0x138] sm:$0xff]
  %v326 = vld [vmem:[%s1 + $0x140] sm:$0xff]
  %v327 = vld [vmem:[%s1 + $0x148] sm:$0xff]
  %v328 = vld [vmem:[%s1 + $0x150] sm:$0xff]
  %v329 = vld [vmem:[%s1 + $0x158] sm:$0xff]
  %v330 = vld [vmem:[%s1 + $0x160] sm:$0xff]
  %v331 = vld [vmem:[%s1 + $0x168] sm:$0xff]
  %v332 = vld [vmem:[%s1 + $0x170] sm:$0xff]
  %v333 = vld [vmem:[%s1 + $0x178] sm:$0xff]
  %v334 = vld [vmem:[%s1 + $0x180] sm:$0xff]
  %v335 = vld [vmem:[%s1 + $0x188] sm:$0xff]
  %v336 = vld [vmem:[%s1 + $0x190] sm:$0xff]
  %v337 = vld [vmem:[%s1 + $0x198] sm:$0xff]
  %v338 = vld [vmem:[%s1 + $0x1a0] sm:$0xff]
  %v339 = vld [vmem:[%s1 + $0x1a8] sm:$0xff]
  %v340 = vld [vmem:[%s1 + $0x1b0] sm:$0xff]
  %v341 = vld [vmem:[%s1 + $0x1b8] sm:$0xff]
  %v342 = vld [vmem:[%s1 + $0x1c0] sm:$0xff]
  %v343 = vld [vmem:[%s1 + $0x1c8] sm:$0xff]
  %v344 = vld [vmem:[%s1 + $0x1d0] sm:$0xff]
  %v345 = vld [vmem:[%s1 + $0x1d8] sm:$0xff]
  %v346 = vld [vmem:[%s1 + $0x1e0] sm:$0xff]
  %v347 = vld [vmem:[%s1 + $0x1e8] sm:$0xff]
  %v348 = vld [vmem:[%s1 + $0x1f0] sm:$0xff]
  %v349 = vld [vmem:[%s1 + $0x1f8] sm:$0xff]
  %350 = vmatprep.subr.mxu0 %v347
  %351 = vmatpush1.msra.mxu0 %v346
  %352 = vmatprep.subr.mxu0 %v343
  %353 = vmatpush1.msra.mxu0 %v342
  %354 = vmatprep.subr.mxu0 %v339
  %355 = vmatpush1.msra.mxu0 %v338
  %356 = vmatprep.subr.mxu0 %v335
  %357 = vmatpush1.msra.mxu0 %v334
  %358 = vmatprep.subr.mxu0 %v331
  %359 = vmatpush1.msra.mxu0 %v330
  %360 = vmatprep.subr.mxu0 %v327
  %361 = vmatpush1.msra.mxu0 %v326
  %362 = vmatprep.subr.mxu0 %v323
  %363 = vmatpush1.msra.mxu0 %v322
  %364 = vmatprep.subr.mxu0 %v319
  %365 = vmatpush1.msra.mxu0 %v318
  %366 = vmatprep.subr.mxu0 %v315
  %367 = vmatpush1.msra.mxu0 %v314
  %368 = vmatprep.subr.mxu0 %v311
  %369 = vmatpush1.msra.mxu0 %v310
  %370 = vmatprep.subr.mxu0 %v307
  %371 = vmatpush1.msra.mxu0 %v306
  %372 = vmatprep.subr.mxu0 %v303
  %373 = vmatpush1.msra.mxu0 %v302
  %374 = vmatprep.subr.mxu0 %v299
  %375 = vmatpush1.msra.mxu0 %v298
  %376 = vmatprep.subr.mxu0 %v295
  %377 = vmatpush1.msra.mxu0 %v294
  %378 = vmatprep.subr.mxu0 %v291
  %379 = vmatpush1.msra.mxu0 %v290
  %380 = vmatprep.subr.mxu0 %v287
  %381 = vmatpush1.msra.mxu0 %v286
  %382 = vmatprep.subr.mxu0 0.0
  %383 = vmatpush2.msra.mxu0 0.0
  %384 = vmatprep.subr.mxu0 0.0
  %385 = vmatpush2.msra.mxu0 0.0
  %386 = vmatprep.subr.mxu0 0.0
  %387 = vmatpush2.msra.mxu0 0.0
  %388 = vmatprep.subr.mxu0 0.0
  %389 = vmatpush2.msra.mxu0 0.0
  %390 = vmatprep.subr.mxu0 0.0
  %391 = vmatpush2.msra.mxu0 0.0
  %392 = vmatprep.subr.mxu0 0.0
  %393 = vmatpush2.msra.mxu0 0.0
  %394 = vmatprep.subr.mxu0 0.0
  %395 = vmatpush2.msra.mxu0 0.0
  %396 = vmatprep.subr.mxu0 0.0
  %397 = vmatpush2.msra.mxu0 0.0
  %398 = vmatprep.subr.mxu0 0.0
  %399 = vmatpush2.msra.mxu0 0.0
  %400 = vmatprep.subr.mxu0 0.0
  %401 = vmatpush2.msra.mxu0 0.0
  %402 = vmatprep.subr.mxu0 0.0
  %403 = vmatpush2.msra.mxu0 0.0
  %404 = vmatprep.subr.mxu0 0.0
  %405 = vmatpush2.msra.mxu0 0.0
  %406 = vmatprep.subr.mxu0 0.0
  %407 = vmatpush2.msra.mxu0 0.0
  %408 = vmatprep.subr.mxu0 0.0
  %409 = vmatpush2.msra.mxu0 0.0
  %410 = vmatprep.subr.mxu0 0.0
  %411 = vmatpush2.msra.mxu0 0.0
  %412 = vmatprep.subr.mxu0 0.0
  %413 = vmatpush2.msra.mxu0 0.0
  %414 = vmatprep.mubr.f32.mxu0 0.0
  %415 = vmatmul.mubr.f32.gmra.mxu0 %v282
  %v416 = vpop.f32.mrf.mxu0
  %v417 = vadd.f32 0.0, %v416
  %v418 = vpop.f32.mrf.mxu0
  %v419 = vadd.f32 0.0, %v418
  %420 = vdwg.mxu0
  %421 = vmatprep.subr.mxu0 %v349
  %422 = vmatpush1.msra.mxu0 %v348
  %423 = vmatprep.subr.mxu0 %v345
  %424 = vmatpush1.msra.mxu0 %v344
  %425 = vmatprep.subr.mxu0 %v341
  %426 = vmatpush1.msra.mxu0 %v340
  %427 = vmatprep.subr.mxu0 %v337
  %428 = vmatpush1.msra.mxu0 %v336
  %429 = vmatprep.subr.mxu0 %v333
  %430 = vmatpush1.msra.mxu0 %v332
  %431 = vmatprep.subr.mxu0 %v329
  %432 = vmatpush1.msra.mxu0 %v328
  %433 = vmatprep.subr.mxu0 %v325
  %434 = vmatpush1.msra.mxu0 %v324
  %435 = vmatprep.subr.mxu0 %v321
  %436 = vmatpush1.msra.mxu0 %v320
  %437 = vmatprep.subr.mxu0 %v317
  %438 = vmatpush1.msra.mxu0 %v316
  %439 = vmatprep.subr.mxu0 %v313
  %440 = vmatpush1.msra.mxu0 %v312
  %441 = vmatprep.subr.mxu0 %v309
  %442 = vmatpush1.msra.mxu0 %v308
  %443 = vmatprep.subr.mxu0 %v305
  %444 = vmatpush1.msra.mxu0 %v304
  %445 = vmatprep.subr.mxu0 %v301
  %446 = vmatpush1.msra.mxu0 %v300
  %447 = vmatprep.subr.mxu0 %v297
  %448 = vmatpush1.msra.mxu0 %v296
  %449 = vmatprep.subr.mxu0 %v293
  %450 = vmatpush1.msra.mxu0 %v292
  %451 = vmatprep.subr.mxu0 %v289
  %452 = vmatpush1.msra.mxu0 %v288
  %453 = vmatprep.subr.mxu0 0.0
  %454 = vmatpush2.msra.mxu0 0.0
  %455 = vmatprep.subr.mxu0 0.0
  %456 = vmatpush2.msra.mxu0 0.0
  %457 = vmatprep.subr.mxu0 0.0
  %458 = vmatpush2.msra.mxu0 0.0
  %459 = vmatprep.subr.mxu0 0.0
  %460 = vmatpush2.msra.mxu0 0.0
  %461 = vmatprep.subr.mxu0 0.0
  %462 = vmatpush2.msra.mxu0 0.0
  %463 = vmatprep.subr.mxu0 0.0
  %464 = vmatpush2.msra.mxu0 0.0
  %465 = vmatprep.subr.mxu0 0.0
  %466 = vmatpush2.msra.mxu0 0.0
  %467 = vmatprep.subr.mxu0 0.0
  %468 = vmatpush2.msra.mxu0 0.0
  %469 = vmatprep.subr.mxu0 0.0
  %470 = vmatpush2.msra.mxu0 0.0
  %471 = vmatprep.subr.mxu0 0.0
  %472 = vmatpush2.msra.mxu0 0.0
  %473 = vmatprep.subr.mxu0 0.0
  %474 = vmatpush2.msra.mxu0 0.0
  %475 = vmatprep.subr.mxu0 0.0
  %476 = vmatpush2.msra.mxu0 0.0
  %477 = vmatprep.subr.mxu0 0.0
  %478 = vmatpush2.msra.mxu0 0.0
  %479 = vmatprep.subr.mxu0 0.0
  %480 = vmatpush2.msra.mxu0 0.0
  %481 = vmatprep.subr.mxu0 0.0
  %482 = vmatpush2.msra.mxu0 0.0
  %483 = vmatprep.subr.mxu0 0.0
  %484 = vmatpush2.msra.mxu0 0.0
  %485 = vmatprep.mubr.f32.mxu0 0.0
  %486 = vmatmul.mubr.f32.gmra.mxu0 %v282
  %v487 = vpop.f32.mrf.mxu0
  %v488 = vadd.f32 0.0, %v487
  %v489 = vpop.f32.mrf.mxu0
  %v490 = vadd.f32 0.0, %v489
  %491 = vdwg.mxu0
  %v496 = vcombine.low %v417, %v419
  %v497 = vcombine.low %v488, %v490
  %v499 = vunpack.c.l.s4 1983009808
  %v500 = vunpack.c.0.s8 %v499
  %v501 = vlaneseq
  %v502 = vshrl.u32 %v501, 7
  %v503 = vsub.s32 %v500, %v502
  %v504 = vrot.slane %v496, %v503
  %v506 = vunpack.c.l.s4 1983009808
  %v507 = vunpack.c.0.s8 %v506
  %v508 = vlaneseq
  %v509 = vshrl.u32 %v508, 7
  %v510 = vsub.s32 %v507, %v509
  %v511 = vrot.slane %v497, %v510
  %v512 = vcombine.low %v504, %v511
  %v514 = vadd.f32 %v285, %v512
  %v515 = vxor.u32 %v514, 2147483648
  %v516 = vmul.f32 %v515, 1.442695
  %v517 = vpow.pop %v516
  %v518 = vadd.f32 %v517, 1.0
  %v519 = vrcp.pop %v518
  %v520 = vmul.f32 1.0, %v519
  %v522 = vrot.slane %v514, 2
  %v524 = vxor.u32 %v522, 2147483648
  %v525 = vmul.f32 %v524, 1.442695
  %v526 = vpow.pop %v525
  %v527 = vadd.f32 %v526, 1.0
  %v528 = vrcp.pop %v527
  %v529 = vmul.f32 1.0, %v528
  %v530 = vrot.slane %v514, 4
  %v532 = vtanh.pop %v530
  %v533 = vrot.slane %v514, 6
  %v535 = vxor.u32 %v533, 2147483648
  %v536 = vmul.f32 %v535, 1.442695
  %v537 = vpow.pop %v536
  %v538 = vadd.f32 %v537, 1.0
  %v539 = vrcp.pop %v538
  %v540 = vmul.f32 1.0, %v539
  %v541 = vmul.f32 %v529, %v280
  %v542 = vmul.f32 %v520, %v532
  %v543 = vadd.f32 %v541, %v542
  %v544 = vtanh.pop %v543
  %v545 = vmul.f32 %v540, %v544
  %s546 = scalar_lea.vmem %s4, 2
  %547 = vst [vmem:[%s546] sm:$0x3] %v545
  %s548 = scalar_lea.vmem %s0, 16
  %v549 = vld [vmem:[%s548] sm:$0xff]
  %v550 = vld [vmem:[%s1] sm:$0xff]
  %v551 = vld [vmem:[%s1 + $0x8] sm:$0xff]
  %v552 = vld [vmem:[%s1 + $0x10] sm:$0xff]
  %v553 = vld [vmem:[%s1 + $0x18] sm:$0xff]
  %v554 = vld [vmem:[%s1 + $0x20] sm:$0xff]
  %v555 = vld [vmem:[%s1 + $0x28] sm:$0xff]
  %v556 = vld [vmem:[%s1 + $0x30] sm:$0xff]
  %v557 = vld [vmem:[%s1 + $0x38] sm:$0xff]
  %v558 = vld [vmem:[%s1 + $0x40] sm:$0xff]
  %v559 = vld [vmem:[%s1 + $0x48] sm:$0xff]
  %v560 = vld [vmem:[%s1 + $0x50] sm:$0xff]
  %v561 = vld [vmem:[%s1 + $0x58] sm:$0xff]
  %v562 = vld [vmem:[%s1 + $0x60] sm:$0xff]
  %v563 = vld [vmem:[%s1 + $0x68] sm:$0xff]
  %v564 = vld [vmem:[%s1 + $0x70] sm:$0xff]
  %v565 = vld [vmem:[%s1 + $0x78] sm:$0xff]
  %v566 = vld [vmem:[%s1 + $0x80] sm:$0xff]
  %v567 = vld [vmem:[%s1 + $0x88] sm:$0xff]
  %v568 = vld [vmem:[%s1 + $0x90] sm:$0xff]
  %v569 = vld [vmem:[%s1 + $0x98] sm:$0xff]
  %v570 = vld [vmem:[%s1 + $0xa0] sm:$0xff]
  %v571 = vld [vmem:[%s1 + $0xa8] sm:$0xff]
  %v572 = vld [vmem:[%s1 + $0xb0] sm:$0xff]
  %v573 = vld [vmem:[%s1 + $0xb8] sm:$0xff]
  %v574 = vld [vmem:[%s1 + $0xc0] sm:$0xff]
  %v575 = vld [vmem:[%s1 + $0xc8] sm:$0xff]
  %v576 = vld [vmem:[%s1 + $0xd0] sm:$0xff]
  %v577 = vld [vmem:[%s1 + $0xd8] sm:$0xff]
  %v578 = vld [vmem:[%s1 + $0xe0] sm:$0xff]
  %v579 = vld [vmem:[%s1 + $0xe8] sm:$0xff]
  %v580 = vld [vmem:[%s1 + $0xf0] sm:$0xff]
  %v581 = vld [vmem:[%s1 + $0xf8] sm:$0xff]
  %v582 = vld [vmem:[%s1 + $0x100] sm:$0xff]
  %v583 = vld [vmem:[%s1 + $0x108] sm:$0xff]
  %v584 = vld [vmem:[%s1 + $0x110] sm:$0xff]
  %v585 = vld [vmem:[%s1 + $0x118] sm:$0xff]
  %v586 = vld [vmem:[%s1 + $0x120] sm:$0xff]
  %v587 = vld [vmem:[%s1 + $0x128] sm:$0xff]
  %v588 = vld [vmem:[%s1 + $0x130] sm:$0xff]
  %v589 = vld [vmem:[%s1 + $0x138] sm:$0xff]
  %v590 = vld [vmem:[%s1 + $0x140] sm:$0xff]
  %v591 = vld [vmem:[%s1 + $0x148] sm:$0xff]
  %v592 = vld [vmem:[%s1 + $0x150] sm:$0xff]
  %v593 = vld [vmem:[%s1 + $0x158] sm:$0xff]
  %v594 = vld [vmem:[%s1 + $0x160] sm:$0xff]
  %v595 = vld [vmem:[%s1 + $0x168] sm:$0xff]
  %v596 = vld [vmem:[%s1 + $0x170] sm:$0xff]
  %v597 = vld [vmem:[%s1 + $0x178] sm:$0xff]
  %v598 = vld [vmem:[%s1 + $0x180] sm:$0xff]
  %v599 = vld [vmem:[%s1 + $0x188] sm:$0xff]
  %v600 = vld [vmem:[%s1 + $0x190] sm:$0xff]
  %v601 = vld [vmem:[%s1 + $0x198] sm:$0xff]
  %v602 = vld [vmem:[%s1 + $0x1a0] sm:$0xff]
  %v603 = vld [vmem:[%s1 + $0x1a8] sm:$0xff]
  %v604 = vld [vmem:[%s1 + $0x1b0] sm:$0xff]
  %v605 = vld [vmem:[%s1 + $0x1b8] sm:$0xff]
  %v606 = vld [vmem:[%s1 + $0x1c0] sm:$0xff]
  %v607 = vld [vmem:[%s1 + $0x1c8] sm:$0xff]
  %v608 = vld [vmem:[%s1 + $0x1d0] sm:$0xff]
  %v609 = vld [vmem:[%s1 + $0x1d8] sm:$0xff]
  %v610 = vld [vmem:[%s1 + $0x1e0] sm:$0xff]
  %v611 = vld [vmem:[%s1 + $0x1e8] sm:$0xff]
  %v612 = vld [vmem:[%s1 + $0x1f0] sm:$0xff]
  %v613 = vld [vmem:[%s1 + $0x1f8] sm:$0xff]
  %614 = vmatprep.subr.mxu0 %v611
  %615 = vmatpush1.msra.mxu0 %v610
  %616 = vmatprep.subr.mxu0 %v607
  %617 = vmatpush1.msra.mxu0 %v606
  %618 = vmatprep.subr.mxu0 %v603
  %619 = vmatpush1.msra.mxu0 %v602
  %620 = vmatprep.subr.mxu0 %v599
  %621 = vmatpush1.msra.mxu0 %v598
  %622 = vmatprep.subr.mxu0 %v595
  %623 = vmatpush1.msra.mxu0 %v594
  %624 = vmatprep.subr.mxu0 %v591
  %625 = vmatpush1.msra.mxu0 %v590
  %626 = vmatprep.subr.mxu0 %v587
  %627 = vmatpush1.msra.mxu0 %v586
  %628 = vmatprep.subr.mxu0 %v583
  %629 = vmatpush1.msra.mxu0 %v582
  %630 = vmatprep.subr.mxu0 %v579
  %631 = vmatpush1.msra.mxu0 %v578
  %632 = vmatprep.subr.mxu0 %v575
  %633 = vmatpush1.msra.mxu0 %v574
  %634 = vmatprep.subr.mxu0 %v571
  %635 = vmatpush1.msra.mxu0 %v570
  %636 = vmatprep.subr.mxu0 %v567
  %637 = vmatpush1.msra.mxu0 %v566
  %638 = vmatprep.subr.mxu0 %v563
  %639 = vmatpush1.msra.mxu0 %v562
  %640 = vmatprep.subr.mxu0 %v559
  %641 = vmatpush1.msra.mxu0 %v558
  %642 = vmatprep.subr.mxu0 %v555
  %643 = vmatpush1.msra.mxu0 %v554
  %644 = vmatprep.subr.mxu0 %v551
  %645 = vmatpush1.msra.mxu0 %v550
  %646 = vmatprep.subr.mxu0 0.0
  %647 = vmatpush2.msra.mxu0 0.0
  %648 = vmatprep.subr.mxu0 0.0
  %649 = vmatpush2.msra.mxu0 0.0
  %650 = vmatprep.subr.mxu0 0.0
  %651 = vmatpush2.msra.mxu0 0.0
  %652 = vmatprep.subr.mxu0 0.0
  %653 = vmatpush2.msra.mxu0 0.0
  %654 = vmatprep.subr.mxu0 0.0
  %655 = vmatpush2.msra.mxu0 0.0
  %656 = vmatprep.subr.mxu0 0.0
  %657 = vmatpush2.msra.mxu0 0.0
  %658 = vmatprep.subr.mxu0 0.0
  %659 = vmatpush2.msra.mxu0 0.0
  %660 = vmatprep.subr.mxu0 0.0
  %661 = vmatpush2.msra.mxu0 0.0
  %662 = vmatprep.subr.mxu0 0.0
  %663 = vmatpush2.msra.mxu0 0.0
  %664 = vmatprep.subr.mxu0 0.0
  %665 = vmatpush2.msra.mxu0 0.0
  %666 = vmatprep.subr.mxu0 0.0
  %667 = vmatpush2.msra.mxu0 0.0
  %668 = vmatprep.subr.mxu0 0.0
  %669 = vmatpush2.msra.mxu0 0.0
  %670 = vmatprep.subr.mxu0 0.0
  %671 = vmatpush2.msra.mxu0 0.0
  %672 = vmatprep.subr.mxu0 0.0
  %673 = vmatpush2.msra.mxu0 0.0
  %674 = vmatprep.subr.mxu0 0.0
  %675 = vmatpush2.msra.mxu0 0.0
  %676 = vmatprep.subr.mxu0 0.0
  %677 = vmatpush2.msra.mxu0 0.0
  %678 = vmatprep.mubr.f32.mxu0 0.0
  %679 = vmatmul.mubr.f32.gmra.mxu0 %v545
  %v680 = vpop.f32.mrf.mxu0
  %v681 = vadd.f32 0.0, %v680
  %v682 = vpop.f32.mrf.mxu0
  %v683 = vadd.f32 0.0, %v682
  %684 = vdwg.mxu0
  %685 = vmatprep.subr.mxu0 %v613
  %686 = vmatpush1.msra.mxu0 %v612
  %687 = vmatprep.subr.mxu0 %v609
  %688 = vmatpush1.msra.mxu0 %v608
  %689 = vmatprep.subr.mxu0 %v605
  %690 = vmatpush1.msra.mxu0 %v604
  %691 = vmatprep.subr.mxu0 %v601
  %692 = vmatpush1.msra.mxu0 %v600
  %693 = vmatprep.subr.mxu0 %v597
  %694 = vmatpush1.msra.mxu0 %v596
  %695 = vmatprep.subr.mxu0 %v593
  %696 = vmatpush1.msra.mxu0 %v592
  %697 = vmatprep.subr.mxu0 %v589
  %698 = vmatpush1.msra.mxu0 %v588
  %699 = vmatprep.subr.mxu0 %v585
  %700 = vmatpush1.msra.mxu0 %v584
  %701 = vmatprep.subr.mxu0 %v581
  %702 = vmatpush1.msra.mxu0 %v580
  %703 = vmatprep.subr.mxu0 %v577
  %704 = vmatpush1.msra.mxu0 %v576
  %705 = vmatprep.subr.mxu0 %v573
  %706 = vmatpush1.msra.mxu0 %v572
  %707 = vmatprep.subr.mxu0 %v569
  %708 = vmatpush1.msra.mxu0 %v568
  %709 = vmatprep.subr.mxu0 %v565
  %710 = vmatpush1.msra.mxu0 %v564
  %711 = vmatprep.subr.mxu0 %v561
  %712 = vmatpush1.msra.mxu0 %v560
  %713 = vmatprep.subr.mxu0 %v557
  %714 = vmatpush1.msra.mxu0 %v556
  %715 = vmatprep.subr.mxu0 %v553
  %716 = vmatpush1.msra.mxu0 %v552
  %717 = vmatprep.subr.mxu0 0.0
  %718 = vmatpush2.msra.mxu0 0.0
  %719 = vmatprep.subr.mxu0 0.0
  %720 = vmatpush2.msra.mxu0 0.0
  %721 = vmatprep.subr.mxu0 0.0
  %722 = vmatpush2.msra.mxu0 0.0
  %723 = vmatprep.subr.mxu0 0.0
  %724 = vmatpush2.msra.mxu0 0.0
  %725 = vmatprep.subr.mxu0 0.0
  %726 = vmatpush2.msra.mxu0 0.0
  %727 = vmatprep.subr.mxu0 0.0
  %728 = vmatpush2.msra.mxu0 0.0
  %729 = vmatprep.subr.mxu0 0.0
  %730 = vmatpush2.msra.mxu0 0.0
  %731 = vmatprep.subr.mxu0 0.0
  %732 = vmatpush2.msra.mxu0 0.0
  %733 = vmatprep.subr.mxu0 0.0
  %734 = vmatpush2.msra.mxu0 0.0
  %735 = vmatprep.subr.mxu0 0.0
  %736 = vmatpush2.msra.mxu0 0.0
  %737 = vmatprep.subr.mxu0 0.0
  %738 = vmatpush2.msra.mxu0 0.0
  %739 = vmatprep.subr.mxu0 0.0
  %740 = vmatpush2.msra.mxu0 0.0
  %741 = vmatprep.subr.mxu0 0.0
  %742 = vmatpush2.msra.mxu0 0.0
  %743 = vmatprep.subr.mxu0 0.0
  %744 = vmatpush2.msra.mxu0 0.0
  %745 = vmatprep.subr.mxu0 0.0
  %746 = vmatpush2.msra.mxu0 0.0
  %747 = vmatprep.subr.mxu0 0.0
  %748 = vmatpush2.msra.mxu0 0.0
  %749 = vmatprep.mubr.f32.mxu0 0.0
  %750 = vmatmul.mubr.f32.gmra.mxu0 %v545
  %v751 = vpop.f32.mrf.mxu0
  %v752 = vadd.f32 0.0, %v751
  %v753 = vpop.f32.mrf.mxu0
  %v754 = vadd.f32 0.0, %v753
  %755 = vdwg.mxu0
  %v760 = vcombine.low %v681, %v683
  %v761 = vcombine.low %v752, %v754
  %v763 = vunpack.c.l.s4 1983009808
  %v764 = vunpack.c.0.s8 %v763
  %v765 = vlaneseq
  %v766 = vshrl.u32 %v765, 7
  %v767 = vsub.s32 %v764, %v766
  %v768 = vrot.slane %v760, %v767
  %v770 = vunpack.c.l.s4 1983009808
  %v771 = vunpack.c.0.s8 %v770
  %v772 = vlaneseq
  %v773 = vshrl.u32 %v772, 7
  %v774 = vsub.s32 %v771, %v773
  %v775 = vrot.slane %v761, %v774
  %v776 = vcombine.low %v768, %v775
  %v778 = vadd.f32 %v549, %v776
  %v779 = vxor.u32 %v778, 2147483648
  %v780 = vmul.f32 %v779, 1.442695
  %v781 = vpow.pop %v780
  %v782 = vadd.f32 %v781, 1.0
  %v783 = vrcp.pop %v782
  %v784 = vmul.f32 1.0, %v783
  %v786 = vrot.slane %v778, 2
  %v788 = vxor.u32 %v786, 2147483648
  %v789 = vmul.f32 %v788, 1.442695
  %v790 = vpow.pop %v789
  %v791 = vadd.f32 %v790, 1.0
  %v792 = vrcp.pop %v791
  %v793 = vmul.f32 1.0, %v792
  %v794 = vrot.slane %v778, 4
  %v796 = vtanh.pop %v794
  %v797 = vrot.slane %v778, 6
  %v799 = vxor.u32 %v797, 2147483648
  %v800 = vmul.f32 %v799, 1.442695
  %v801 = vpow.pop %v800
  %v802 = vadd.f32 %v801, 1.0
  %v803 = vrcp.pop %v802
  %v804 = vmul.f32 1.0, %v803
  %v805 = vmul.f32 %v793, %v543
  %v806 = vmul.f32 %v784, %v796
  %v807 = vadd.f32 %v805, %v806
  %v808 = vtanh.pop %v807
  %v809 = vmul.f32 %v804, %v808
  %s810 = scalar_lea.vmem %s4, 4
  %811 = vst [vmem:[%s810] sm:$0x3] %v809
  %s812 = scalar_lea.vmem %s0, 24
  %v813 = vld [vmem:[%s812] sm:$0xff]
  %v814 = vld [vmem:[%s1] sm:$0xff]
  %v815 = vld [vmem:[%s1 + $0x8] sm:$0xff]
  %v816 = vld [vmem:[%s1 + $0x10] sm:$0xff]
  %v817 = vld [vmem:[%s1 + $0x18] sm:$0xff]
  %v818 = vld [vmem:[%s1 + $0x20] sm:$0xff]
  %v819 = vld [vmem:[%s1 + $0x28] sm:$0xff]
  %v820 = vld [vmem:[%s1 + $0x30] sm:$0xff]
  %v821 = vld [vmem:[%s1 + $0x38] sm:$0xff]
  %v822 = vld [vmem:[%s1 + $0x40] sm:$0xff]
  %v823 = vld [vmem:[%s1 + $0x48] sm:$0xff]
  %v824 = vld [vmem:[%s1 + $0x50] sm:$0xff]
  %v825 = vld [vmem:[%s1 + $0x58] sm:$0xff]
  %v826 = vld [vmem:[%s1 + $0x60] sm:$0xff]
  %v827 = vld [vmem:[%s1 + $0x68] sm:$0xff]
  %v828 = vld [vmem:[%s1 + $0x70] sm:$0xff]
  %v829 = vld [vmem:[%s1 + $0x78] sm:$0xff]
  %v830 = vld [vmem:[%s1 + $0x80] sm:$0xff]
  %v831 = vld [vmem:[%s1 + $0x88] sm:$0xff]
  %v832 = vld [vmem:[%s1 + $0x90] sm:$0xff]
  %v833 = vld [vmem:[%s1 + $0x98] sm:$0xff]
  %v834 = vld [vmem:[%s1 + $0xa0] sm:$0xff]
  %v835 = vld [vmem:[%s1 + $0xa8] sm:$0xff]
  %v836 = vld [vmem:[%s1 + $0xb0] sm:$0xff]
  %v837 = vld [vmem:[%s1 + $0xb8] sm:$0xff]
  %v838 = vld [vmem:[%s1 + $0xc0] sm:$0xff]
  %v839 = vld [vmem:[%s1 + $0xc8] sm:$0xff]
  %v840 = vld [vmem:[%s1 + $0xd0] sm:$0xff]
  %v841 = vld [vmem:[%s1 + $0xd8] sm:$0xff]
  %v842 = vld [vmem:[%s1 + $0xe0] sm:$0xff]
  %v843 = vld [vmem:[%s1 + $0xe8] sm:$0xff]
  %v844 = vld [vmem:[%s1 + $0xf0] sm:$0xff]
  %v845 = vld [vmem:[%s1 + $0xf8] sm:$0xff]
  %v846 = vld [vmem:[%s1 + $0x100] sm:$0xff]
  %v847 = vld [vmem:[%s1 + $0x108] sm:$0xff]
  %v848 = vld [vmem:[%s1 + $0x110] sm:$0xff]
  %v849 = vld [vmem:[%s1 + $0x118] sm:$0xff]
  %v850 = vld [vmem:[%s1 + $0x120] sm:$0xff]
  %v851 = vld [vmem:[%s1 + $0x128] sm:$0xff]
  %v852 = vld [vmem:[%s1 + $0x130] sm:$0xff]
  %v853 = vld [vmem:[%s1 + $0x138] sm:$0xff]
  %v854 = vld [vmem:[%s1 + $0x140] sm:$0xff]
  %v855 = vld [vmem:[%s1 + $0x148] sm:$0xff]
  %v856 = vld [vmem:[%s1 + $0x150] sm:$0xff]
  %v857 = vld [vmem:[%s1 + $0x158] sm:$0xff]
  %v858 = vld [vmem:[%s1 + $0x160] sm:$0xff]
  %v859 = vld [vmem:[%s1 + $0x168] sm:$0xff]
  %v860 = vld [vmem:[%s1 + $0x170] sm:$0xff]
  %v861 = vld [vmem:[%s1 + $0x178] sm:$0xff]
  %v862 = vld [vmem:[%s1 + $0x180] sm:$0xff]
  %v863 = vld [vmem:[%s1 + $0x188] sm:$0xff]
  %v864 = vld [vmem:[%s1 + $0x190] sm:$0xff]
  %v865 = vld [vmem:[%s1 + $0x198] sm:$0xff]
  %v866 = vld [vmem:[%s1 + $0x1a0] sm:$0xff]
  %v867 = vld [vmem:[%s1 + $0x1a8] sm:$0xff]
  %v868 = vld [vmem:[%s1 + $0x1b0] sm:$0xff]
  %v869 = vld [vmem:[%s1 + $0x1b8] sm:$0xff]
  %v870 = vld [vmem:[%s1 + $0x1c0] sm:$0xff]
  %v871 = vld [vmem:[%s1 + $0x1c8] sm:$0xff]
  %v872 = vld [vmem:[%s1 + $0x1d0] sm:$0xff]
  %v873 = vld [vmem:[%s1 + $0x1d8] sm:$0xff]
  %v874 = vld [vmem:[%s1 + $0x1e0] sm:$0xff]
  %v875 = vld [vmem:[%s1 + $0x1e8] sm:$0xff]
  %v876 = vld [vmem:[%s1 + $0x1f0] sm:$0xff]
  %v877 = vld [vmem:[%s1 + $0x1f8] sm:$0xff]
  %878 = vmatprep.subr.mxu0 %v875
  %879 = vmatpush1.msra.mxu0 %v874
  %880 = vmatprep.subr.mxu0 %v871
  %881 = vmatpush1.msra.mxu0 %v870
  %882 = vmatprep.subr.mxu0 %v867
  %883 = vmatpush1.msra.mxu0 %v866
  %884 = vmatprep.subr.mxu0 %v863
  %885 = vmatpush1.msra.mxu0 %v862
  %886 = vmatprep.subr.mxu0 %v859
  %887 = vmatpush1.msra.mxu0 %v858
  %888 = vmatprep.subr.mxu0 %v855
  %889 = vmatpush1.msra.mxu0 %v854
  %890 = vmatprep.subr.mxu0 %v851
  %891 = vmatpush1.msra.mxu0 %v850
  %892 = vmatprep.subr.mxu0 %v847
  %893 = vmatpush1.msra.mxu0 %v846
  %894 = vmatprep.subr.mxu0 %v843
  %895 = vmatpush1.msra.mxu0 %v842
  %896 = vmatprep.subr.mxu0 %v839
  %897 = vmatpush1.msra.mxu0 %v838
  %898 = vmatprep.subr.mxu0 %v835
  %899 = vmatpush1.msra.mxu0 %v834
  %900 = vmatprep.subr.mxu0 %v831
  %901 = vmatpush1.msra.mxu0 %v830
  %902 = vmatprep.subr.mxu0 %v827
  %903 = vmatpush1.msra.mxu0 %v826
  %904 = vmatprep.subr.mxu0 %v823
  %905 = vmatpush1.msra.mxu0 %v822
  %906 = vmatprep.subr.mxu0 %v819
  %907 = vmatpush1.msra.mxu0 %v818
  %908 = vmatprep.subr.mxu0 %v815
  %909 = vmatpush1.msra.mxu0 %v814
  %910 = vmatprep.subr.mxu0 0.0
  %911 = vmatpush2.msra.mxu0 0.0
  %912 = vmatprep.subr.mxu0 0.0
  %913 = vmatpush2.msra.mxu0 0.0
  %914 = vmatprep.subr.mxu0 0.0
  %915 = vmatpush2.msra.mxu0 0.0
  %916 = vmatprep.subr.mxu0 0.0
  %917 = vmatpush2.msra.mxu0 0.0
  %918 = vmatprep.subr.mxu0 0.0
  %919 = vmatpush2.msra.mxu0 0.0
  %920 = vmatprep.subr.mxu0 0.0
  %921 = vmatpush2.msra.mxu0 0.0
  %922 = vmatprep.subr.mxu0 0.0
  %923 = vmatpush2.msra.mxu0 0.0
  %924 = vmatprep.subr.mxu0 0.0
  %925 = vmatpush2.msra.mxu0 0.0
  %926 = vmatprep.subr.mxu0 0.0
  %927 = vmatpush2.msra.mxu0 0.0
  %928 = vmatprep.subr.mxu0 0.0
  %929 = vmatpush2.msra.mxu0 0.0
  %930 = vmatprep.subr.mxu0 0.0
  %931 = vmatpush2.msra.mxu0 0.0
  %932 = vmatprep.subr.mxu0 0.0
  %933 = vmatpush2.msra.mxu0 0.0
  %934 = vmatprep.subr.mxu0 0.0
  %935 = vmatpush2.msra.mxu0 0.0
  %936 = vmatprep.subr.mxu0 0.0
  %937 = vmatpush2.msra.mxu0 0.0
  %938 = vmatprep.subr.mxu0 0.0
  %939 = vmatpush2.msra.mxu0 0.0
  %940 = vmatprep.subr.mxu0 0.0
  %941 = vmatpush2.msra.mxu0 0.0
  %942 = vmatprep.mubr.f32.mxu0 0.0
  %943 = vmatmul.mubr.f32.gmra.mxu0 %v809
  %v944 = vpop.f32.mrf.mxu0
  %v945 = vadd.f32 0.0, %v944
  %v946 = vpop.f32.mrf.mxu0
  %v947 = vadd.f32 0.0, %v946
  %948 = vdwg.mxu0
  %949 = vmatprep.subr.mxu0 %v877
  %950 = vmatpush1.msra.mxu0 %v876
  %951 = vmatprep.subr.mxu0 %v873
  %952 = vmatpush1.msra.mxu0 %v872
  %953 = vmatprep.subr.mxu0 %v869
  %954 = vmatpush1.msra.mxu0 %v868
  %955 = vmatprep.subr.mxu0 %v865
  %956 = vmatpush1.msra.mxu0 %v864
  %957 = vmatprep.subr.mxu0 %v861
  %958 = vmatpush1.msra.mxu0 %v860
  %959 = vmatprep.subr.mxu0 %v857
  %960 = vmatpush1.msra.mxu0 %v856
  %961 = vmatprep.subr.mxu0 %v853
  %962 = vmatpush1.msra.mxu0 %v852
  %963 = vmatprep.subr.mxu0 %v849
  %964 = vmatpush1.msra.mxu0 %v848
  %965 = vmatprep.subr.mxu0 %v845
  %966 = vmatpush1.msra.mxu0 %v844
  %967 = vmatprep.subr.mxu0 %v841
  %968 = vmatpush1.msra.mxu0 %v840
  %969 = vmatprep.subr.mxu0 %v837
  %970 = vmatpush1.msra.mxu0 %v836
  %971 = vmatprep.subr.mxu0 %v833
  %972 = vmatpush1.msra.mxu0 %v832
  %973 = vmatprep.subr.mxu0 %v829
  %974 = vmatpush1.msra.mxu0 %v828
  %975 = vmatprep.subr.mxu0 %v825
  %976 = vmatpush1.msra.mxu0 %v824
  %977 = vmatprep.subr.mxu0 %v821
  %978 = vmatpush1.msra.mxu0 %v820
  %979 = vmatprep.subr.mxu0 %v817
  %980 = vmatpush1.msra.mxu0 %v816
  %981 = vmatprep.subr.mxu0 0.0
  %982 = vmatpush2.msra.mxu0 0.0
  %983 = vmatprep.subr.mxu0 0.0
  %984 = vmatpush2.msra.mxu0 0.0
  %985 = vmatprep.subr.mxu0 0.0
  %986 = vmatpush2.msra.mxu0 0.0
  %987 = vmatprep.subr.mxu0 0.0
  %988 = vmatpush2.msra.mxu0 0.0
  %989 = vmatprep.subr.mxu0 0.0
  %990 = vmatpush2.msra.mxu0 0.0
  %991 = vmatprep.subr.mxu0 0.0
  %992 = vmatpush2.msra.mxu0 0.0
  %993 = vmatprep.subr.mxu0 0.0
  %994 = vmatpush2.msra.mxu0 0.0
  %995 = vmatprep.subr.mxu0 0.0
  %996 = vmatpush2.msra.mxu0 0.0
  %997 = vmatprep.subr.mxu0 0.0
  %998 = vmatpush2.msra.mxu0 0.0
  %999 = vmatprep.subr.mxu0 0.0
  %1000 = vmatpush2.msra.mxu0 0.0
  %1001 = vmatprep.subr.mxu0 0.0
  %1002 = vmatpush2.msra.mxu0 0.0
  %1003 = vmatprep.subr.mxu0 0.0
  %1004 = vmatpush2.msra.mxu0 0.0
  %1005 = vmatprep.subr.mxu0 0.0
  %1006 = vmatpush2.msra.mxu0 0.0
  %1007 = vmatprep.subr.mxu0 0.0
  %1008 = vmatpush2.msra.mxu0 0.0
  %1009 = vmatprep.subr.mxu0 0.0
  %1010 = vmatpush2.msra.mxu0 0.0
  %1011 = vmatprep.subr.mxu0 0.0
  %1012 = vmatpush2.msra.mxu0 0.0
  %1013 = vmatprep.mubr.f32.mxu0 0.0
  %1014 = vmatmul.mubr.f32.gmra.mxu0 %v809
  %v1015 = vpop.f32.mrf.mxu0
  %v1016 = vadd.f32 0.0, %v1015
  %v1017 = vpop.f32.mrf.mxu0
  %v1018 = vadd.f32 0.0, %v1017
  %1019 = vdwg.mxu0
  %v1024 = vcombine.low %v945, %v947
  %v1025 = vcombine.low %v1016, %v1018
  %v1027 = vunpack.c.l.s4 1983009808
  %v1028 = vunpack.c.0.s8 %v1027
  %v1029 = vlaneseq
  %v1030 = vshrl.u32 %v1029, 7
  %v1031 = vsub.s32 %v1028, %v1030
  %v1032 = vrot.slane %v1024, %v1031
  %v1034 = vunpack.c.l.s4 1983009808
  %v1035 = vunpack.c.0.s8 %v1034
  %v1036 = vlaneseq
  %v1037 = vshrl.u32 %v1036, 7
  %v1038 = vsub.s32 %v1035, %v1037
  %v1039 = vrot.slane %v1025, %v1038
  %v1040 = vcombine.low %v1032, %v1039
  %v1042 = vadd.f32 %v813, %v1040
  %v1043 = vxor.u32 %v1042, 2147483648
  %v1044 = vmul.f32 %v1043, 1.442695
  %v1045 = vpow.pop %v1044
  %v1046 = vadd.f32 %v1045, 1.0
  %v1047 = vrcp.pop %v1046
  %v1048 = vmul.f32 1.0, %v1047
  %v1050 = vrot.slane %v1042, 2
  %v1052 = vxor.u32 %v1050, 2147483648
  %v1053 = vmul.f32 %v1052, 1.442695
  %v1054 = vpow.pop %v1053
  %v1055 = vadd.f32 %v1054, 1.0
  %v1056 = vrcp.pop %v1055
  %v1057 = vmul.f32 1.0, %v1056
  %v1058 = vrot.slane %v1042, 4
  %v1060 = vtanh.pop %v1058
  %v1061 = vrot.slane %v1042, 6
  %v1063 = vxor.u32 %v1061, 2147483648
  %v1064 = vmul.f32 %v1063, 1.442695
  %v1065 = vpow.pop %v1064
  %v1066 = vadd.f32 %v1065, 1.0
  %v1067 = vrcp.pop %v1066
  %v1068 = vmul.f32 1.0, %v1067
  %v1069 = vmul.f32 %v1057, %v807
  %v1070 = vmul.f32 %v1048, %v1060
  %v1071 = vadd.f32 %v1069, %v1070
  %v1072 = vtanh.pop %v1071
  %v1073 = vmul.f32 %v1068, %v1072
  %s1074 = scalar_lea.vmem %s4, 6
  %1075 = vst [vmem:[%s1074] sm:$0x3] %v1073
  %s1076 = scalar_lea.vmem %s0, 32
  %v1077 = vld [vmem:[%s1076] sm:$0xff]
  %v1078 = vld [vmem:[%s1] sm:$0xff]
  %v1079 = vld [vmem:[%s1 + $0x8] sm:$0xff]
  %v1080 = vld [vmem:[%s1 + $0x10] sm:$0xff]
  %v1081 = vld [vmem:[%s1 + $0x18] sm:$0xff]
  %v1082 = vld [vmem:[%s1 + $0x20] sm:$0xff]
  %v1083 = vld [vmem:[%s1 + $0x28] sm:$0xff]
  %v1084 = vld [vmem:[%s1 + $0x30] sm:$0xff]
  %v1085 = vld [vmem:[%s1 + $0x38] sm:$0xff]
  %v1086 = vld [vmem:[%s1 + $0x40] sm:$0xff]
  %v1087 = vld [vmem:[%s1 + $0x48] sm:$0xff]
  %v1088 = vld [vmem:[%s1 + $0x50] sm:$0xff]
  %v1089 = vld [vmem:[%s1 + $0x58] sm:$0xff]
  %v1090 = vld [vmem:[%s1 + $0x60] sm:$0xff]
  %v1091 = vld [vmem:[%s1 + $0x68] sm:$0xff]
  %v1092 = vld [vmem:[%s1 + $0x70] sm:$0xff]
  %v1093 = vld [vmem:[%s1 + $0x78] sm:$0xff]
  %v1094 = vld [vmem:[%s1 + $0x80] sm:$0xff]
  %v1095 = vld [vmem:[%s1 + $0x88] sm:$0xff]
  %v1096 = vld [vmem:[%s1 + $0x90] sm:$0xff]
  %v1097 = vld [vmem:[%s1 + $0x98] sm:$0xff]
  %v1098 = vld [vmem:[%s1 + $0xa0] sm:$0xff]
  %v1099 = vld [vmem:[%s1 + $0xa8] sm:$0xff]
  %v1100 = vld [vmem:[%s1 + $0xb0] sm:$0xff]
  %v1101 = vld [vmem:[%s1 + $0xb8] sm:$0xff]
  %v1102 = vld [vmem:[%s1 + $0xc0] sm:$0xff]
  %v1103 = vld [vmem:[%s1 + $0xc8] sm:$0xff]
  %v1104 = vld [vmem:[%s1 + $0xd0] sm:$0xff]
  %v1105 = vld [vmem:[%s1 + $0xd8] sm:$0xff]
  %v1106 = vld [vmem:[%s1 + $0xe0] sm:$0xff]
  %v1107 = vld [vmem:[%s1 + $0xe8] sm:$0xff]
  %v1108 = vld [vmem:[%s1 + $0xf0] sm:$0xff]
  %v1109 = vld [vmem:[%s1 + $0xf8] sm:$0xff]
  %v1110 = vld [vmem:[%s1 + $0x100] sm:$0xff]
  %v1111 = vld [vmem:[%s1 + $0x108] sm:$0xff]
  %v1112 = vld [vmem:[%s1 + $0x110] sm:$0xff]
  %v1113 = vld [vmem:[%s1 + $0x118] sm:$0xff]
  %v1114 = vld [vmem:[%s1 + $0x120] sm:$0xff]
  %v1115 = vld [vmem:[%s1 + $0x128] sm:$0xff]
  %v1116 = vld [vmem:[%s1 + $0x130] sm:$0xff]
  %v1117 = vld [vmem:[%s1 + $0x138] sm:$0xff]
  %v1118 = vld [vmem:[%s1 + $0x140] sm:$0xff]
  %v1119 = vld [vmem:[%s1 + $0x148] sm:$0xff]
  %v1120 = vld [vmem:[%s1 + $0x150] sm:$0xff]
  %v1121 = vld [vmem:[%s1 + $0x158] sm:$0xff]
  %v1122 = vld [vmem:[%s1 + $0x160] sm:$0xff]
  %v1123 = vld [vmem:[%s1 + $0x168] sm:$0xff]
  %v1124 = vld [vmem:[%s1 + $0x170] sm:$0xff]
  %v1125 = vld [vmem:[%s1 + $0x178] sm:$0xff]
  %v1126 = vld [vmem:[%s1 + $0x180] sm:$0xff]
  %v1127 = vld [vmem:[%s1 + $0x188] sm:$0xff]
  %v1128 = vld [vmem:[%s1 + $0x190] sm:$0xff]
  %v1129 = vld [vmem:[%s1 + $0x198] sm:$0xff]
  %v1130 = vld [vmem:[%s1 + $0x1a0] sm:$0xff]
  %v1131 = vld [vmem:[%s1 + $0x1a8] sm:$0xff]
  %v1132 = vld [vmem:[%s1 + $0x1b0] sm:$0xff]
  %v1133 = vld [vmem:[%s1 + $0x1b8] sm:$0xff]
  %v1134 = vld [vmem:[%s1 + $0x1c0] sm:$0xff]
  %v1135 = vld [vmem:[%s1 + $0x1c8] sm:$0xff]
  %v1136 = vld [vmem:[%s1 + $0x1d0] sm:$0xff]
  %v1137 = vld [vmem:[%s1 + $0x1d8] sm:$0xff]
  %v1138 = vld [vmem:[%s1 + $0x1e0] sm:$0xff]
  %v1139 = vld [vmem:[%s1 + $0x1e8] sm:$0xff]
  %v1140 = vld [vmem:[%s1 + $0x1f0] sm:$0xff]
  %v1141 = vld [vmem:[%s1 + $0x1f8] sm:$0xff]
  %1142 = vmatprep.subr.mxu0 %v1139
  %1143 = vmatpush1.msra.mxu0 %v1138
  %1144 = vmatprep.subr.mxu0 %v1135
  %1145 = vmatpush1.msra.mxu0 %v1134
  %1146 = vmatprep.subr.mxu0 %v1131
  %1147 = vmatpush1.msra.mxu0 %v1130
  %1148 = vmatprep.subr.mxu0 %v1127
  %1149 = vmatpush1.msra.mxu0 %v1126
  %1150 = vmatprep.subr.mxu0 %v1123
  %1151 = vmatpush1.msra.mxu0 %v1122
  %1152 = vmatprep.subr.mxu0 %v1119
  %1153 = vmatpush1.msra.mxu0 %v1118
  %1154 = vmatprep.subr.mxu0 %v1115
  %1155 = vmatpush1.msra.mxu0 %v1114
  %1156 = vmatprep.subr.mxu0 %v1111
  %1157 = vmatpush1.msra.mxu0 %v1110
  %1158 = vmatprep.subr.mxu0 %v1107
  %1159 = vmatpush1.msra.mxu0 %v1106
  %1160 = vmatprep.subr.mxu0 %v1103
  %1161 = vmatpush1.msra.mxu0 %v1102
  %1162 = vmatprep.subr.mxu0 %v1099
  %1163 = vmatpush1.msra.mxu0 %v1098
  %1164 = vmatprep.subr.mxu0 %v1095
  %1165 = vmatpush1.msra.mxu0 %v1094
  %1166 = vmatprep.subr.mxu0 %v1091
  %1167 = vmatpush1.msra.mxu0 %v1090
  %1168 = vmatprep.subr.mxu0 %v1087
  %1169 = vmatpush1.msra.mxu0 %v1086
  %1170 = vmatprep.subr.mxu0 %v1083
  %1171 = vmatpush1.msra.mxu0 %v1082
  %1172 = vmatprep.subr.mxu0 %v1079
  %1173 = vmatpush1.msra.mxu0 %v1078
  %1174 = vmatprep.subr.mxu0 0.0
  %1175 = vmatpush2.msra.mxu0 0.0
  %1176 = vmatprep.subr.mxu0 0.0
  %1177 = vmatpush2.msra.mxu0 0.0
  %1178 = vmatprep.subr.mxu0 0.0
  %1179 = vmatpush2.msra.mxu0 0.0
  %1180 = vmatprep.subr.mxu0 0.0
  %1181 = vmatpush2.msra.mxu0 0.0
  %1182 = vmatprep.subr.mxu0 0.0
  %1183 = vmatpush2.msra.mxu0 0.0
  %1184 = vmatprep.subr.mxu0 0.0
  %1185 = vmatpush2.msra.mxu0 0.0
  %1186 = vmatprep.subr.mxu0 0.0
  %1187 = vmatpush2.msra.mxu0 0.0
  %1188 = vmatprep.subr.mxu0 0.0
  %1189 = vmatpush2.msra.mxu0 0.0
  %1190 = vmatprep.subr.mxu0 0.0
  %1191 = vmatpush2.msra.mxu0 0.0
  %1192 = vmatprep.subr.mxu0 0.0
  %1193 = vmatpush2.msra.mxu0 0.0
  %1194 = vmatprep.subr.mxu0 0.0
  %1195 = vmatpush2.msra.mxu0 0.0
  %1196 = vmatprep.subr.mxu0 0.0
  %1197 = vmatpush2.msra.mxu0 0.0
  %1198 = vmatprep.subr.mxu0 0.0
  %1199 = vmatpush2.msra.mxu0 0.0
  %1200 = vmatprep.subr.mxu0 0.0
  %1201 = vmatpush2.msra.mxu0 0.0
  %1202 = vmatprep.subr.mxu0 0.0
  %1203 = vmatpush2.msra.mxu0 0.0
  %1204 = vmatprep.subr.mxu0 0.0
  %1205 = vmatpush2.msra.mxu0 0.0
  %1206 = vmatprep.mubr.f32.mxu0 0.0
  %1207 = vmatmul.mubr.f32.gmra.mxu0 %v1073
  %v1208 = vpop.f32.mrf.mxu0
  %v1209 = vadd.f32 0.0, %v1208
  %v1210 = vpop.f32.mrf.mxu0
  %v1211 = vadd.f32 0.0, %v1210
  %1212 = vdwg.mxu0
  %1213 = vmatprep.subr.mxu0 %v1141
  %1214 = vmatpush1.msra.mxu0 %v1140
  %1215 = vmatprep.subr.mxu0 %v1137
  %1216 = vmatpush1.msra.mxu0 %v1136
  %1217 = vmatprep.subr.mxu0 %v1133
  %1218 = vmatpush1.msra.mxu0 %v1132
  %1219 = vmatprep.subr.mxu0 %v1129
  %1220 = vmatpush1.msra.mxu0 %v1128
  %1221 = vmatprep.subr.mxu0 %v1125
  %1222 = vmatpush1.msra.mxu0 %v1124
  %1223 = vmatprep.subr.mxu0 %v1121
  %1224 = vmatpush1.msra.mxu0 %v1120
  %1225 = vmatprep.subr.mxu0 %v1117
  %1226 = vmatpush1.msra.mxu0 %v1116
  %1227 = vmatprep.subr.mxu0 %v1113
  %1228 = vmatpush1.msra.mxu0 %v1112
  %1229 = vmatprep.subr.mxu0 %v1109
  %1230 = vmatpush1.msra.mxu0 %v1108
  %1231 = vmatprep.subr.mxu0 %v1105
  %1232 = vmatpush1.msra.mxu0 %v1104
  %1233 = vmatprep.subr.mxu0 %v1101
  %1234 = vmatpush1.msra.mxu0 %v1100
  %1235 = vmatprep.subr.mxu0 %v1097
  %1236 = vmatpush1.msra.mxu0 %v1096
  %1237 = vmatprep.subr.mxu0 %v1093
  %1238 = vmatpush1.msra.mxu0 %v1092
  %1239 = vmatprep.subr.mxu0 %v1089
  %1240 = vmatpush1.msra.mxu0 %v1088
  %1241 = vmatprep.subr.mxu0 %v1085
  %1242 = vmatpush1.msra.mxu0 %v1084
  %1243 = vmatprep.subr.mxu0 %v1081
  %1244 = vmatpush1.msra.mxu0 %v1080
  %1245 = vmatprep.subr.mxu0 0.0
  %1246 = vmatpush2.msra.mxu0 0.0
  %1247 = vmatprep.subr.mxu0 0.0
  %1248 = vmatpush2.msra.mxu0 0.0
  %1249 = vmatprep.subr.mxu0 0.0
  %1250 = vmatpush2.msra.mxu0 0.0
  %1251 = vmatprep.subr.mxu0 0.0
  %1252 = vmatpush2.msra.mxu0 0.0
  %1253 = vmatprep.subr.mxu0 0.0
  %1254 = vmatpush2.msra.mxu0 0.0
  %1255 = vmatprep.subr.mxu0 0.0
  %1256 = vmatpush2.msra.mxu0 0.0
  %1257 = vmatprep.subr.mxu0 0.0
  %1258 = vmatpush2.msra.mxu0 0.0
  %1259 = vmatprep.subr.mxu0 0.0
  %1260 = vmatpush2.msra.mxu0 0.0
  %1261 = vmatprep.subr.mxu0 0.0
  %1262 = vmatpush2.msra.mxu0 0.0
  %1263 = vmatprep.subr.mxu0 0.0
  %1264 = vmatpush2.msra.mxu0 0.0
  %1265 = vmatprep.subr.mxu0 0.0
  %1266 = vmatpush2.msra.mxu0 0.0
  %1267 = vmatprep.subr.mxu0 0.0
  %1268 = vmatpush2.msra.mxu0 0.0
  %1269 = vmatprep.subr.mxu0 0.0
  %1270 = vmatpush2.msra.mxu0 0.0
  %1271 = vmatprep.subr.mxu0 0.0
  %1272 = vmatpush2.msra.mxu0 0.0
  %1273 = vmatprep.subr.mxu0 0.0
  %1274 = vmatpush2.msra.mxu0 0.0
  %1275 = vmatprep.subr.mxu0 0.0
  %1276 = vmatpush2.msra.mxu0 0.0
  %1277 = vmatprep.mubr.f32.mxu0 0.0
  %1278 = vmatmul.mubr.f32.gmra.mxu0 %v1073
  %v1279 = vpop.f32.mrf.mxu0
  %v1280 = vadd.f32 0.0, %v1279
  %v1281 = vpop.f32.mrf.mxu0
  %v1282 = vadd.f32 0.0, %v1281
  %1283 = vdwg.mxu0
  %v1288 = vcombine.low %v1209, %v1211
  %v1289 = vcombine.low %v1280, %v1282
  %v1291 = vunpack.c.l.s4 1983009808
  %v1292 = vunpack.c.0.s8 %v1291
  %v1293 = vlaneseq
  %v1294 = vshrl.u32 %v1293, 7
  %v1295 = vsub.s32 %v1292, %v1294
  %v1296 = vrot.slane %v1288, %v1295
  %v1298 = vunpack.c.l.s4 1983009808
  %v1299 = vunpack.c.0.s8 %v1298
  %v1300 = vlaneseq
  %v1301 = vshrl.u32 %v1300, 7
  %v1302 = vsub.s32 %v1299, %v1301
  %v1303 = vrot.slane %v1289, %v1302
  %v1304 = vcombine.low %v1296, %v1303
  %v1306 = vadd.f32 %v1077, %v1304
  %v1307 = vxor.u32 %v1306, 2147483648
  %v1308 = vmul.f32 %v1307, 1.442695
  %v1309 = vpow.pop %v1308
  %v1310 = vadd.f32 %v1309, 1.0
  %v1311 = vrcp.pop %v1310
  %v1312 = vmul.f32 1.0, %v1311
  %v1314 = vrot.slane %v1306, 2
  %v1316 = vxor.u32 %v1314, 2147483648
  %v1317 = vmul.f32 %v1316, 1.442695
  %v1318 = vpow.pop %v1317
  %v1319 = vadd.f32 %v1318, 1.0
  %v1320 = vrcp.pop %v1319
  %v1321 = vmul.f32 1.0, %v1320
  %v1322 = vrot.slane %v1306, 4
  %v1324 = vtanh.pop %v1322
  %v1325 = vrot.slane %v1306, 6
  %v1327 = vxor.u32 %v1325, 2147483648
  %v1328 = vmul.f32 %v1327, 1.442695
  %v1329 = vpow.pop %v1328
  %v1330 = vadd.f32 %v1329, 1.0
  %v1331 = vrcp.pop %v1330
  %v1332 = vmul.f32 1.0, %v1331
  %v1333 = vmul.f32 %v1321, %v1071
  %v1334 = vmul.f32 %v1312, %v1324
  %v1335 = vadd.f32 %v1333, %v1334
  %v1336 = vtanh.pop %v1335
  %v1337 = vmul.f32 %v1332, %v1336
  %s1338 = scalar_lea.vmem %s4, 8
  %1339 = vst [vmem:[%s1338] sm:$0x3] %v1337
  %s1340 = scalar_lea.vmem %s0, 40
  %v1341 = vld [vmem:[%s1340] sm:$0xff]
  %v1342 = vld [vmem:[%s1] sm:$0xff]
  %v1343 = vld [vmem:[%s1 + $0x8] sm:$0xff]
  %v1344 = vld [vmem:[%s1 + $0x10] sm:$0xff]
  %v1345 = vld [vmem:[%s1 + $0x18] sm:$0xff]
  %v1346 = vld [vmem:[%s1 + $0x20] sm:$0xff]
  %v1347 = vld [vmem:[%s1 + $0x28] sm:$0xff]
  %v1348 = vld [vmem:[%s1 + $0x30] sm:$0xff]
  %v1349 = vld [vmem:[%s1 + $0x38] sm:$0xff]
  %v1350 = vld [vmem:[%s1 + $0x40] sm:$0xff]
  %v1351 = vld [vmem:[%s1 + $0x48] sm:$0xff]
  %v1352 = vld [vmem:[%s1 + $0x50] sm:$0xff]
  %v1353 = vld [vmem:[%s1 + $0x58] sm:$0xff]
  %v1354 = vld [vmem:[%s1 + $0x60] sm:$0xff]
  %v1355 = vld [vmem:[%s1 + $0x68] sm:$0xff]
  %v1356 = vld [vmem:[%s1 + $0x70] sm:$0xff]
  %v1357 = vld [vmem:[%s1 + $0x78] sm:$0xff]
  %v1358 = vld [vmem:[%s1 + $0x80] sm:$0xff]
  %v1359 = vld [vmem:[%s1 + $0x88] sm:$0xff]
  %v1360 = vld [vmem:[%s1 + $0x90] sm:$0xff]
  %v1361 = vld [vmem:[%s1 + $0x98] sm:$0xff]
  %v1362 = vld [vmem:[%s1 + $0xa0] sm:$0xff]
  %v1363 = vld [vmem:[%s1 + $0xa8] sm:$0xff]
  %v1364 = vld [vmem:[%s1 + $0xb0] sm:$0xff]
  %v1365 = vld [vmem:[%s1 + $0xb8] sm:$0xff]
  %v1366 = vld [vmem:[%s1 + $0xc0] sm:$0xff]
  %v1367 = vld [vmem:[%s1 + $0xc8] sm:$0xff]
  %v1368 = vld [vmem:[%s1 + $0xd0] sm:$0xff]
  %v1369 = vld [vmem:[%s1 + $0xd8] sm:$0xff]
  %v1370 = vld [vmem:[%s1 + $0xe0] sm:$0xff]
  %v1371 = vld [vmem:[%s1 + $0xe8] sm:$0xff]
  %v1372 = vld [vmem:[%s1 + $0xf0] sm:$0xff]
  %v1373 = vld [vmem:[%s1 + $0xf8] sm:$0xff]
  %v1374 = vld [vmem:[%s1 + $0x100] sm:$0xff]
  %v1375 = vld [vmem:[%s1 + $0x108] sm:$0xff]
  %v1376 = vld [vmem:[%s1 + $0x110] sm:$0xff]
  %v1377 = vld [vmem:[%s1 + $0x118] sm:$0xff]
  %v1378 = vld [vmem:[%s1 + $0x120] sm:$0xff]
  %v1379 = vld [vmem:[%s1 + $0x128] sm:$0xff]
  %v1380 = vld [vmem:[%s1 + $0x130] sm:$0xff]
  %v1381 = vld [vmem:[%s1 + $0x138] sm:$0xff]
  %v1382 = vld [vmem:[%s1 + $0x140] sm:$0xff]
  %v1383 = vld [vmem:[%s1 + $0x148] sm:$0xff]
  %v1384 = vld [vmem:[%s1 + $0x150] sm:$0xff]
  %v1385 = vld [vmem:[%s1 + $0x158] sm:$0xff]
  %v1386 = vld [vmem:[%s1 + $0x160] sm:$0xff]
  %v1387 = vld [vmem:[%s1 + $0x168] sm:$0xff]
  %v1388 = vld [vmem:[%s1 + $0x170] sm:$0xff]
  %v1389 = vld [vmem:[%s1 + $0x178] sm:$0xff]
  %v1390 = vld [vmem:[%s1 + $0x180] sm:$0xff]
  %v1391 = vld [vmem:[%s1 + $0x188] sm:$0xff]
  %v1392 = vld [vmem:[%s1 + $0x190] sm:$0xff]
  %v1393 = vld [vmem:[%s1 + $0x198] sm:$0xff]
  %v1394 = vld [vmem:[%s1 + $0x1a0] sm:$0xff]
  %v1395 = vld [vmem:[%s1 + $0x1a8] sm:$0xff]
  %v1396 = vld [vmem:[%s1 + $0x1b0] sm:$0xff]
  %v1397 = vld [vmem:[%s1 + $0x1b8] sm:$0xff]
  %v1398 = vld [vmem:[%s1 + $0x1c0] sm:$0xff]
  %v1399 = vld [vmem:[%s1 + $0x1c8] sm:$0xff]
  %v1400 = vld [vmem:[%s1 + $0x1d0] sm:$0xff]
  %v1401 = vld [vmem:[%s1 + $0x1d8] sm:$0xff]
  %v1402 = vld [vmem:[%s1 + $0x1e0] sm:$0xff]
  %v1403 = vld [vmem:[%s1 + $0x1e8] sm:$0xff]
  %v1404 = vld [vmem:[%s1 + $0x1f0] sm:$0xff]
  %v1405 = vld [vmem:[%s1 + $0x1f8] sm:$0xff]
  %1406 = vmatprep.subr.mxu0 %v1403
  %1407 = vmatpush1.msra.mxu0 %v1402
  %1408 = vmatprep.subr.mxu0 %v1399
  %1409 = vmatpush1.msra.mxu0 %v1398
  %1410 = vmatprep.subr.mxu0 %v1395
  %1411 = vmatpush1.msra.mxu0 %v1394
  %1412 = vmatprep.subr.mxu0 %v1391
  %1413 = vmatpush1.msra.mxu0 %v1390
  %1414 = vmatprep.subr.mxu0 %v1387
  %1415 = vmatpush1.msra.mxu0 %v1386
  %1416 = vmatprep.subr.mxu0 %v1383
  %1417 = vmatpush1.msra.mxu0 %v1382
  %1418 = vmatprep.subr.mxu0 %v1379
  %1419 = vmatpush1.msra.mxu0 %v1378
  %1420 = vmatprep.subr.mxu0 %v1375
  %1421 = vmatpush1.msra.mxu0 %v1374
  %1422 = vmatprep.subr.mxu0 %v1371
  %1423 = vmatpush1.msra.mxu0 %v1370
  %1424 = vmatprep.subr.mxu0 %v1367
  %1425 = vmatpush1.msra.mxu0 %v1366
  %1426 = vmatprep.subr.mxu0 %v1363
  %1427 = vmatpush1.msra.mxu0 %v1362
  %1428 = vmatprep.subr.mxu0 %v1359
  %1429 = vmatpush1.msra.mxu0 %v1358
  %1430 = vmatprep.subr.mxu0 %v1355
  %1431 = vmatpush1.msra.mxu0 %v1354
  %1432 = vmatprep.subr.mxu0 %v1351
  %1433 = vmatpush1.msra.mxu0 %v1350
  %1434 = vmatprep.subr.mxu0 %v1347
  %1435 = vmatpush1.msra.mxu0 %v1346
  %1436 = vmatprep.subr.mxu0 %v1343
  %1437 = vmatpush1.msra.mxu0 %v1342
  %1438 = vmatprep.subr.mxu0 0.0
  %1439 = vmatpush2.msra.mxu0 0.0
  %1440 = vmatprep.subr.mxu0 0.0
  %1441 = vmatpush2.msra.mxu0 0.0
  %1442 = vmatprep.subr.mxu0 0.0
  %1443 = vmatpush2.msra.mxu0 0.0
  %1444 = vmatprep.subr.mxu0 0.0
  %1445 = vmatpush2.msra.mxu0 0.0
  %1446 = vmatprep.subr.mxu0 0.0
  %1447 = vmatpush2.msra.mxu0 0.0
  %1448 = vmatprep.subr.mxu0 0.0
  %1449 = vmatpush2.msra.mxu0 0.0
  %1450 = vmatprep.subr.mxu0 0.0
  %1451 = vmatpush2.msra.mxu0 0.0
  %1452 = vmatprep.subr.mxu0 0.0
  %1453 = vmatpush2.msra.mxu0 0.0
  %1454 = vmatprep.subr.mxu0 0.0
  %1455 = vmatpush2.msra.mxu0 0.0
  %1456 = vmatprep.subr.mxu0 0.0
  %1457 = vmatpush2.msra.mxu0 0.0
  %1458 = vmatprep.subr.mxu0 0.0
  %1459 = vmatpush2.msra.mxu0 0.0
  %1460 = vmatprep.subr.mxu0 0.0
  %1461 = vmatpush2.msra.mxu0 0.0
  %1462 = vmatprep.subr.mxu0 0.0
  %1463 = vmatpush2.msra.mxu0 0.0
  %1464 = vmatprep.subr.mxu0 0.0
  %1465 = vmatpush2.msra.mxu0 0.0
  %1466 = vmatprep.subr.mxu0 0.0
  %1467 = vmatpush2.msra.mxu0 0.0
  %1468 = vmatprep.subr.mxu0 0.0
  %1469 = vmatpush2.msra.mxu0 0.0
  %1470 = vmatprep.mubr.f32.mxu0 0.0
  %1471 = vmatmul.mubr.f32.gmra.mxu0 %v1337
  %v1472 = vpop.f32.mrf.mxu0
  %v1473 = vadd.f32 0.0, %v1472
  %v1474 = vpop.f32.mrf.mxu0
  %v1475 = vadd.f32 0.0, %v1474
  %1476 = vdwg.mxu0
  %1477 = vmatprep.subr.mxu0 %v1405
  %1478 = vmatpush1.msra.mxu0 %v1404
  %1479 = vmatprep.subr.mxu0 %v1401
  %1480 = vmatpush1.msra.mxu0 %v1400
  %1481 = vmatprep.subr.mxu0 %v1397
  %1482 = vmatpush1.msra.mxu0 %v1396
  %1483 = vmatprep.subr.mxu0 %v1393
  %1484 = vmatpush1.msra.mxu0 %v1392
  %1485 = vmatprep.subr.mxu0 %v1389
  %1486 = vmatpush1.msra.mxu0 %v1388
  %1487 = vmatprep.subr.mxu0 %v1385
  %1488 = vmatpush1.msra.mxu0 %v1384
  %1489 = vmatprep.subr.mxu0 %v1381
  %1490 = vmatpush1.msra.mxu0 %v1380
  %1491 = vmatprep.subr.mxu0 %v1377
  %1492 = vmatpush1.msra.mxu0 %v1376
  %1493 = vmatprep.subr.mxu0 %v1373
  %1494 = vmatpush1.msra.mxu0 %v1372
  %1495 = vmatprep.subr.mxu0 %v1369
  %1496 = vmatpush1.msra.mxu0 %v1368
  %1497 = vmatprep.subr.mxu0 %v1365
  %1498 = vmatpush1.msra.mxu0 %v1364
  %1499 = vmatprep.subr.mxu0 %v1361
  %1500 = vmatpush1.msra.mxu0 %v1360
  %1501 = vmatprep.subr.mxu0 %v1357
  %1502 = vmatpush1.msra.mxu0 %v1356
  %1503 = vmatprep.subr.mxu0 %v1353
  %1504 = vmatpush1.msra.mxu0 %v1352
  %1505 = vmatprep.subr.mxu0 %v1349
  %1506 = vmatpush1.msra.mxu0 %v1348
  %1507 = vmatprep.subr.mxu0 %v1345
  %1508 = vmatpush1.msra.mxu0 %v1344
  %1509 = vmatprep.subr.mxu0 0.0
  %1510 = vmatpush2.msra.mxu0 0.0
  %1511 = vmatprep.subr.mxu0 0.0
  %1512 = vmatpush2.msra.mxu0 0.0
  %1513 = vmatprep.subr.mxu0 0.0
  %1514 = vmatpush2.msra.mxu0 0.0
  %1515 = vmatprep.subr.mxu0 0.0
  %1516 = vmatpush2.msra.mxu0 0.0
  %1517 = vmatprep.subr.mxu0 0.0
  %1518 = vmatpush2.msra.mxu0 0.0
  %1519 = vmatprep.subr.mxu0 0.0
  %1520 = vmatpush2.msra.mxu0 0.0
  %1521 = vmatprep.subr.mxu0 0.0
  %1522 = vmatpush2.msra.mxu0 0.0
  %1523 = vmatprep.subr.mxu0 0.0
  %1524 = vmatpush2.msra.mxu0 0.0
  %1525 = vmatprep.subr.mxu0 0.0
  %1526 = vmatpush2.msra.mxu0 0.0
  %1527 = vmatprep.subr.mxu0 0.0
  %1528 = vmatpush2.msra.mxu0 0.0
  %1529 = vmatprep.subr.mxu0 0.0
  %1530 = vmatpush2.msra.mxu0 0.0
  %1531 = vmatprep.subr.mxu0 0.0
  %1532 = vmatpush2.msra.mxu0 0.0
  %1533 = vmatprep.subr.mxu0 0.0
  %1534 = vmatpush2.msra.mxu0 0.0
  %1535 = vmatprep.subr.mxu0 0.0
  %1536 = vmatpush2.msra.mxu0 0.0
  %1537 = vmatprep.subr.mxu0 0.0
  %1538 = vmatpush2.msra.mxu0 0.0
  %1539 = vmatprep.subr.mxu0 0.0
  %1540 = vmatpush2.msra.mxu0 0.0
  %1541 = vmatprep.mubr.f32.mxu0 0.0
  %1542 = vmatmul.mubr.f32.gmra.mxu0 %v1337
  %v1543 = vpop.f32.mrf.mxu0
  %v1544 = vadd.f32 0.0, %v1543
  %v1545 = vpop.f32.mrf.mxu0
  %v1546 = vadd.f32 0.0, %v1545
  %1547 = vdwg.mxu0
  %v1552 = vcombine.low %v1473, %v1475
  %v1553 = vcombine.low %v1544, %v1546
  %v1555 = vunpack.c.l.s4 1983009808
  %v1556 = vunpack.c.0.s8 %v1555
  %v1557 = vlaneseq
  %v1558 = vshrl.u32 %v1557, 7
  %v1559 = vsub.s32 %v1556, %v1558
  %v1560 = vrot.slane %v1552, %v1559
  %v1562 = vunpack.c.l.s4 1983009808
  %v1563 = vunpack.c.0.s8 %v1562
  %v1564 = vlaneseq
  %v1565 = vshrl.u32 %v1564, 7
  %v1566 = vsub.s32 %v1563, %v1565
  %v1567 = vrot.slane %v1553, %v1566
  %v1568 = vcombine.low %v1560, %v1567
  %v1570 = vadd.f32 %v1341, %v1568
  %v1571 = vxor.u32 %v1570, 2147483648
  %v1572 = vmul.f32 %v1571, 1.442695
  %v1573 = vpow.pop %v1572
  %v1574 = vadd.f32 %v1573, 1.0
  %v1575 = vrcp.pop %v1574
  %v1576 = vmul.f32 1.0, %v1575
  %v1578 = vrot.slane %v1570, 2
  %v1580 = vxor.u32 %v1578, 2147483648
  %v1581 = vmul.f32 %v1580, 1.442695
  %v1582 = vpow.pop %v1581
  %v1583 = vadd.f32 %v1582, 1.0
  %v1584 = vrcp.pop %v1583
  %v1585 = vmul.f32 1.0, %v1584
  %v1586 = vrot.slane %v1570, 4
  %v1588 = vtanh.pop %v1586
  %v1589 = vrot.slane %v1570, 6
  %v1591 = vxor.u32 %v1589, 2147483648
  %v1592 = vmul.f32 %v1591, 1.442695
  %v1593 = vpow.pop %v1592
  %v1594 = vadd.f32 %v1593, 1.0
  %v1595 = vrcp.pop %v1594
  %v1596 = vmul.f32 1.0, %v1595
  %v1597 = vmul.f32 %v1585, %v1335
  %v1598 = vmul.f32 %v1576, %v1588
  %v1599 = vadd.f32 %v1597, %v1598
  %v1600 = vtanh.pop %v1599
  %v1601 = vmul.f32 %v1596, %v1600
  %s1602 = scalar_lea.vmem %s4, 10
  %1603 = vst [vmem:[%s1602] sm:$0x3] %v1601
  %s1604 = scalar_lea.vmem %s0, 48
  %v1605 = vld [vmem:[%s1604] sm:$0xff]
  %v1606 = vld [vmem:[%s1] sm:$0xff]
  %v1607 = vld [vmem:[%s1 + $0x8] sm:$0xff]
  %v1608 = vld [vmem:[%s1 + $0x10] sm:$0xff]
  %v1609 = vld [vmem:[%s1 + $0x18] sm:$0xff]
  %v1610 = vld [vmem:[%s1 + $0x20] sm:$0xff]
  %v1611 = vld [vmem:[%s1 + $0x28] sm:$0xff]
  %v1612 = vld [vmem:[%s1 + $0x30] sm:$0xff]
  %v1613 = vld [vmem:[%s1 + $0x38] sm:$0xff]
  %v1614 = vld [vmem:[%s1 + $0x40] sm:$0xff]
  %v1615 = vld [vmem:[%s1 + $0x48] sm:$0xff]
  %v1616 = vld [vmem:[%s1 + $0x50] sm:$0xff]
  %v1617 = vld [vmem:[%s1 + $0x58] sm:$0xff]
  %v1618 = vld [vmem:[%s1 + $0x60] sm:$0xff]
  %v1619 = vld [vmem:[%s1 + $0x68] sm:$0xff]
  %v1620 = vld [vmem:[%s1 + $0x70] sm:$0xff]
  %v1621 = vld [vmem:[%s1 + $0x78] sm:$0xff]
  %v1622 = vld [vmem:[%s1 + $0x80] sm:$0xff]
  %v1623 = vld [vmem:[%s1 + $0x88] sm:$0xff]
  %v1624 = vld [vmem:[%s1 + $0x90] sm:$0xff]
  %v1625 = vld [vmem:[%s1 + $0x98] sm:$0xff]
  %v1626 = vld [vmem:[%s1 + $0xa0] sm:$0xff]
  %v1627 = vld [vmem:[%s1 + $0xa8] sm:$0xff]
  %v1628 = vld [vmem:[%s1 + $0xb0] sm:$0xff]
  %v1629 = vld [vmem:[%s1 + $0xb8] sm:$0xff]
  %v1630 = vld [vmem:[%s1 + $0xc0] sm:$0xff]
  %v1631 = vld [vmem:[%s1 + $0xc8] sm:$0xff]
  %v1632 = vld [vmem:[%s1 + $0xd0] sm:$0xff]
  %v1633 = vld [vmem:[%s1 + $0xd8] sm:$0xff]
  %v1634 = vld [vmem:[%s1 + $0xe0] sm:$0xff]
  %v1635 = vld [vmem:[%s1 + $0xe8] sm:$0xff]
  %v1636 = vld [vmem:[%s1 + $0xf0] sm:$0xff]
  %v1637 = vld [vmem:[%s1 + $0xf8] sm:$0xff]
  %v1638 = vld [vmem:[%s1 + $0x100] sm:$0xff]
  %v1639 = vld [vmem:[%s1 + $0x108] sm:$0xff]
  %v1640 = vld [vmem:[%s1 + $0x110] sm:$0xff]
  %v1641 = vld [vmem:[%s1 + $0x118] sm:$0xff]
  %v1642 = vld [vmem:[%s1 + $0x120] sm:$0xff]
  %v1643 = vld [vmem:[%s1 + $0x128] sm:$0xff]
  %v1644 = vld [vmem:[%s1 + $0x130] sm:$0xff]
  %v1645 = vld [vmem:[%s1 + $0x138] sm:$0xff]
  %v1646 = vld [vmem:[%s1 + $0x140] sm:$0xff]
  %v1647 = vld [vmem:[%s1 + $0x148] sm:$0xff]
  %v1648 = vld [vmem:[%s1 + $0x150] sm:$0xff]
  %v1649 = vld [vmem:[%s1 + $0x158] sm:$0xff]
  %v1650 = vld [vmem:[%s1 + $0x160] sm:$0xff]
  %v1651 = vld [vmem:[%s1 + $0x168] sm:$0xff]
  %v1652 = vld [vmem:[%s1 + $0x170] sm:$0xff]
  %v1653 = vld [vmem:[%s1 + $0x178] sm:$0xff]
  %v1654 = vld [vmem:[%s1 + $0x180] sm:$0xff]
  %v1655 = vld [vmem:[%s1 + $0x188] sm:$0xff]
  %v1656 = vld [vmem:[%s1 + $0x190] sm:$0xff]
  %v1657 = vld [vmem:[%s1 + $0x198] sm:$0xff]
  %v1658 = vld [vmem:[%s1 + $0x1a0] sm:$0xff]
  %v1659 = vld [vmem:[%s1 + $0x1a8] sm:$0xff]
  %v1660 = vld [vmem:[%s1 + $0x1b0] sm:$0xff]
  %v1661 = vld [vmem:[%s1 + $0x1b8] sm:$0xff]
  %v1662 = vld [vmem:[%s1 + $0x1c0] sm:$0xff]
  %v1663 = vld [vmem:[%s1 + $0x1c8] sm:$0xff]
  %v1664 = vld [vmem:[%s1 + $0x1d0] sm:$0xff]
  %v1665 = vld [vmem:[%s1 + $0x1d8] sm:$0xff]
  %v1666 = vld [vmem:[%s1 + $0x1e0] sm:$0xff]
  %v1667 = vld [vmem:[%s1 + $0x1e8] sm:$0xff]
  %v1668 = vld [vmem:[%s1 + $0x1f0] sm:$0xff]
  %v1669 = vld [vmem:[%s1 + $0x1f8] sm:$0xff]
  %1670 = vmatprep.subr.mxu0 %v1667
  %1671 = vmatpush1.msra.mxu0 %v1666
  %1672 = vmatprep.subr.mxu0 %v1663
  %1673 = vmatpush1.msra.mxu0 %v1662
  %1674 = vmatprep.subr.mxu0 %v1659
  %1675 = vmatpush1.msra.mxu0 %v1658
  %1676 = vmatprep.subr.mxu0 %v1655
  %1677 = vmatpush1.msra.mxu0 %v1654
  %1678 = vmatprep.subr.mxu0 %v1651
  %1679 = vmatpush1.msra.mxu0 %v1650
  %1680 = vmatprep.subr.mxu0 %v1647
  %1681 = vmatpush1.msra.mxu0 %v1646
  %1682 = vmatprep.subr.mxu0 %v1643
  %1683 = vmatpush1.msra.mxu0 %v1642
  %1684 = vmatprep.subr.mxu0 %v1639
  %1685 = vmatpush1.msra.mxu0 %v1638
  %1686 = vmatprep.subr.mxu0 %v1635
  %1687 = vmatpush1.msra.mxu0 %v1634
  %1688 = vmatprep.subr.mxu0 %v1631
  %1689 = vmatpush1.msra.mxu0 %v1630
  %1690 = vmatprep.subr.mxu0 %v1627
  %1691 = vmatpush1.msra.mxu0 %v1626
  %1692 = vmatprep.subr.mxu0 %v1623
  %1693 = vmatpush1.msra.mxu0 %v1622
  %1694 = vmatprep.subr.mxu0 %v1619
  %1695 = vmatpush1.msra.mxu0 %v1618
  %1696 = vmatprep.subr.mxu0 %v1615
  %1697 = vmatpush1.msra.mxu0 %v1614
  %1698 = vmatprep.subr.mxu0 %v1611
  %1699 = vmatpush1.msra.mxu0 %v1610
  %1700 = vmatprep.subr.mxu0 %v1607
  %1701 = vmatpush1.msra.mxu0 %v1606
  %1702 = vmatprep.subr.mxu0 0.0
  %1703 = vmatpush2.msra.mxu0 0.0
  %1704 = vmatprep.subr.mxu0 0.0
  %1705 = vmatpush2.msra.mxu0 0.0
  %1706 = vmatprep.subr.mxu0 0.0
  %1707 = vmatpush2.msra.mxu0 0.0
  %1708 = vmatprep.subr.mxu0 0.0
  %1709 = vmatpush2.msra.mxu0 0.0
  %1710 = vmatprep.subr.mxu0 0.0
  %1711 = vmatpush2.msra.mxu0 0.0
  %1712 = vmatprep.subr.mxu0 0.0
  %1713 = vmatpush2.msra.mxu0 0.0
  %1714 = vmatprep.subr.mxu0 0.0
  %1715 = vmatpush2.msra.mxu0 0.0
  %1716 = vmatprep.subr.mxu0 0.0
  %1717 = vmatpush2.msra.mxu0 0.0
  %1718 = vmatprep.subr.mxu0 0.0
  %1719 = vmatpush2.msra.mxu0 0.0
  %1720 = vmatprep.subr.mxu0 0.0
  %1721 = vmatpush2.msra.mxu0 0.0
  %1722 = vmatprep.subr.mxu0 0.0
  %1723 = vmatpush2.msra.mxu0 0.0
  %1724 = vmatprep.subr.mxu0 0.0
  %1725 = vmatpush2.msra.mxu0 0.0
  %1726 = vmatprep.subr.mxu0 0.0
  %1727 = vmatpush2.msra.mxu0 0.0
  %1728 = vmatprep.subr.mxu0 0.0
  %1729 = vmatpush2.msra.mxu0 0.0
  %1730 = vmatprep.subr.mxu0 0.0
  %1731 = vmatpush2.msra.mxu0 0.0
  %1732 = vmatprep.subr.mxu0 0.0
  %1733 = vmatpush2.msra.mxu0 0.0
  %1734 = vmatprep.mubr.f32.mxu0 0.0
  %1735 = vmatmul.mubr.f32.gmra.mxu0 %v1601
  %v1736 = vpop.f32.mrf.mxu0
  %v1737 = vadd.f32 0.0, %v1736
  %v1738 = vpop.f32.mrf.mxu0
  %v1739 = vadd.f32 0.0, %v1738
  %1740 = vdwg.mxu0
  %1741 = vmatprep.subr.mxu0 %v1669
  %1742 = vmatpush1.msra.mxu0 %v1668
  %1743 = vmatprep.subr.mxu0 %v1665
  %1744 = vmatpush1.msra.mxu0 %v1664
  %1745 = vmatprep.subr.mxu0 %v1661
  %1746 = vmatpush1.msra.mxu0 %v1660
  %1747 = vmatprep.subr.mxu0 %v1657
  %1748 = vmatpush1.msra.mxu0 %v1656
  %1749 = vmatprep.subr.mxu0 %v1653
  %1750 = vmatpush1.msra.mxu0 %v1652
  %1751 = vmatprep.subr.mxu0 %v1649
  %1752 = vmatpush1.msra.mxu0 %v1648
  %1753 = vmatprep.subr.mxu0 %v1645
  %1754 = vmatpush1.msra.mxu0 %v1644
  %1755 = vmatprep.subr.mxu0 %v1641
  %1756 = vmatpush1.msra.mxu0 %v1640
  %1757 = vmatprep.subr.mxu0 %v1637
  %1758 = vmatpush1.msra.mxu0 %v1636
  %1759 = vmatprep.subr.mxu0 %v1633
  %1760 = vmatpush1.msra.mxu0 %v1632
  %1761 = vmatprep.subr.mxu0 %v1629
  %1762 = vmatpush1.msra.mxu0 %v1628
  %1763 = vmatprep.subr.mxu0 %v1625
  %1764 = vmatpush1.msra.mxu0 %v1624
  %1765 = vmatprep.subr.mxu0 %v1621
  %1766 = vmatpush1.msra.mxu0 %v1620
  %1767 = vmatprep.subr.mxu0 %v1617
  %1768 = vmatpush1.msra.mxu0 %v1616
  %1769 = vmatprep.subr.mxu0 %v1613
  %1770 = vmatpush1.msra.mxu0 %v1612
  %1771 = vmatprep.subr.mxu0 %v1609
  %1772 = vmatpush1.msra.mxu0 %v1608
  %1773 = vmatprep.subr.mxu0 0.0
  %1774 = vmatpush2.msra.mxu0 0.0
  %1775 = vmatprep.subr.mxu0 0.0
  %1776 = vmatpush2.msra.mxu0 0.0
  %1777 = vmatprep.subr.mxu0 0.0
  %1778 = vmatpush2.msra.mxu0 0.0
  %1779 = vmatprep.subr.mxu0 0.0
  %1780 = vmatpush2.msra.mxu0 0.0
  %1781 = vmatprep.subr.mxu0 0.0
  %1782 = vmatpush2.msra.mxu0 0.0
  %1783 = vmatprep.subr.mxu0 0.0
  %1784 = vmatpush2.msra.mxu0 0.0
  %1785 = vmatprep.subr.mxu0 0.0
  %1786 = vmatpush2.msra.mxu0 0.0
  %1787 = vmatprep.subr.mxu0 0.0
  %1788 = vmatpush2.msra.mxu0 0.0
  %1789 = vmatprep.subr.mxu0 0.0
  %1790 = vmatpush2.msra.mxu0 0.0
  %1791 = vmatprep.subr.mxu0 0.0
  %1792 = vmatpush2.msra.mxu0 0.0
  %1793 = vmatprep.subr.mxu0 0.0
  %1794 = vmatpush2.msra.mxu0 0.0
  %1795 = vmatprep.subr.mxu0 0.0
  %1796 = vmatpush2.msra.mxu0 0.0
  %1797 = vmatprep.subr.mxu0 0.0
  %1798 = vmatpush2.msra.mxu0 0.0
  %1799 = vmatprep.subr.mxu0 0.0
  %1800 = vmatpush2.msra.mxu0 0.0
  %1801 = vmatprep.subr.mxu0 0.0
  %1802 = vmatpush2.msra.mxu0 0.0
  %1803 = vmatprep.subr.mxu0 0.0
  %1804 = vmatpush2.msra.mxu0 0.0
  %1805 = vmatprep.mubr.f32.mxu0 0.0
  %1806 = vmatmul.mubr.f32.gmra.mxu0 %v1601
  %v1807 = vpop.f32.mrf.mxu0
  %v1808 = vadd.f32 0.0, %v1807
  %v1809 = vpop.f32.mrf.mxu0
  %v1810 = vadd.f32 0.0, %v1809
  %1811 = vdwg.mxu0
  %v1816 = vcombine.low %v1737, %v1739
  %v1817 = vcombine.low %v1808, %v1810
  %v1819 = vunpack.c.l.s4 1983009808
  %v1820 = vunpack.c.0.s8 %v1819
  %v1821 = vlaneseq
  %v1822 = vshrl.u32 %v1821, 7
  %v1823 = vsub.s32 %v1820, %v1822
  %v1824 = vrot.slane %v1816, %v1823
  %v1826 = vunpack.c.l.s4 1983009808
  %v1827 = vunpack.c.0.s8 %v1826
  %v1828 = vlaneseq
  %v1829 = vshrl.u32 %v1828, 7
  %v1830 = vsub.s32 %v1827, %v1829
  %v1831 = vrot.slane %v1817, %v1830
  %v1832 = vcombine.low %v1824, %v1831
  %v1834 = vadd.f32 %v1605, %v1832
  %v1835 = vxor.u32 %v1834, 2147483648
  %v1836 = vmul.f32 %v1835, 1.442695
  %v1837 = vpow.pop %v1836
  %v1838 = vadd.f32 %v1837, 1.0
  %v1839 = vrcp.pop %v1838
  %v1840 = vmul.f32 1.0, %v1839
  %v1842 = vrot.slane %v1834, 2
  %v1844 = vxor.u32 %v1842, 2147483648
  %v1845 = vmul.f32 %v1844, 1.442695
  %v1846 = vpow.pop %v1845
  %v1847 = vadd.f32 %v1846, 1.0
  %v1848 = vrcp.pop %v1847
  %v1849 = vmul.f32 1.0, %v1848
  %v1850 = vrot.slane %v1834, 4
  %v1852 = vtanh.pop %v1850
  %v1853 = vrot.slane %v1834, 6
  %v1855 = vxor.u32 %v1853, 2147483648
  %v1856 = vmul.f32 %v1855, 1.442695
  %v1857 = vpow.pop %v1856
  %v1858 = vadd.f32 %v1857, 1.0
  %v1859 = vrcp.pop %v1858
  %v1860 = vmul.f32 1.0, %v1859
  %v1861 = vmul.f32 %v1849, %v1599
  %v1862 = vmul.f32 %v1840, %v1852
  %v1863 = vadd.f32 %v1861, %v1862
  %v1864 = vtanh.pop %v1863
  %v1865 = vmul.f32 %v1860, %v1864
  %s1866 = scalar_lea.vmem %s4, 12
  %1867 = vst [vmem:[%s1866] sm:$0x3] %v1865
  %s1868 = scalar_lea.vmem %s0, 56
  %v1869 = vld [vmem:[%s1868] sm:$0xff]
  %v1870 = vld [vmem:[%s1] sm:$0xff]
  %v1871 = vld [vmem:[%s1 + $0x8] sm:$0xff]
  %v1872 = vld [vmem:[%s1 + $0x10] sm:$0xff]
  %v1873 = vld [vmem:[%s1 + $0x18] sm:$0xff]
  %v1874 = vld [vmem:[%s1 + $0x20] sm:$0xff]
  %v1875 = vld [vmem:[%s1 + $0x28] sm:$0xff]
  %v1876 = vld [vmem:[%s1 + $0x30] sm:$0xff]
  %v1877 = vld [vmem:[%s1 + $0x38] sm:$0xff]
  %v1878 = vld [vmem:[%s1 + $0x40] sm:$0xff]
  %v1879 = vld [vmem:[%s1 + $0x48] sm:$0xff]
  %v1880 = vld [vmem:[%s1 + $0x50] sm:$0xff]
  %v1881 = vld [vmem:[%s1 + $0x58] sm:$0xff]
  %v1882 = vld [vmem:[%s1 + $0x60] sm:$0xff]
  %v1883 = vld [vmem:[%s1 + $0x68] sm:$0xff]
  %v1884 = vld [vmem:[%s1 + $0x70] sm:$0xff]
  %v1885 = vld [vmem:[%s1 + $0x78] sm:$0xff]
  %v1886 = vld [vmem:[%s1 + $0x80] sm:$0xff]
  %v1887 = vld [vmem:[%s1 + $0x88] sm:$0xff]
  %v1888 = vld [vmem:[%s1 + $0x90] sm:$0xff]
  %v1889 = vld [vmem:[%s1 + $0x98] sm:$0xff]
  %v1890 = vld [vmem:[%s1 + $0xa0] sm:$0xff]
  %v1891 = vld [vmem:[%s1 + $0xa8] sm:$0xff]
  %v1892 = vld [vmem:[%s1 + $0xb0] sm:$0xff]
  %v1893 = vld [vmem:[%s1 + $0xb8] sm:$0xff]
  %v1894 = vld [vmem:[%s1 + $0xc0] sm:$0xff]
  %v1895 = vld [vmem:[%s1 + $0xc8] sm:$0xff]
  %v1896 = vld [vmem:[%s1 + $0xd0] sm:$0xff]
  %v1897 = vld [vmem:[%s1 + $0xd8] sm:$0xff]
  %v1898 = vld [vmem:[%s1 + $0xe0] sm:$0xff]
  %v1899 = vld [vmem:[%s1 + $0xe8] sm:$0xff]
  %v1900 = vld [vmem:[%s1 + $0xf0] sm:$0xff]
  %v1901 = vld [vmem:[%s1 + $0xf8] sm:$0xff]
  %v1902 = vld [vmem:[%s1 + $0x100] sm:$0xff]
  %v1903 = vld [vmem:[%s1 + $0x108] sm:$0xff]
  %v1904 = vld [vmem:[%s1 + $0x110] sm:$0xff]
  %v1905 = vld [vmem:[%s1 + $0x118] sm:$0xff]
  %v1906 = vld [vmem:[%s1 + $0x120] sm:$0xff]
  %v1907 = vld [vmem:[%s1 + $0x128] sm:$0xff]
  %v1908 = vld [vmem:[%s1 + $0x130] sm:$0xff]
  %v1909 = vld [vmem:[%s1 + $0x138] sm:$0xff]
  %v1910 = vld [vmem:[%s1 + $0x140] sm:$0xff]
  %v1911 = vld [vmem:[%s1 + $0x148] sm:$0xff]
  %v1912 = vld [vmem:[%s1 + $0x150] sm:$0xff]
  %v1913 = vld [vmem:[%s1 + $0x158] sm:$0xff]
  %v1914 = vld [vmem:[%s1 + $0x160] sm:$0xff]
  %v1915 = vld [vmem:[%s1 + $0x168] sm:$0xff]
  %v1916 = vld [vmem:[%s1 + $0x170] sm:$0xff]
  %v1917 = vld [vmem:[%s1 + $0x178] sm:$0xff]
  %v1918 = vld [vmem:[%s1 + $0x180] sm:$0xff]
  %v1919 = vld [vmem:[%s1 + $0x188] sm:$0xff]
  %v1920 = vld [vmem:[%s1 + $0x190] sm:$0xff]
  %v1921 = vld [vmem:[%s1 + $0x198] sm:$0xff]
  %v1922 = vld [vmem:[%s1 + $0x1a0] sm:$0xff]
  %v1923 = vld [vmem:[%s1 + $0x1a8] sm:$0xff]
  %v1924 = vld [vmem:[%s1 + $0x1b0] sm:$0xff]
  %v1925 = vld [vmem:[%s1 + $0x1b8] sm:$0xff]
  %v1926 = vld [vmem:[%s1 + $0x1c0] sm:$0xff]
  %v1927 = vld [vmem:[%s1 + $0x1c8] sm:$0xff]
  %v1928 = vld [vmem:[%s1 + $0x1d0] sm:$0xff]
  %v1929 = vld [vmem:[%s1 + $0x1d8] sm:$0xff]
  %v1930 = vld [vmem:[%s1 + $0x1e0] sm:$0xff]
  %v1931 = vld [vmem:[%s1 + $0x1e8] sm:$0xff]
  %v1932 = vld [vmem:[%s1 + $0x1f0] sm:$0xff]
  %v1933 = vld [vmem:[%s1 + $0x1f8] sm:$0xff]
  %1934 = vmatprep.subr.mxu0 %v1931
  %1935 = vmatpush1.msra.mxu0 %v1930
  %1936 = vmatprep.subr.mxu0 %v1927
  %1937 = vmatpush1.msra.mxu0 %v1926
  %1938 = vmatprep.subr.mxu0 %v1923
  %1939 = vmatpush1.msra.mxu0 %v1922
  %1940 = vmatprep.subr.mxu0 %v1919
  %1941 = vmatpush1.msra.mxu0 %v1918
  %1942 = vmatprep.subr.mxu0 %v1915
  %1943 = vmatpush1.msra.mxu0 %v1914
  %1944 = vmatprep.subr.mxu0 %v1911
  %1945 = vmatpush1.msra.mxu0 %v1910
  %1946 = vmatprep.subr.mxu0 %v1907
  %1947 = vmatpush1.msra.mxu0 %v1906
  %1948 = vmatprep.subr.mxu0 %v1903
  %1949 = vmatpush1.msra.mxu0 %v1902
  %1950 = vmatprep.subr.mxu0 %v1899
  %1951 = vmatpush1.msra.mxu0 %v1898
  %1952 = vmatprep.subr.mxu0 %v1895
  %1953 = vmatpush1.msra.mxu0 %v1894
  %1954 = vmatprep.subr.mxu0 %v1891
  %1955 = vmatpush1.msra.mxu0 %v1890
  %1956 = vmatprep.subr.mxu0 %v1887
  %1957 = vmatpush1.msra.mxu0 %v1886
  %1958 = vmatprep.subr.mxu0 %v1883
  %1959 = vmatpush1.msra.mxu0 %v1882
  %1960 = vmatprep.subr.mxu0 %v1879
  %1961 = vmatpush1.msra.mxu0 %v1878
  %1962 = vmatprep.subr.mxu0 %v1875
  %1963 = vmatpush1.msra.mxu0 %v1874
  %1964 = vmatprep.subr.mxu0 %v1871
  %1965 = vmatpush1.msra.mxu0 %v1870
  %1966 = vmatprep.subr.mxu0 0.0
  %1967 = vmatpush2.msra.mxu0 0.0
  %1968 = vmatprep.subr.mxu0 0.0
  %1969 = vmatpush2.msra.mxu0 0.0
  %1970 = vmatprep.subr.mxu0 0.0
  %1971 = vmatpush2.msra.mxu0 0.0
  %1972 = vmatprep.subr.mxu0 0.0
  %1973 = vmatpush2.msra.mxu0 0.0
  %1974 = vmatprep.subr.mxu0 0.0
  %1975 = vmatpush2.msra.mxu0 0.0
  %1976 = vmatprep.subr.mxu0 0.0
  %1977 = vmatpush2.msra.mxu0 0.0
  %1978 = vmatprep.subr.mxu0 0.0
  %1979 = vmatpush2.msra.mxu0 0.0
  %1980 = vmatprep.subr.mxu0 0.0
  %1981 = vmatpush2.msra.mxu0 0.0
  %1982 = vmatprep.subr.mxu0 0.0
  %1983 = vmatpush2.msra.mxu0 0.0
  %1984 = vmatprep.subr.mxu0 0.0
  %1985 = vmatpush2.msra.mxu0 0.0
  %1986 = vmatprep.subr.mxu0 0.0
  %1987 = vmatpush2.msra.mxu0 0.0
  %1988 = vmatprep.subr.mxu0 0.0
  %1989 = vmatpush2.msra.mxu0 0.0
  %1990 = vmatprep.subr.mxu0 0.0
  %1991 = vmatpush2.msra.mxu0 0.0
  %1992 = vmatprep.subr.mxu0 0.0
  %1993 = vmatpush2.msra.mxu0 0.0
  %1994 = vmatprep.subr.mxu0 0.0
  %1995 = vmatpush2.msra.mxu0 0.0
  %1996 = vmatprep.subr.mxu0 0.0
  %1997 = vmatpush2.msra.mxu0 0.0
  %1998 = vmatprep.mubr.f32.mxu0 0.0
  %1999 = vmatmul.mubr.f32.gmra.mxu0 %v1865
  %v2000 = vpop.f32.mrf.mxu0
  %v2001 = vadd.f32 0.0, %v2000
  %v2002 = vpop.f32.mrf.mxu0
  %v2003 = vadd.f32 0.0, %v2002
  %2004 = vdwg.mxu0
  %2005 = vmatprep.subr.mxu0 %v1933
  %2006 = vmatpush1.msra.mxu0 %v1932
  %2007 = vmatprep.subr.mxu0 %v1929
  %2008 = vmatpush1.msra.mxu0 %v1928
  %2009 = vmatprep.subr.mxu0 %v1925
  %2010 = vmatpush1.msra.mxu0 %v1924
  %2011 = vmatprep.subr.mxu0 %v1921
  %2012 = vmatpush1.msra.mxu0 %v1920
  %2013 = vmatprep.subr.mxu0 %v1917
  %2014 = vmatpush1.msra.mxu0 %v1916
  %2015 = vmatprep.subr.mxu0 %v1913
  %2016 = vmatpush1.msra.mxu0 %v1912
  %2017 = vmatprep.subr.mxu0 %v1909
  %2018 = vmatpush1.msra.mxu0 %v1908
  %2019 = vmatprep.subr.mxu0 %v1905
  %2020 = vmatpush1.msra.mxu0 %v1904
  %2021 = vmatprep.subr.mxu0 %v1901
  %2022 = vmatpush1.msra.mxu0 %v1900
  %2023 = vmatprep.subr.mxu0 %v1897
  %2024 = vmatpush1.msra.mxu0 %v1896
  %2025 = vmatprep.subr.mxu0 %v1893
  %2026 = vmatpush1.msra.mxu0 %v1892
  %2027 = vmatprep.subr.mxu0 %v1889
  %2028 = vmatpush1.msra.mxu0 %v1888
  %2029 = vmatprep.subr.mxu0 %v1885
  %2030 = vmatpush1.msra.mxu0 %v1884
  %2031 = vmatprep.subr.mxu0 %v1881
  %2032 = vmatpush1.msra.mxu0 %v1880
  %2033 = vmatprep.subr.mxu0 %v1877
  %2034 = vmatpush1.msra.mxu0 %v1876
  %2035 = vmatprep.subr.mxu0 %v1873
  %2036 = vmatpush1.msra.mxu0 %v1872
  %2037 = vmatprep.subr.mxu0 0.0
  %2038 = vmatpush2.msra.mxu0 0.0
  %2039 = vmatprep.subr.mxu0 0.0
  %2040 = vmatpush2.msra.mxu0 0.0
  %2041 = vmatprep.subr.mxu0 0.0
  %2042 = vmatpush2.msra.mxu0 0.0
  %2043 = vmatprep.subr.mxu0 0.0
  %2044 = vmatpush2.msra.mxu0 0.0
  %2045 = vmatprep.subr.mxu0 0.0
  %2046 = vmatpush2.msra.mxu0 0.0
  %2047 = vmatprep.subr.mxu0 0.0
  %2048 = vmatpush2.msra.mxu0 0.0
  %2049 = vmatprep.subr.mxu0 0.0
  %2050 = vmatpush2.msra.mxu0 0.0
  %2051 = vmatprep.subr.mxu0 0.0
  %2052 = vmatpush2.msra.mxu0 0.0
  %2053 = vmatprep.subr.mxu0 0.0
  %2054 = vmatpush2.msra.mxu0 0.0
  %2055 = vmatprep.subr.mxu0 0.0
  %2056 = vmatpush2.msra.mxu0 0.0
  %2057 = vmatprep.subr.mxu0 0.0
  %2058 = vmatpush2.msra.mxu0 0.0
  %2059 = vmatprep.subr.mxu0 0.0
  %2060 = vmatpush2.msra.mxu0 0.0
  %2061 = vmatprep.subr.mxu0 0.0
  %2062 = vmatpush2.msra.mxu0 0.0
  %2063 = vmatprep.subr.mxu0 0.0
  %2064 = vmatpush2.msra.mxu0 0.0
  %2065 = vmatprep.subr.mxu0 0.0
  %2066 = vmatpush2.msra.mxu0 0.0
  %2067 = vmatprep.subr.mxu0 0.0
  %2068 = vmatpush2.msra.mxu0 0.0
  %2069 = vmatprep.mubr.f32.mxu0 0.0
  %2070 = vmatmul.mubr.f32.gmra.mxu0 %v1865
  %v2071 = vpop.f32.mrf.mxu0
  %v2072 = vadd.f32 0.0, %v2071
  %v2073 = vpop.f32.mrf.mxu0
  %v2074 = vadd.f32 0.0, %v2073
  %2075 = vdwg.mxu0
  %v2080 = vcombine.low %v2001, %v2003
  %v2081 = vcombine.low %v2072, %v2074
  %v2083 = vunpack.c.l.s4 1983009808
  %v2084 = vunpack.c.0.s8 %v2083
  %v2085 = vlaneseq
  %v2086 = vshrl.u32 %v2085, 7
  %v2087 = vsub.s32 %v2084, %v2086
  %v2088 = vrot.slane %v2080, %v2087
  %v2090 = vunpack.c.l.s4 1983009808
  %v2091 = vunpack.c.0.s8 %v2090
  %v2092 = vlaneseq
  %v2093 = vshrl.u32 %v2092, 7
  %v2094 = vsub.s32 %v2091, %v2093
  %v2095 = vrot.slane %v2081, %v2094
  %v2096 = vcombine.low %v2088, %v2095
  %v2098 = vadd.f32 %v1869, %v2096
  %v2099 = vxor.u32 %v2098, 2147483648
  %v2100 = vmul.f32 %v2099, 1.442695
  %v2101 = vpow.pop %v2100
  %v2102 = vadd.f32 %v2101, 1.0
  %v2103 = vrcp.pop %v2102
  %v2104 = vmul.f32 1.0, %v2103
  %v2106 = vrot.slane %v2098, 2
  %v2108 = vxor.u32 %v2106, 2147483648
  %v2109 = vmul.f32 %v2108, 1.442695
  %v2110 = vpow.pop %v2109
  %v2111 = vadd.f32 %v2110, 1.0
  %v2112 = vrcp.pop %v2111
  %v2113 = vmul.f32 1.0, %v2112
  %v2114 = vrot.slane %v2098, 4
  %v2116 = vtanh.pop %v2114
  %v2117 = vrot.slane %v2098, 6
  %v2119 = vxor.u32 %v2117, 2147483648
  %v2120 = vmul.f32 %v2119, 1.442695
  %v2121 = vpow.pop %v2120
  %v2122 = vadd.f32 %v2121, 1.0
  %v2123 = vrcp.pop %v2122
  %v2124 = vmul.f32 1.0, %v2123
  %v2125 = vmul.f32 %v2113, %v1863
  %v2126 = vmul.f32 %v2104, %v2116
  %v2127 = vadd.f32 %v2125, %v2126
  %v2128 = vtanh.pop %v2127
  %v2129 = vmul.f32 %v2124, %v2128
  %s2130 = scalar_lea.vmem %s4, 14
  %2131 = vst [vmem:[%s2130] sm:$0x3] %v2129
  %2132 = vst [vmem:[%s5] sm:$0x3] %v2129
  %2133 = vst [vmem:[%s6] sm:$0x3] %v2127
  // Predicated region
  $region18: #{recurrent_attention_forward.2} parent=0 // pred_check
    _
  $region19: #{recurrent_attention_forward.2} parent=0 // pred_check_branch
    %2135 = sbr.rel (0) target = $region21
  $region20: #{recurrent_attention_forward.2} parent=0 // pred_region
    _
  $region21: #{recurrent_attention_forward.2} parent=0 // pred_fallthru
    _
  // Predicated region
  $region22: #{recurrent_attention_forward.2} parent=0 // pred_check
    _
  $region23: #{recurrent_attention_forward.2} parent=0 // pred_check_branch
    %2137 = sbr.rel (0) target = $region25
  $region24: #{recurrent_attention_forward.2} parent=0 // pred_region
    _
  $region25: #{recurrent_attention_forward.2} parent=0 // pred_fallthru
    _
  // Predicated region
  $region26: #{recurrent_attention_forward.2} parent=0 // pred_check
    _
  $region27: #{recurrent_attention_forward.2} parent=0 // pred_check_branch
    %2139 = sbr.rel (0) target = $region29
  $region28: #{recurrent_attention_forward.2} parent=0 // pred_region
    _
  $region29: #{recurrent_attention_forward.2} parent=0 // pred_fallthru
    _
  // Predicated region
  $region30: #{recurrent_attention_forward.2} parent=0 // pred_check
    _
  $region31: #{recurrent_attention_forward.2} parent=0 // pred_check_branch
    %2141 = sbr.rel (0) target = $region33
  $region32: #{recurrent_attention_forward.2} parent=0 // pred_region
    _
  $region33: #{recurrent_attention_forward.2} parent=0 // pred_fallthru
    _
  // Predicated region
  $region34: #{recurrent_attention_forward.2} parent=0 // pred_check
    _
  $region35: #{recurrent_attention_forward.2} parent=0 // pred_check_branch
    %2143 = sbr.rel (0) target = $region37
  $region36: #{recurrent_attention_forward.2} parent=0 // pred_region
    _
  $region37: #{recurrent_attention_forward.2} parent=0 // pred_fallthru
    _
  // Predicated region
  $region38: #{recurrent_attention_forward.2} parent=0 // pred_check
    _
  $region39: #{recurrent_attention_forward.2} parent=0 // pred_check_branch
    %2145 = sbr.rel (0) target = $region41
  $region40: #{recurrent_attention_forward.2} parent=0 // pred_region
    _
  $region41: #{recurrent_attention_forward.2} parent=0 // pred_fallthru
    _

</llo_original>
